<compile_context>
chip_gen: v7x
topology: tpu7x:2x2x1
jax: 0.10.0
libtpu: 0.0.40
codegen_flags: <defaults>
</compile_context>

<pallas_src>
import jax
import jax.numpy as jnp
from jax.experimental import pallas as pl
from jax.experimental.pallas import tpu as pltpu

IN_DIM = 768 * 2      # fc_text input  (768*2)
HID_DIM = 768         # fc_text output
OUT_DIM = 4           # output_dim (small, synthetic)
OUT_PAD = 128         # lane-dense padded output width (multiple of 128)


def _round_up(n, m):
    return ((n + m - 1) // m) * m


def _emotion_head_kernel(x_ref, w1_ref, b1_ref, w2_ref, b2_ref, out_ref):
    """Fused: Linear(1536->768) -> ReLU -> Linear(768->OUT_PAD), bf16 MXU / f32 accum."""
    # x arrives f32 straight from HBM; cast to bf16 only at the MXU boundary (VPU cast
    # hides under the MXU slot, and the HBM stream stays a single f32 read).
    xb = x_ref[...].astype(jnp.bfloat16)
    h = jnp.dot(xb, w1_ref[...], preferred_element_type=jnp.float32)   # [TM, 768] f32
    # Bias + ReLU in f32 (safe on v5e which lacks a bf16 VPU path).
    h = jnp.maximum(h + b1_ref[...], 0.0)
    # Second matmul: cast activations to bf16 only at the MXU boundary.
    y = jnp.dot(h.astype(jnp.bfloat16), w2_ref[...],
                preferred_element_type=jnp.float32)                    # [TM, OUT_PAD] f32
    out_ref[...] = (y + b2_ref[...]).astype(out_ref.dtype)             # bf16 store


def prepare_head_params(w1, b1, w2, b2):
    """One-time weight prep: bf16 MXU operands, OUT_DIM padded to a full 128-lane tile.

    w1: [1536, 768], b1: [1, 768], w2: [768, OUT_DIM], b2: [1, OUT_DIM]  (all [in, out]).
    """
    w1b = w1.astype(jnp.bfloat16)
    b1f = b1.astype(jnp.float32).reshape(1, HID_DIM)
    w2p = jnp.pad(w2.astype(jnp.bfloat16), ((0, 0), (0, OUT_PAD - w2.shape[1])))
    b2p = jnp.pad(b2.astype(jnp.float32).reshape(1, -1),
                  ((0, 0), (0, OUT_PAD - b2.shape[-1])))
    return w1b, b1f, w2p, b2p


def emotion_classifier_head(x, w1b, b1f, w2p, b2p, *, block_b=1024):
    """x: [B, 1536] f32.  Prepared params from prepare_head_params.
    Returns logits [B, OUT_DIM] f32."""
    B = x.shape[0]
    x = x.astype(jnp.float32)

    # Batch tile: small batches round up to a bf16-packed 16-row tile; large batches
    # use block_b.  No padding of x — the ragged last tile is masked by Pallas.
    tm = min(block_b, _round_up(max(B, 1), 16))
    grid_b = pl.cdiv(B, tm)

    # VMEM footprint: x f32 + out bf16 double-buffered, weights single-buffered,
    # plus in-kernel bf16 casts / f32 h as compute scratch.
    vmem_bytes = (
        2 * tm * IN_DIM * 4          # x tiles (f32, double-buffered)
        + 2 * tm * OUT_PAD * 2       # out tiles (bf16, double-buffered)
        + IN_DIM * HID_DIM * 2       # W1 (bf16, single-buffered)
        + HID_DIM * OUT_PAD * 2      # W2 (bf16, single-buffered)
        + (HID_DIM + OUT_PAD) * 4    # biases (f32)
        + tm * IN_DIM * 2            # in-kernel bf16 copy of x
        + tm * HID_DIM * (4 + 2)     # h f32 + bf16 copy
    )
    vmem_limit = int(max(vmem_bytes + (6 << 20), 16 << 20))

    flops = 2 * B * IN_DIM * HID_DIM + 2 * B * HID_DIM * OUT_PAD
    bytes_accessed = int(B * IN_DIM * 4 + w1b.size * 2 + w2p.size * 2
                         + b1f.size * 4 + b2p.size * 4 + B * OUT_PAD * 2)

    # Constant-index operands: single-buffered (block index never changes).
    single = pl.Buffered(1)

    out = pl.pallas_call(
        _emotion_head_kernel,
        out_shape=jax.ShapeDtypeStruct((B, OUT_PAD), jnp.bfloat16),
        grid=(grid_b,),
        in_specs=[
            pl.BlockSpec((tm, IN_DIM), lambda i: (i, 0)),                     # x (batch-tiled)
            pl.BlockSpec((IN_DIM, HID_DIM), lambda i: (0, 0),
                         pipeline_mode=single),                               # W1 resident
            pl.BlockSpec((1, HID_DIM), lambda i: (0, 0),
                         pipeline_mode=single),                               # b1 resident
            pl.BlockSpec((HID_DIM, OUT_PAD), lambda i: (0, 0),
                         pipeline_mode=single),                               # W2 resident
            pl.BlockSpec((1, OUT_PAD), lambda i: (0, 0),
                         pipeline_mode=single),                               # b2 resident
        ],
        out_specs=pl.BlockSpec((tm, OUT_PAD), lambda i: (i, 0)),
        compiler_params=pltpu.CompilerParams(
            # Only shard batch tiles across TCs when there are enough of them; otherwise
            # megacore "parallel" just duplicates the resident-weight DMA per core.
            dimension_semantics=("parallel",) if grid_b >= 4 else ("arbitrary",),
            vmem_limit_bytes=vmem_limit,
        ),
        cost_estimate=pl.CostEstimate(
            flops=flops, transcendentals=0, bytes_accessed=bytes_accessed),
    )(x, w1b, b1f, w2p, b2p)

    return out[:, :OUT_DIM].astype(jnp.float32)


def init_params(key):
    """Deterministic synthetic parameters matching the nn.Linear shapes."""
    k1, k2, k3, k4 = jax.random.split(key, 4)
    # torch nn.Linear stores weight as [out, in]; we keep [in, out] for the kernel.
    w1 = jax.random.normal(k1, (IN_DIM, HID_DIM), jnp.float32) * 0.02
    b1 = jax.random.normal(k2, (1, HID_DIM), jnp.float32) * 0.02
    w2 = jax.random.normal(k3, (HID_DIM, OUT_DIM), jnp.float32) * 0.02
    b2 = jax.random.normal(k4, (1, OUT_DIM), jnp.float32) * 0.02
    return w1, b1, w2, b2


def reference_head_f32(x, w1, b1, w2, b2):
    h = jnp.maximum(x @ w1 + b1, 0.0)
    return h @ w2 + b2


def reference_head_bf16(x, w1, b1, w2, b2):
    """Mirror of the kernel's dtype handling (bf16 MXU operands, f32 accum, bf16 store)."""
    h = jnp.dot(x.astype(jnp.bfloat16), w1.astype(jnp.bfloat16),
                preferred_element_type=jnp.float32) + b1
    h = jnp.maximum(h, 0.0)
    y = jnp.dot(h.astype(jnp.bfloat16), w2.astype(jnp.bfloat16),
                preferred_element_type=jnp.float32) + b2
    return y.astype(jnp.bfloat16).astype(jnp.float32)


if __name__ == "__main__":
    key = jax.random.PRNGKey(0)
    k_x, k_p = jax.random.split(key)

    B = 2
    # Stand-in for the concatenated 768*2 feature vector the head consumes.
    x = jax.random.normal(k_x, (B, IN_DIM), jnp.float32)
    w1, b1, w2, b2 = init_params(k_p)
    w1b, b1f, w2p, b2p = prepare_head_params(w1, b1, w2, b2)   # one-time weight prep

    out = emotion_classifier_head(x, w1b, b1f, w2p, b2p)
    out = jax.block_until_ready(out)
    assert out.shape == (B, OUT_DIM)

    # Exact-dtype-matched reference (bf16 operands, f32 accumulation, bf16 output store).
    ref_bf16 = reference_head_bf16(x, w1, b1, w2, b2)
    assert jnp.allclose(out, ref_bf16, atol=5e-3, rtol=5e-3), (
        float(jnp.max(jnp.abs(out - ref_bf16))))

    # Loose sanity check against pure-f32 math (bf16 rounding only).
    ref_f32 = reference_head_f32(x, w1, b1, w2, b2)
    assert jnp.allclose(out, ref_f32, atol=5e-2, rtol=5e-2), (
        float(jnp.max(jnp.abs(out - ref_f32))))

    print("KERNEL_OK")
</pallas_src>

<mosaic_0001>
module attributes {stable_mosaic.version = 11 : i64} {
  func.func @_emotion_head_kernel(%arg0: i32, %arg1: memref<16x1536xf32, #tpu.memory_space<vmem>>, %arg2: memref<1536x768xbf16, #tpu.memory_space<vmem>>, %arg3: memref<1x768xf32, #tpu.memory_space<vmem>>, %arg4: memref<768x128xbf16, #tpu.memory_space<vmem>>, %arg5: memref<1x128xf32, #tpu.memory_space<vmem>>, %arg6: memref<16x128xbf16, #tpu.memory_space<vmem>>) attributes {dimension_semantics = [#tpu.dimension_semantics<arbitrary>], iteration_bounds = array<i64: 1>, scalar_prefetch = 0 : i64, scratch_operands = 0 : i64, tpu.core_type = #tpu.core_type<tc>, window_params = [{transform_indices = @transform_0, window_bounds = array<i64: 16, 1536>}, {pipeline_mode = #tpu.pipeline_mode<synchronous>, transform_indices = @transform_1, window_bounds = array<i64: 1536, 768>}, {pipeline_mode = #tpu.pipeline_mode<synchronous>, transform_indices = @transform_2, window_bounds = array<i64: 1, 768>}, {pipeline_mode = #tpu.pipeline_mode<synchronous>, transform_indices = @transform_3, window_bounds = array<i64: 768, 128>}, {pipeline_mode = #tpu.pipeline_mode<synchronous>, transform_indices = @transform_4, window_bounds = array<i64: 1, 128>}, {transform_indices = @transform_5, window_bounds = array<i64: 16, 128>}]} {
    %c0 = arith.constant 0 : index
    %c0_0 = arith.constant 0 : index
    %0 = vector.load %arg1[%c0, %c0_0] : memref<16x1536xf32, #tpu.memory_space<vmem>>, vector<16x1536xf32>
    %1 = arith.truncf %0 : vector<16x1536xf32> to vector<16x1536xbf16>
    %c0_1 = arith.constant 0 : index
    %c0_2 = arith.constant 0 : index
    %2 = vector.load %arg2[%c0_1, %c0_2] : memref<1536x768xbf16, #tpu.memory_space<vmem>>, vector<1536x768xbf16>
    %cst = arith.constant dense<0.000000e+00> : vector<16x768xf32>
    %3 = tpu.matmul %1, %2, %cst {dimension_numbers = #tpu.dot_dimension_numbers<[1], [0], [0], [1], [0, 0, 1, 1], [], []>} : vector<16x1536xbf16>, vector<1536x768xbf16>, vector<16x768xf32> -> vector<16x768xf32>
    %c0_3 = arith.constant 0 : index
    %c0_4 = arith.constant 0 : index
    %4 = vector.load %arg3[%c0_3, %c0_4] : memref<1x768xf32, #tpu.memory_space<vmem>>, vector<1x768xf32>
    %5 = vector.broadcast %4 : vector<1x768xf32> to vector<16x768xf32>
    %6 = arith.addf %3, %5 : vector<16x768xf32>
    %cst_5 = arith.constant 0.000000e+00 : f32
    %7 = vector.broadcast %cst_5 : f32 to vector<16x768xf32>
    %8 = arith.maximumf %6, %7 : vector<16x768xf32>
    %9 = arith.truncf %8 : vector<16x768xf32> to vector<16x768xbf16>
    %c0_6 = arith.constant 0 : index
    %c0_7 = arith.constant 0 : index
    %10 = vector.load %arg4[%c0_6, %c0_7] : memref<768x128xbf16, #tpu.memory_space<vmem>>, vector<768x128xbf16>
    %cst_8 = arith.constant dense<0.000000e+00> : vector<16x128xf32>
    %11 = tpu.matmul %9, %10, %cst_8 {dimension_numbers = #tpu.dot_dimension_numbers<[1], [0], [0], [1], [0, 0, 1, 1], [], []>} : vector<16x768xbf16>, vector<768x128xbf16>, vector<16x128xf32> -> vector<16x128xf32>
    %c0_9 = arith.constant 0 : index
    %c0_10 = arith.constant 0 : index
    %12 = vector.load %arg5[%c0_9, %c0_10] : memref<1x128xf32, #tpu.memory_space<vmem>>, vector<1x128xf32>
    %13 = vector.broadcast %12 : vector<1x128xf32> to vector<16x128xf32>
    %14 = arith.addf %11, %13 : vector<16x128xf32>
    %15 = arith.truncf %14 : vector<16x128xf32> to vector<16x128xbf16>
    %c0_11 = arith.constant 0 : index
    %c0_12 = arith.constant 0 : index
    %16 = vector.load %arg6[%c0_11, %c0_12] : memref<16x128xbf16, #tpu.memory_space<vmem>>, vector<16x128xbf16>
    tpu.vector_store %arg6[%c0_11, %c0_12], %15 {strides = array<i32>} : memref<16x128xbf16, #tpu.memory_space<vmem>>, vector<16x128xbf16>,
    return
  }
  func.func @transform_0(%arg0: i32) -> (i32, i32) {
    %c0_i32 = arith.constant 0 : i32
    %c0_i32_0 = arith.constant 0 : i32
    return %arg0, %c0_i32 : i32, i32
  }
  func.func @transform_1(%arg0: i32) -> (i32, i32) {
    %c0_i32 = arith.constant 0 : i32
    %c0_i32_0 = arith.constant 0 : i32
    %c0_i32_1 = arith.constant 0 : i32
    return %c0_i32, %c0_i32_0 : i32, i32
  }
  func.func @transform_2(%arg0: i32) -> (i32, i32) {
    %c0_i32 = arith.constant 0 : i32
    %c0_i32_0 = arith.constant 0 : i32
    %c0_i32_1 = arith.constant 0 : i32
    return %c0_i32, %c0_i32_0 : i32, i32
  }
  func.func @transform_3(%arg0: i32) -> (i32, i32) {
    %c0_i32 = arith.constant 0 : i32
    %c0_i32_0 = arith.constant 0 : i32
    %c0_i32_1 = arith.constant 0 : i32
    return %c0_i32, %c0_i32_0 : i32, i32
  }
  func.func @transform_4(%arg0: i32) -> (i32, i32) {
    %c0_i32 = arith.constant 0 : i32
    %c0_i32_0 = arith.constant 0 : i32
    %c0_i32_1 = arith.constant 0 : i32
    return %c0_i32, %c0_i32_0 : i32, i32
  }
  func.func @transform_5(%arg0: i32) -> (i32, i32) {
    %c0_i32 = arith.constant 0 : i32
    %c0_i32_0 = arith.constant 0 : i32
    return %arg0, %c0_i32 : i32, i32
  }
}

</mosaic_0001>

<llo_original>
// kernel: tpu_custom_call.1
$region0: #{tpu_custom_call.1}
  #allocation0 [shape = 'u32[]', space=smem, size = 0x4, offset = 0x4, fixed_abs, tag = 'smem constant byte address 0x4 - core index']
  #allocation1 [shape = 'u32[144,128]{1,0:T(1,128)}', space=vmem, size = 0x12000, scoped, tag = 'internal scratch']
  %s0 = inlined_call_operand.hbm [shape: f32[2,1536], index: 0, kind: input, shape index: {}]
  %s1 = inlined_call_operand.hbm [shape: bf16[1536,768], index: 1, kind: input, shape index: {}]
  %s2 = inlined_call_operand.hbm [shape: f32[1,768], index: 2, kind: input, shape index: {}]
  %s3 = inlined_call_operand.hbm [shape: bf16[768,128], index: 3, kind: input, shape index: {}]
  %s4 = inlined_call_operand.hbm [shape: f32[1,128], index: 4, kind: input, shape index: {}]
  %s5 = inlined_call_operand.hbm [shape: bf16[2,128], index: 5, kind: output, shape index: {}]
  %s6 = sld [smem:[#allocation0]]
  $region50: #{tpu_custom_call.1} parent=0
    _
  %s8 = ssub.s32 1, %s6
  %s9 = scalar_select 0, %s8, %s6
  $region1: #{tpu_custom_call.1} parent=0
    #allocation2 [shape = 'u8[98304]{0}', space=vmem, size = 0x18000, scoped, tag = 'input window, operand 0, single buffered']
    #allocation3 [shape = 's32[1]{0}', space=sflag, size = 0x4, scoped, tag = 'scoped memory for tpu_custom_call.1']
    #allocation4 [shape = 's32[1]{0}', space=sflag, size = 0x4, scoped, tag = 'scoped memory for tpu_custom_call.1']
    #allocation5 [shape = 'u8[2359296]{0}', space=vmem, size = 0x240000, scoped, tag = 'input window, operand 1, single buffered']
    #allocation6 [shape = 's32[1]{0}', space=sflag, size = 0x4, scoped, tag = 'scoped memory for tpu_custom_call.1']
    #allocation7 [shape = 'u8[3072]{0}', space=vmem, size = 0xc00, scoped, tag = 'input window, operand 2, single buffered']
    #allocation8 [shape = 'u8[196608]{0}', space=vmem, size = 0x30000, scoped, tag = 'input window, operand 3, single buffered']
    #allocation9 [shape = 's32[1]{0}', space=sflag, size = 0x4, scoped, tag = 'scoped memory for tpu_custom_call.1']
    #allocation10 [shape = 'u8[512]{0}', space=vmem, size = 0x400, scoped, tag = 'input window, operand 4, single buffered']
    #allocation11 [shape = 'u8[4096]{0}', space=vmem, size = 0x1000, scoped, tag = 'output window, operand 0, single buffered']
    %10 = vsyncpa [#allocation3], 0
    %11 = vsyncpa [#allocation6], 0
    %12 = vsyncpa [#allocation9], 0
    %13 = vsyncpa [#allocation4], 0
    // Predicated region
    $region2: #{tpu_custom_call.1} parent=1 // pred_check
      _
    $region3: #{tpu_custom_call.1} parent=1 // pred_check_branch
      %15 = sbr.rel (0) target = $region5
    $region4: #{tpu_custom_call.1} parent=1 // pred_region
      %s17 = ssub.s32 3072, 384
      %18 = vsyncadd [#allocation3], %s17
      %s19 = sshll.u32 [#allocation2], 4
      %s20 = int_to_ptr.vmem [resolvable:$true] %s19
      %25 = dma.hbm_to_vmem [thread:$0]  %s0, 384, %s20, [#allocation3], 384, 384, 24
    $region5: #{tpu_custom_call.1} parent=1 // pred_fallthru
      _
    // Predicated region
    $region6: #{tpu_custom_call.1} parent=1 // pred_check
      _
    $region7: #{tpu_custom_call.1} parent=1 // pred_check_branch
      %27 = sbr.rel (0) target = $region9
    $region8: #{tpu_custom_call.1} parent=1 // pred_region
      %s29 = ssub.s32 73728, 73728
      %30 = vsyncadd [#allocation6], %s29
      %s31 = sshll.u32 [#allocation5], 4
      %s32 = int_to_ptr.vmem [resolvable:$true] %s31
      %37 = dma.hbm_to_vmem [thread:$0]  %s1, 73728, %s32, [#allocation6], 384, 384, 24
    $region9: #{tpu_custom_call.1} parent=1 // pred_fallthru
      _
    // Predicated region
    $region10: #{tpu_custom_call.1} parent=1 // pred_check
      _
    $region11: #{tpu_custom_call.1} parent=1 // pred_check_branch
      %39 = sbr.rel (0) target = $region13
    $region12: #{tpu_custom_call.1} parent=1 // pred_region
      %s41 = ssub.s32 96, 96
      %42 = vsyncadd [#allocation6], %s41
      %s44 = sshll.u32 [#allocation7], 4
      %s45 = int_to_ptr.vmem [resolvable:$true] %s44
      %47 = dma.hbm_to_vmem [thread:$0]  %s2, 96, %s45, [#allocation6]
    $region13: #{tpu_custom_call.1} parent=1 // pred_fallthru
      _
    // Predicated region
    $region14: #{tpu_custom_call.1} parent=1 // pred_check
      _
    $region15: #{tpu_custom_call.1} parent=1 // pred_check_branch
      %49 = sbr.rel (0) target = $region17
    $region16: #{tpu_custom_call.1} parent=1 // pred_region
      %s51 = ssub.s32 6144, 6144
      %52 = vsyncadd [#allocation9], %s51
      %s53 = sshll.u32 [#allocation8], 4
      %s54 = int_to_ptr.vmem [resolvable:$true] %s53
      %59 = dma.hbm_to_vmem [thread:$0]  %s3, 6144, %s54, [#allocation9], 64, 64, 4
    $region17: #{tpu_custom_call.1} parent=1 // pred_fallthru
      _
    // Predicated region
    $region18: #{tpu_custom_call.1} parent=1 // pred_check
      _
    $region19: #{tpu_custom_call.1} parent=1 // pred_check_branch
      %61 = sbr.rel (0) target = $region21
    $region20: #{tpu_custom_call.1} parent=1 // pred_region
      %s63 = ssub.s32 16, 16
      %64 = vsyncadd [#allocation9], %s63
      %s66 = sshll.u32 [#allocation10], 4
      %s67 = int_to_ptr.vmem [resolvable:$true] %s66
      %69 = dma.hbm_to_vmem [thread:$0]  %s4, 16, %s67, [#allocation9]
    $region21: #{tpu_custom_call.1} parent=1 // pred_fallthru
      _
    // Predicated region
    $region22: #{tpu_custom_call.1} parent=1 // pred_check
      _
    $region23: #{tpu_custom_call.1} parent=1 // pred_check_branch
      %71 = sbr.rel (0) target = $region25
    $region24: #{tpu_custom_call.1} parent=1 // pred_region
      %72 = dma.done [#allocation3], 3072
    $region25: #{tpu_custom_call.1} parent=1 // pred_fallthru
      _
    // Predicated region
    $region26: #{tpu_custom_call.1} parent=1 // pred_check
      _
    $region27: #{tpu_custom_call.1} parent=1 // pred_check_branch
      %74 = sbr.rel (0) target = $region29
    $region28: #{tpu_custom_call.1} parent=1 // pred_region
      %75 = dma.done [#allocation6], 73728
    $region29: #{tpu_custom_call.1} parent=1 // pred_fallthru
      _
    // Predicated region
    $region30: #{tpu_custom_call.1} parent=1 // pred_check
      _
    $region31: #{tpu_custom_call.1} parent=1 // pred_check_branch
      %77 = sbr.rel (0) target = $region33
    $region32: #{tpu_custom_call.1} parent=1 // pred_region
      %78 = dma.done [#allocation6], 96
    $region33: #{tpu_custom_call.1} parent=1 // pred_fallthru
      _
    // Predicated region
    $region34: #{tpu_custom_call.1} parent=1 // pred_check
      _
    $region35: #{tpu_custom_call.1} parent=1 // pred_check_branch
      %80 = sbr.rel (0) target = $region37
    $region36: #{tpu_custom_call.1} parent=1 // pred_region
      %81 = dma.done [#allocation9], 6144
    $region37: #{tpu_custom_call.1} parent=1 // pred_fallthru
      _
    // Predicated region
    $region38: #{tpu_custom_call.1} parent=1 // pred_check
      _
    $region39: #{tpu_custom_call.1} parent=1 // pred_check_branch
      %83 = sbr.rel (0) target = $region41
    $region40: #{tpu_custom_call.1} parent=1 // pred_region
      %84 = dma.done [#allocation9], 16
    $region41: #{tpu_custom_call.1} parent=1 // pred_fallthru
      _
    %v86 = vld [vmem:[#allocation2] sm:$0xff]
    %v87 = vld [vmem:[#allocation2 + $0x8] sm:$0xff]
    %v88 = vld [vmem:[#allocation2 + $0x10] sm:$0xff]
    %v89 = vld [vmem:[#allocation2 + $0x18] sm:$0xff]
    %v90 = vld [vmem:[#allocation2 + $0x20] sm:$0xff]
    %v91 = vld [vmem:[#allocation2 + $0x28] sm:$0xff]
    %v92 = vld [vmem:[#allocation2 + $0x30] sm:$0xff]
    %v93 = vld [vmem:[#allocation2 + $0x38] sm:$0xff]
    %v94 = vld [vmem:[#allocation2 + $0x40] sm:$0xff]
    %v95 = vld [vmem:[#allocation2 + $0x48] sm:$0xff]
    %v96 = vld [vmem:[#allocation2 + $0x50] sm:$0xff]
    %v97 = vld [vmem:[#allocation2 + $0x58] sm:$0xff]
    %v98 = vld [vmem:[#allocation2 + $0x60] sm:$0xff]
    %v99 = vld [vmem:[#allocation2 + $0x68] sm:$0xff]
    %v100 = vld [vmem:[#allocation2 + $0x70] sm:$0xff]
    %v101 = vld [vmem:[#allocation2 + $0x78] sm:$0xff]
    %v102 = vld [vmem:[#allocation2 + $0x80] sm:$0xff]
    %v103 = vld [vmem:[#allocation2 + $0x88] sm:$0xff]
    %v104 = vld [vmem:[#allocation2 + $0x90] sm:$0xff]
    %v105 = vld [vmem:[#allocation2 + $0x98] sm:$0xff]
    %v106 = vld [vmem:[#allocation2 + $0xa0] sm:$0xff]
    %v107 = vld [vmem:[#allocation2 + $0xa8] sm:$0xff]
    %v108 = vld [vmem:[#allocation2 + $0xb0] sm:$0xff]
    %v109 = vld [vmem:[#allocation2 + $0xb8] sm:$0xff]
    %v134 = vcombine.low %v86, %v89
    %v135 = vcombine.high %v86, %v89
    %v136 = vcombine.low %v92, %v95
    %v137 = vcombine.high %v92, %v95
    %v139 = vunpack.c.l.s4 1983009808
    %v140 = vunpack.c.0.s8 %v139
    %v141 = vlaneseq
    %v142 = vshrl.u32 %v141, 7
    %v143 = vsub.s32 %v140, %v142
    %v144 = vrot.slane %v134, %v143
    %v146 = vunpack.c.l.s4 1983009808
    %v147 = vunpack.c.0.s8 %v146
    %v148 = vlaneseq
    %v149 = vshrl.u32 %v148, 7
    %v150 = vsub.s32 %v147, %v149
    %v151 = vrot.slane %v135, %v150
    %v153 = vunpack.c.l.s4 1983009808
    %v154 = vunpack.c.0.s8 %v153
    %v155 = vlaneseq
    %v156 = vshrl.u32 %v155, 7
    %v157 = vsub.s32 %v154, %v156
    %v158 = vrot.slane %v136, %v157
    %v160 = vunpack.c.l.s4 1983009808
    %v161 = vunpack.c.0.s8 %v160
    %v162 = vlaneseq
    %v163 = vshrl.u32 %v162, 7
    %v164 = vsub.s32 %v161, %v163
    %v165 = vrot.slane %v137, %v164
    %v166 = vcombine.low %v144, %v158
    %v167 = vcombine.high %v144, %v158
    %v168 = vcombine.low %v151, %v165
    %v169 = vcombine.high %v151, %v165
    %v170 = vcombine.low %v87, %v90
    %v171 = vcombine.high %v87, %v90
    %v172 = vcombine.low %v93, %v96
    %v173 = vcombine.high %v93, %v96
    %v175 = vunpack.c.l.s4 1983009808
    %v176 = vunpack.c.0.s8 %v175
    %v177 = vlaneseq
    %v178 = vshrl.u32 %v177, 7
    %v179 = vsub.s32 %v176, %v178
    %v180 = vrot.slane %v170, %v179
    %v182 = vunpack.c.l.s4 1983009808
    %v183 = vunpack.c.0.s8 %v182
    %v184 = vlaneseq
    %v185 = vshrl.u32 %v184, 7
    %v186 = vsub.s32 %v183, %v185
    %v187 = vrot.slane %v171, %v186
    %v189 = vunpack.c.l.s4 1983009808
    %v190 = vunpack.c.0.s8 %v189
    %v191 = vlaneseq
    %v192 = vshrl.u32 %v191, 7
    %v193 = vsub.s32 %v190, %v192
    %v194 = vrot.slane %v172, %v193
    %v196 = vunpack.c.l.s4 1983009808
    %v197 = vunpack.c.0.s8 %v196
    %v198 = vlaneseq
    %v199 = vshrl.u32 %v198, 7
    %v200 = vsub.s32 %v197, %v199
    %v201 = vrot.slane %v173, %v200
    %v202 = vcombine.low %v180, %v194
    %v203 = vcombine.high %v180, %v194
    %v204 = vcombine.low %v187, %v201
    %v205 = vcombine.high %v187, %v201
    %v206 = vcombine.low %v88, %v91
    %v207 = vcombine.high %v88, %v91
    %v208 = vcombine.low %v94, %v97
    %v209 = vcombine.high %v94, %v97
    %v211 = vunpack.c.l.s4 1983009808
    %v212 = vunpack.c.0.s8 %v211
    %v213 = vlaneseq
    %v214 = vshrl.u32 %v213, 7
    %v215 = vsub.s32 %v212, %v214
    %v216 = vrot.slane %v206, %v215
    %v218 = vunpack.c.l.s4 1983009808
    %v219 = vunpack.c.0.s8 %v218
    %v220 = vlaneseq
    %v221 = vshrl.u32 %v220, 7
    %v222 = vsub.s32 %v219, %v221
    %v223 = vrot.slane %v207, %v222
    %v225 = vunpack.c.l.s4 1983009808
    %v226 = vunpack.c.0.s8 %v225
    %v227 = vlaneseq
    %v228 = vshrl.u32 %v227, 7
    %v229 = vsub.s32 %v226, %v228
    %v230 = vrot.slane %v208, %v229
    %v232 = vunpack.c.l.s4 1983009808
    %v233 = vunpack.c.0.s8 %v232
    %v234 = vlaneseq
    %v235 = vshrl.u32 %v234, 7
    %v236 = vsub.s32 %v233, %v235
    %v237 = vrot.slane %v209, %v236
    %v238 = vcombine.low %v216, %v230
    %v239 = vcombine.high %v216, %v230
    %v240 = vcombine.low %v223, %v237
    %v241 = vcombine.high %v223, %v237
    %v242 = vcombine.low %v98, %v101
    %v243 = vcombine.high %v98, %v101
    %v244 = vcombine.low %v104, %v107
    %v245 = vcombine.high %v104, %v107
    %v247 = vunpack.c.l.s4 1983009808
    %v248 = vunpack.c.0.s8 %v247
    %v249 = vlaneseq
    %v250 = vshrl.u32 %v249, 7
    %v251 = vsub.s32 %v248, %v250
    %v252 = vrot.slane %v242, %v251
    %v254 = vunpack.c.l.s4 1983009808
    %v255 = vunpack.c.0.s8 %v254
    %v256 = vlaneseq
    %v257 = vshrl.u32 %v256, 7
    %v258 = vsub.s32 %v255, %v257
    %v259 = vrot.slane %v243, %v258
    %v261 = vunpack.c.l.s4 1983009808
    %v262 = vunpack.c.0.s8 %v261
    %v263 = vlaneseq
    %v264 = vshrl.u32 %v263, 7
    %v265 = vsub.s32 %v262, %v264
    %v266 = vrot.slane %v244, %v265
    %v268 = vunpack.c.l.s4 1983009808
    %v269 = vunpack.c.0.s8 %v268
    %v270 = vlaneseq
    %v271 = vshrl.u32 %v270, 7
    %v272 = vsub.s32 %v269, %v271
    %v273 = vrot.slane %v245, %v272
    %v274 = vcombine.low %v252, %v266
    %v275 = vcombine.high %v252, %v266
    %v276 = vcombine.low %v259, %v273
    %v277 = vcombine.high %v259, %v273
    %v278 = vcombine.low %v99, %v102
    %v279 = vcombine.high %v99, %v102
    %v280 = vcombine.low %v105, %v108
    %v281 = vcombine.high %v105, %v108
    %v283 = vunpack.c.l.s4 1983009808
    %v284 = vunpack.c.0.s8 %v283
    %v285 = vlaneseq
    %v286 = vshrl.u32 %v285, 7
    %v287 = vsub.s32 %v284, %v286
    %v288 = vrot.slane %v278, %v287
    %v290 = vunpack.c.l.s4 1983009808
    %v291 = vunpack.c.0.s8 %v290
    %v292 = vlaneseq
    %v293 = vshrl.u32 %v292, 7
    %v294 = vsub.s32 %v291, %v293
    %v295 = vrot.slane %v279, %v294
    %v297 = vunpack.c.l.s4 1983009808
    %v298 = vunpack.c.0.s8 %v297
    %v299 = vlaneseq
    %v300 = vshrl.u32 %v299, 7
    %v301 = vsub.s32 %v298, %v300
    %v302 = vrot.slane %v280, %v301
    %v304 = vunpack.c.l.s4 1983009808
    %v305 = vunpack.c.0.s8 %v304
    %v306 = vlaneseq
    %v307 = vshrl.u32 %v306, 7
    %v308 = vsub.s32 %v305, %v307
    %v309 = vrot.slane %v281, %v308
    %v310 = vcombine.low %v288, %v302
    %v311 = vcombine.high %v288, %v302
    %v312 = vcombine.low %v295, %v309
    %v313 = vcombine.high %v295, %v309
    %v314 = vcombine.low %v100, %v103
    %v315 = vcombine.high %v100, %v103
    %v316 = vcombine.low %v106, %v109
    %v317 = vcombine.high %v106, %v109
    %v319 = vunpack.c.l.s4 1983009808
    %v320 = vunpack.c.0.s8 %v319
    %v321 = vlaneseq
    %v322 = vshrl.u32 %v321, 7
    %v323 = vsub.s32 %v320, %v322
    %v324 = vrot.slane %v314, %v323
    %v326 = vunpack.c.l.s4 1983009808
    %v327 = vunpack.c.0.s8 %v326
    %v328 = vlaneseq
    %v329 = vshrl.u32 %v328, 7
    %v330 = vsub.s32 %v327, %v329
    %v331 = vrot.slane %v315, %v330
    %v333 = vunpack.c.l.s4 1983009808
    %v334 = vunpack.c.0.s8 %v333
    %v335 = vlaneseq
    %v336 = vshrl.u32 %v335, 7
    %v337 = vsub.s32 %v334, %v336
    %v338 = vrot.slane %v316, %v337
    %v340 = vunpack.c.l.s4 1983009808
    %v341 = vunpack.c.0.s8 %v340
    %v342 = vlaneseq
    %v343 = vshrl.u32 %v342, 7
    %v344 = vsub.s32 %v341, %v343
    %v345 = vrot.slane %v317, %v344
    %v346 = vcombine.low %v324, %v338
    %v347 = vcombine.high %v324, %v338
    %v348 = vcombine.low %v331, %v345
    %v349 = vcombine.high %v331, %v345
    %v374 = vpack.c.bf16 %v274, %v166
    %v375 = vpack.c.bf16 %v275, %v167
    %v376 = vpack.c.bf16 %v276, %v168
    %v377 = vpack.c.bf16 %v277, %v169
    %v378 = vpack.c.bf16 %v310, %v202
    %v379 = vpack.c.bf16 %v311, %v203
    %v380 = vpack.c.bf16 %v312, %v204
    %v381 = vpack.c.bf16 %v313, %v205
    %v382 = vpack.c.bf16 %v346, %v238
    %v383 = vpack.c.bf16 %v347, %v239
    %v384 = vpack.c.bf16 %v348, %v240
    %v385 = vpack.c.bf16 %v349, %v241
    %v386 = vld [vmem:[#allocation5] sm:$0xff]
    %v387 = vld [vmem:[#allocation5 + $0x8] sm:$0xff]
    %v388 = vld [vmem:[#allocation5 + $0x10] sm:$0xff]
    %v389 = vld [vmem:[#allocation5 + $0x18] sm:$0xff]
    %v390 = vld [vmem:[#allocation5 + $0x20] sm:$0xff]
    %v391 = vld [vmem:[#allocation5 + $0x28] sm:$0xff]
    %v392 = vld [vmem:[#allocation5 + $0x30] sm:$0xff]
    %v393 = vld [vmem:[#allocation5 + $0x38] sm:$0xff]
    %v394 = vld [vmem:[#allocation5 + $0x40] sm:$0xff]
    %v395 = vld [vmem:[#allocation5 + $0x48] sm:$0xff]
    %v396 = vld [vmem:[#allocation5 + $0x50] sm:$0xff]
    %v397 = vld [vmem:[#allocation5 + $0x58] sm:$0xff]
    %v398 = vld [vmem:[#allocation5 + $0x60] sm:$0xff]
    %v399 = vld [vmem:[#allocation5 + $0x68] sm:$0xff]
    %v400 = vld [vmem:[#allocation5 + $0x70] sm:$0xff]
    %v401 = vld [vmem:[#allocation5 + $0x78] sm:$0xff]
    %v402 = vld [vmem:[#allocation5 + $0x80] sm:$0xff]
    %v403 = vld [vmem:[#allocation5 + $0x88] sm:$0xff]
    %v404 = vld [vmem:[#allocation5 + $0x90] sm:$0xff]
    %v405 = vld [vmem:[#allocation5 + $0x98] sm:$0xff]
    %v406 = vld [vmem:[#allocation5 + $0xa0] sm:$0xff]
    %v407 = vld [vmem:[#allocation5 + $0xa8] sm:$0xff]
    %v408 = vld [vmem:[#allocation5 + $0xb0] sm:$0xff]
    %v409 = vld [vmem:[#allocation5 + $0xb8] sm:$0xff]
    %v410 = vld [vmem:[#allocation5 + $0xc0] sm:$0xff]
    %v411 = vld [vmem:[#allocation5 + $0xc8] sm:$0xff]
    %v412 = vld [vmem:[#allocation5 + $0xd0] sm:$0xff]
    %v413 = vld [vmem:[#allocation5 + $0xd8] sm:$0xff]
    %v414 = vld [vmem:[#allocation5 + $0xe0] sm:$0xff]
    %v415 = vld [vmem:[#allocation5 + $0xe8] sm:$0xff]
    %v416 = vld [vmem:[#allocation5 + $0xf0] sm:$0xff]
    %v417 = vld [vmem:[#allocation5 + $0xf8] sm:$0xff]
    %v418 = vld [vmem:[#allocation5 + $0x100] sm:$0xff]
    %v419 = vld [vmem:[#allocation5 + $0x108] sm:$0xff]
    %v420 = vld [vmem:[#allocation5 + $0x110] sm:$0xff]
    %v421 = vld [vmem:[#allocation5 + $0x118] sm:$0xff]
    %v422 = vld [vmem:[#allocation5 + $0x120] sm:$0xff]
    %v423 = vld [vmem:[#allocation5 + $0x128] sm:$0xff]
    %v424 = vld [vmem:[#allocation5 + $0x130] sm:$0xff]
    %v425 = vld [vmem:[#allocation5 + $0x138] sm:$0xff]
    %v426 = vld [vmem:[#allocation5 + $0x140] sm:$0xff]
    %v427 = vld [vmem:[#allocation5 + $0x148] sm:$0xff]
    %v428 = vld [vmem:[#allocation5 + $0x150] sm:$0xff]
    %v429 = vld [vmem:[#allocation5 + $0x158] sm:$0xff]
    %v430 = vld [vmem:[#allocation5 + $0x160] sm:$0xff]
    %v431 = vld [vmem:[#allocation5 + $0x168] sm:$0xff]
    %v432 = vld [vmem:[#allocation5 + $0x170] sm:$0xff]
    %v433 = vld [vmem:[#allocation5 + $0x178] sm:$0xff]
    %v434 = vld [vmem:[#allocation5 + $0x180] sm:$0xff]
    %v435 = vld [vmem:[#allocation5 + $0x188] sm:$0xff]
    %v436 = vld [vmem:[#allocation5 + $0x190] sm:$0xff]
    %v437 = vld [vmem:[#allocation5 + $0x198] sm:$0xff]
    %v438 = vld [vmem:[#allocation5 + $0x1a0] sm:$0xff]
    %v439 = vld [vmem:[#allocation5 + $0x1a8] sm:$0xff]
    %v440 = vld [vmem:[#allocation5 + $0x1b0] sm:$0xff]
    %v441 = vld [vmem:[#allocation5 + $0x1b8] sm:$0xff]
    %v442 = vld [vmem:[#allocation5 + $0x1c0] sm:$0xff]
    %v443 = vld [vmem:[#allocation5 + $0x1c8] sm:$0xff]
    %v444 = vld [vmem:[#allocation5 + $0x1d0] sm:$0xff]
    %v445 = vld [vmem:[#allocation5 + $0x1d8] sm:$0xff]
    %v446 = vld [vmem:[#allocation5 + $0x1e0] sm:$0xff]
    %v447 = vld [vmem:[#allocation5 + $0x1e8] sm:$0xff]
    %v448 = vld [vmem:[#allocation5 + $0x1f0] sm:$0xff]
    %v449 = vld [vmem:[#allocation5 + $0x1f8] sm:$0xff]
    %v450 = vld [vmem:[#allocation5 + $0x200] sm:$0xff]
    %v451 = vld [vmem:[#allocation5 + $0x208] sm:$0xff]
    %v452 = vld [vmem:[#allocation5 + $0x210] sm:$0xff]
    %v453 = vld [vmem:[#allocation5 + $0x218] sm:$0xff]
    %v454 = vld [vmem:[#allocation5 + $0x220] sm:$0xff]
    %v455 = vld [vmem:[#allocation5 + $0x228] sm:$0xff]
    %v456 = vld [vmem:[#allocation5 + $0x230] sm:$0xff]
    %v457 = vld [vmem:[#allocation5 + $0x238] sm:$0xff]
    %v458 = vld [vmem:[#allocation5 + $0x240] sm:$0xff]
    %v459 = vld [vmem:[#allocation5 + $0x248] sm:$0xff]
    %v460 = vld [vmem:[#allocation5 + $0x250] sm:$0xff]
    %v461 = vld [vmem:[#allocation5 + $0x258] sm:$0xff]
    %v462 = vld [vmem:[#allocation5 + $0x260] sm:$0xff]
    %v463 = vld [vmem:[#allocation5 + $0x268] sm:$0xff]
    %v464 = vld [vmem:[#allocation5 + $0x270] sm:$0xff]
    %v465 = vld [vmem:[#allocation5 + $0x278] sm:$0xff]
    %v466 = vld [vmem:[#allocation5 + $0x280] sm:$0xff]
    %v467 = vld [vmem:[#allocation5 + $0x288] sm:$0xff]
    %v468 = vld [vmem:[#allocation5 + $0x290] sm:$0xff]
    %v469 = vld [vmem:[#allocation5 + $0x298] sm:$0xff]
    %v470 = vld [vmem:[#allocation5 + $0x2a0] sm:$0xff]
    %v471 = vld [vmem:[#allocation5 + $0x2a8] sm:$0xff]
    %v472 = vld [vmem:[#allocation5 + $0x2b0] sm:$0xff]
    %v473 = vld [vmem:[#allocation5 + $0x2b8] sm:$0xff]
    %v474 = vld [vmem:[#allocation5 + $0x2c0] sm:$0xff]
    %v475 = vld [vmem:[#allocation5 + $0x2c8] sm:$0xff]
    %v476 = vld [vmem:[#allocation5 + $0x2d0] sm:$0xff]
    %v477 = vld [vmem:[#allocation5 + $0x2d8] sm:$0xff]
    %v478 = vld [vmem:[#allocation5 + $0x2e0] sm:$0xff]
    %v479 = vld [vmem:[#allocation5 + $0x2e8] sm:$0xff]
    %v480 = vld [vmem:[#allocation5 + $0x2f0] sm:$0xff]
    %v481 = vld [vmem:[#allocation5 + $0x2f8] sm:$0xff]
    %v482 = vld [vmem:[#allocation5 + $0x300] sm:$0xff]
    %v483 = vld [vmem:[#allocation5 + $0x308] sm:$0xff]
    %v484 = vld [vmem:[#allocation5 + $0x310] sm:$0xff]
    %v485 = vld [vmem:[#allocation5 + $0x318] sm:$0xff]
    %v486 = vld [vmem:[#allocation5 + $0x320] sm:$0xff]
    %v487 = vld [vmem:[#allocation5 + $0x328] sm:$0xff]
    %v488 = vld [vmem:[#allocation5 + $0x330] sm:$0xff]
    %v489 = vld [vmem:[#allocation5 + $0x338] sm:$0xff]
    %v490 = vld [vmem:[#allocation5 + $0x340] sm:$0xff]
    %v491 = vld [vmem:[#allocation5 + $0x348] sm:$0xff]
    %v492 = vld [vmem:[#allocation5 + $0x350] sm:$0xff]
    %v493 = vld [vmem:[#allocation5 + $0x358] sm:$0xff]
    %v494 = vld [vmem:[#allocation5 + $0x360] sm:$0xff]
    %v495 = vld [vmem:[#allocation5 + $0x368] sm:$0xff]
    %v496 = vld [vmem:[#allocation5 + $0x370] sm:$0xff]
    %v497 = vld [vmem:[#allocation5 + $0x378] sm:$0xff]
    %v498 = vld [vmem:[#allocation5 + $0x380] sm:$0xff]
    %v499 = vld [vmem:[#allocation5 + $0x388] sm:$0xff]
    %v500 = vld [vmem:[#allocation5 + $0x390] sm:$0xff]
    %v501 = vld [vmem:[#allocation5 + $0x398] sm:$0xff]
    %v502 = vld [vmem:[#allocation5 + $0x3a0] sm:$0xff]
    %v503 = vld [vmem:[#allocation5 + $0x3a8] sm:$0xff]
    %v504 = vld [vmem:[#allocation5 + $0x3b0] sm:$0xff]
    %v505 = vld [vmem:[#allocation5 + $0x3b8] sm:$0xff]
    %v506 = vld [vmem:[#allocation5 + $0x3c0] sm:$0xff]
    %v507 = vld [vmem:[#allocation5 + $0x3c8] sm:$0xff]
    %v508 = vld [vmem:[#allocation5 + $0x3d0] sm:$0xff]
    %v509 = vld [vmem:[#allocation5 + $0x3d8] sm:$0xff]
    %v510 = vld [vmem:[#allocation5 + $0x3e0] sm:$0xff]
    %v511 = vld [vmem:[#allocation5 + $0x3e8] sm:$0xff]
    %v512 = vld [vmem:[#allocation5 + $0x3f0] sm:$0xff]
    %v513 = vld [vmem:[#allocation5 + $0x3f8] sm:$0xff]
    %v514 = vld [vmem:[#allocation5 + $0x400] sm:$0xff]
    %v515 = vld [vmem:[#allocation5 + $0x408] sm:$0xff]
    %v516 = vld [vmem:[#allocation5 + $0x410] sm:$0xff]
    %v517 = vld [vmem:[#allocation5 + $0x418] sm:$0xff]
    %v518 = vld [vmem:[#allocation5 + $0x420] sm:$0xff]
    %v519 = vld [vmem:[#allocation5 + $0x428] sm:$0xff]
    %v520 = vld [vmem:[#allocation5 + $0x430] sm:$0xff]
    %v521 = vld [vmem:[#allocation5 + $0x438] sm:$0xff]
    %v522 = vld [vmem:[#allocation5 + $0x440] sm:$0xff]
    %v523 = vld [vmem:[#allocation5 + $0x448] sm:$0xff]
    %v524 = vld [vmem:[#allocation5 + $0x450] sm:$0xff]
    %v525 = vld [vmem:[#allocation5 + $0x458] sm:$0xff]
    %v526 = vld [vmem:[#allocation5 + $0x460] sm:$0xff]
    %v527 = vld [vmem:[#allocation5 + $0x468] sm:$0xff]
    %v528 = vld [vmem:[#allocation5 + $0x470] sm:$0xff]
    %v529 = vld [vmem:[#allocation5 + $0x478] sm:$0xff]
    %v530 = vld [vmem:[#allocation5 + $0x480] sm:$0xff]
    %v531 = vld [vmem:[#allocation5 + $0x488] sm:$0xff]
    %v532 = vld [vmem:[#allocation5 + $0x490] sm:$0xff]
    %v533 = vld [vmem:[#allocation5 + $0x498] sm:$0xff]
    %v534 = vld [vmem:[#allocation5 + $0x4a0] sm:$0xff]
    %v535 = vld [vmem:[#allocation5 + $0x4a8] sm:$0xff]
    %v536 = vld [vmem:[#allocation5 + $0x4b0] sm:$0xff]
    %v537 = vld [vmem:[#allocation5 + $0x4b8] sm:$0xff]
    %v538 = vld [vmem:[#allocation5 + $0x4c0] sm:$0xff]
    %v539 = vld [vmem:[#allocation5 + $0x4c8] sm:$0xff]
    %v540 = vld [vmem:[#allocation5 + $0x4d0] sm:$0xff]
    %v541 = vld [vmem:[#allocation5 + $0x4d8] sm:$0xff]
    %v542 = vld [vmem:[#allocation5 + $0x4e0] sm:$0xff]
    %v543 = vld [vmem:[#allocation5 + $0x4e8] sm:$0xff]
    %v544 = vld [vmem:[#allocation5 + $0x4f0] sm:$0xff]
    %v545 = vld [vmem:[#allocation5 + $0x4f8] sm:$0xff]
    %v546 = vld [vmem:[#allocation5 + $0x500] sm:$0xff]
    %v547 = vld [vmem:[#allocation5 + $0x508] sm:$0xff]
    %v548 = vld [vmem:[#allocation5 + $0x510] sm:$0xff]
    %v549 = vld [vmem:[#allocation5 + $0x518] sm:$0xff]
    %v550 = vld [vmem:[#allocation5 + $0x520] sm:$0xff]
    %v551 = vld [vmem:[#allocation5 + $0x528] sm:$0xff]
    %v552 = vld [vmem:[#allocation5 + $0x530] sm:$0xff]
    %v553 = vld [vmem:[#allocation5 + $0x538] sm:$0xff]
    %v554 = vld [vmem:[#allocation5 + $0x540] sm:$0xff]
    %v555 = vld [vmem:[#allocation5 + $0x548] sm:$0xff]
    %v556 = vld [vmem:[#allocation5 + $0x550] sm:$0xff]
    %v557 = vld [vmem:[#allocation5 + $0x558] sm:$0xff]
    %v558 = vld [vmem:[#allocation5 + $0x560] sm:$0xff]
    %v559 = vld [vmem:[#allocation5 + $0x568] sm:$0xff]
    %v560 = vld [vmem:[#allocation5 + $0x570] sm:$0xff]
    %v561 = vld [vmem:[#allocation5 + $0x578] sm:$0xff]
    %v562 = vld [vmem:[#allocation5 + $0x580] sm:$0xff]
    %v563 = vld [vmem:[#allocation5 + $0x588] sm:$0xff]
    %v564 = vld [vmem:[#allocation5 + $0x590] sm:$0xff]
    %v565 = vld [vmem:[#allocation5 + $0x598] sm:$0xff]
    %v566 = vld [vmem:[#allocation5 + $0x5a0] sm:$0xff]
    %v567 = vld [vmem:[#allocation5 + $0x5a8] sm:$0xff]
    %v568 = vld [vmem:[#allocation5 + $0x5b0] sm:$0xff]
    %v569 = vld [vmem:[#allocation5 + $0x5b8] sm:$0xff]
    %v570 = vld [vmem:[#allocation5 + $0x5c0] sm:$0xff]
    %v571 = vld [vmem:[#allocation5 + $0x5c8] sm:$0xff]
    %v572 = vld [vmem:[#allocation5 + $0x5d0] sm:$0xff]
    %v573 = vld [vmem:[#allocation5 + $0x5d8] sm:$0xff]
    %v574 = vld [vmem:[#allocation5 + $0x5e0] sm:$0xff]
    %v575 = vld [vmem:[#allocation5 + $0x5e8] sm:$0xff]
    %v576 = vld [vmem:[#allocation5 + $0x5f0] sm:$0xff]
    %v577 = vld [vmem:[#allocation5 + $0x5f8] sm:$0xff]
    %v578 = vld [vmem:[#allocation5 + $0x600] sm:$0xff]
    %v579 = vld [vmem:[#allocation5 + $0x608] sm:$0xff]
    %v580 = vld [vmem:[#allocation5 + $0x610] sm:$0xff]
    %v581 = vld [vmem:[#allocation5 + $0x618] sm:$0xff]
    %v582 = vld [vmem:[#allocation5 + $0x620] sm:$0xff]
    %v583 = vld [vmem:[#allocation5 + $0x628] sm:$0xff]
    %v584 = vld [vmem:[#allocation5 + $0x630] sm:$0xff]
    %v585 = vld [vmem:[#allocation5 + $0x638] sm:$0xff]
    %v586 = vld [vmem:[#allocation5 + $0x640] sm:$0xff]
    %v587 = vld [vmem:[#allocation5 + $0x648] sm:$0xff]
    %v588 = vld [vmem:[#allocation5 + $0x650] sm:$0xff]
    %v589 = vld [vmem:[#allocation5 + $0x658] sm:$0xff]
    %v590 = vld [vmem:[#allocation5 + $0x660] sm:$0xff]
    %v591 = vld [vmem:[#allocation5 + $0x668] sm:$0xff]
    %v592 = vld [vmem:[#allocation5 + $0x670] sm:$0xff]
    %v593 = vld [vmem:[#allocation5 + $0x678] sm:$0xff]
    %v594 = vld [vmem:[#allocation5 + $0x680] sm:$0xff]
    %v595 = vld [vmem:[#allocation5 + $0x688] sm:$0xff]
    %v596 = vld [vmem:[#allocation5 + $0x690] sm:$0xff]
    %v597 = vld [vmem:[#allocation5 + $0x698] sm:$0xff]
    %v598 = vld [vmem:[#allocation5 + $0x6a0] sm:$0xff]
    %v599 = vld [vmem:[#allocation5 + $0x6a8] sm:$0xff]
    %v600 = vld [vmem:[#allocation5 + $0x6b0] sm:$0xff]
    %v601 = vld [vmem:[#allocation5 + $0x6b8] sm:$0xff]
    %v602 = vld [vmem:[#allocation5 + $0x6c0] sm:$0xff]
    %v603 = vld [vmem:[#allocation5 + $0x6c8] sm:$0xff]
    %v604 = vld [vmem:[#allocation5 + $0x6d0] sm:$0xff]
    %v605 = vld [vmem:[#allocation5 + $0x6d8] sm:$0xff]
    %v606 = vld [vmem:[#allocation5 + $0x6e0] sm:$0xff]
    %v607 = vld [vmem:[#allocation5 + $0x6e8] sm:$0xff]
    %v608 = vld [vmem:[#allocation5 + $0x6f0] sm:$0xff]
    %v609 = vld [vmem:[#allocation5 + $0x6f8] sm:$0xff]
    %v610 = vld [vmem:[#allocation5 + $0x700] sm:$0xff]
    %v611 = vld [vmem:[#allocation5 + $0x708] sm:$0xff]
    %v612 = vld [vmem:[#allocation5 + $0x710] sm:$0xff]
    %v613 = vld [vmem:[#allocation5 + $0x718] sm:$0xff]
    %v614 = vld [vmem:[#allocation5 + $0x720] sm:$0xff]
    %v615 = vld [vmem:[#allocation5 + $0x728] sm:$0xff]
    %v616 = vld [vmem:[#allocation5 + $0x730] sm:$0xff]
    %v617 = vld [vmem:[#allocation5 + $0x738] sm:$0xff]
    %v618 = vld [vmem:[#allocation5 + $0x740] sm:$0xff]
    %v619 = vld [vmem:[#allocation5 + $0x748] sm:$0xff]
    %v620 = vld [vmem:[#allocation5 + $0x750] sm:$0xff]
    %v621 = vld [vmem:[#allocation5 + $0x758] sm:$0xff]
    %v622 = vld [vmem:[#allocation5 + $0x760] sm:$0xff]
    %v623 = vld [vmem:[#allocation5 + $0x768] sm:$0xff]
    %v624 = vld [vmem:[#allocation5 + $0x770] sm:$0xff]
    %v625 = vld [vmem:[#allocation5 + $0x778] sm:$0xff]
    %v626 = vld [vmem:[#allocation5 + $0x780] sm:$0xff]
    %v627 = vld [vmem:[#allocation5 + $0x788] sm:$0xff]
    %v628 = vld [vmem:[#allocation5 + $0x790] sm:$0xff]
    %v629 = vld [vmem:[#allocation5 + $0x798] sm:$0xff]
    %v630 = vld [vmem:[#allocation5 + $0x7a0] sm:$0xff]
    %v631 = vld [vmem:[#allocation5 + $0x7a8] sm:$0xff]
    %v632 = vld [vmem:[#allocation5 + $0x7b0] sm:$0xff]
    %v633 = vld [vmem:[#allocation5 + $0x7b8] sm:$0xff]
    %v634 = vld [vmem:[#allocation5 + $0x7c0] sm:$0xff]
    %v635 = vld [vmem:[#allocation5 + $0x7c8] sm:$0xff]
    %v636 = vld [vmem:[#allocation5 + $0x7d0] sm:$0xff]
    %v637 = vld [vmem:[#allocation5 + $0x7d8] sm:$0xff]
    %v638 = vld [vmem:[#allocation5 + $0x7e0] sm:$0xff]
    %v639 = vld [vmem:[#allocation5 + $0x7e8] sm:$0xff]
    %v640 = vld [vmem:[#allocation5 + $0x7f0] sm:$0xff]
    %v641 = vld [vmem:[#allocation5 + $0x7f8] sm:$0xff]
    %v642 = vld [vmem:[#allocation5 + $0x800] sm:$0xff]
    %v643 = vld [vmem:[#allocation5 + $0x808] sm:$0xff]
    %v644 = vld [vmem:[#allocation5 + $0x810] sm:$0xff]
    %v645 = vld [vmem:[#allocation5 + $0x818] sm:$0xff]
    %v646 = vld [vmem:[#allocation5 + $0x820] sm:$0xff]
    %v647 = vld [vmem:[#allocation5 + $0x828] sm:$0xff]
    %v648 = vld [vmem:[#allocation5 + $0x830] sm:$0xff]
    %v649 = vld [vmem:[#allocation5 + $0x838] sm:$0xff]
    %v650 = vld [vmem:[#allocation5 + $0x840] sm:$0xff]
    %v651 = vld [vmem:[#allocation5 + $0x848] sm:$0xff]
    %v652 = vld [vmem:[#allocation5 + $0x850] sm:$0xff]
    %v653 = vld [vmem:[#allocation5 + $0x858] sm:$0xff]
    %v654 = vld [vmem:[#allocation5 + $0x860] sm:$0xff]
    %v655 = vld [vmem:[#allocation5 + $0x868] sm:$0xff]
    %v656 = vld [vmem:[#allocation5 + $0x870] sm:$0xff]
    %v657 = vld [vmem:[#allocation5 + $0x878] sm:$0xff]
    %v658 = vld [vmem:[#allocation5 + $0x880] sm:$0xff]
    %v659 = vld [vmem:[#allocation5 + $0x888] sm:$0xff]
    %v660 = vld [vmem:[#allocation5 + $0x890] sm:$0xff]
    %v661 = vld [vmem:[#allocation5 + $0x898] sm:$0xff]
    %v662 = vld [vmem:[#allocation5 + $0x8a0] sm:$0xff]
    %v663 = vld [vmem:[#allocation5 + $0x8a8] sm:$0xff]
    %v664 = vld [vmem:[#allocation5 + $0x8b0] sm:$0xff]
    %v665 = vld [vmem:[#allocation5 + $0x8b8] sm:$0xff]
    %v666 = vld [vmem:[#allocation5 + $0x8c0] sm:$0xff]
    %v667 = vld [vmem:[#allocation5 + $0x8c8] sm:$0xff]
    %v668 = vld [vmem:[#allocation5 + $0x8d0] sm:$0xff]
    %v669 = vld [vmem:[#allocation5 + $0x8d8] sm:$0xff]
    %v670 = vld [vmem:[#allocation5 + $0x8e0] sm:$0xff]
    %v671 = vld [vmem:[#allocation5 + $0x8e8] sm:$0xff]
    %v672 = vld [vmem:[#allocation5 + $0x8f0] sm:$0xff]
    %v673 = vld [vmem:[#allocation5 + $0x8f8] sm:$0xff]
    %v674 = vld [vmem:[#allocation5 + $0x900] sm:$0xff]
    %v675 = vld [vmem:[#allocation5 + $0x908] sm:$0xff]
    %v676 = vld [vmem:[#allocation5 + $0x910] sm:$0xff]
    %v677 = vld [vmem:[#allocation5 + $0x918] sm:$0xff]
    %v678 = vld [vmem:[#allocation5 + $0x920] sm:$0xff]
    %v679 = vld [vmem:[#allocation5 + $0x928] sm:$0xff]
    %v680 = vld [vmem:[#allocation5 + $0x930] sm:$0xff]
    %v681 = vld [vmem:[#allocation5 + $0x938] sm:$0xff]
    %v682 = vld [vmem:[#allocation5 + $0x940] sm:$0xff]
    %v683 = vld [vmem:[#allocation5 + $0x948] sm:$0xff]
    %v684 = vld [vmem:[#allocation5 + $0x950] sm:$0xff]
    %v685 = vld [vmem:[#allocation5 + $0x958] sm:$0xff]
    %v686 = vld [vmem:[#allocation5 + $0x960] sm:$0xff]
    %v687 = vld [vmem:[#allocation5 + $0x968] sm:$0xff]
    %v688 = vld [vmem:[#allocation5 + $0x970] sm:$0xff]
    %v689 = vld [vmem:[#allocation5 + $0x978] sm:$0xff]
    %v690 = vld [vmem:[#allocation5 + $0x980] sm:$0xff]
    %v691 = vld [vmem:[#allocation5 + $0x988] sm:$0xff]
    %v692 = vld [vmem:[#allocation5 + $0x990] sm:$0xff]
    %v693 = vld [vmem:[#allocation5 + $0x998] sm:$0xff]
    %v694 = vld [vmem:[#allocation5 + $0x9a0] sm:$0xff]
    %v695 = vld [vmem:[#allocation5 + $0x9a8] sm:$0xff]
    %v696 = vld [vmem:[#allocation5 + $0x9b0] sm:$0xff]
    %v697 = vld [vmem:[#allocation5 + $0x9b8] sm:$0xff]
    %v698 = vld [vmem:[#allocation5 + $0x9c0] sm:$0xff]
    %v699 = vld [vmem:[#allocation5 + $0x9c8] sm:$0xff]
    %v700 = vld [vmem:[#allocation5 + $0x9d0] sm:$0xff]
    %v701 = vld [vmem:[#allocation5 + $0x9d8] sm:$0xff]
    %v702 = vld [vmem:[#allocation5 + $0x9e0] sm:$0xff]
    %v703 = vld [vmem:[#allocation5 + $0x9e8] sm:$0xff]
    %v704 = vld [vmem:[#allocation5 + $0x9f0] sm:$0xff]
    %v705 = vld [vmem:[#allocation5 + $0x9f8] sm:$0xff]
    %v706 = vld [vmem:[#allocation5 + $0xa00] sm:$0xff]
    %v707 = vld [vmem:[#allocation5 + $0xa08] sm:$0xff]
    %v708 = vld [vmem:[#allocation5 + $0xa10] sm:$0xff]
    %v709 = vld [vmem:[#allocation5 + $0xa18] sm:$0xff]
    %v710 = vld [vmem:[#allocation5 + $0xa20] sm:$0xff]
    %v711 = vld [vmem:[#allocation5 + $0xa28] sm:$0xff]
    %v712 = vld [vmem:[#allocation5 + $0xa30] sm:$0xff]
    %v713 = vld [vmem:[#allocation5 + $0xa38] sm:$0xff]
    %v714 = vld [vmem:[#allocation5 + $0xa40] sm:$0xff]
    %v715 = vld [vmem:[#allocation5 + $0xa48] sm:$0xff]
    %v716 = vld [vmem:[#allocation5 + $0xa50] sm:$0xff]
    %v717 = vld [vmem:[#allocation5 + $0xa58] sm:$0xff]
    %v718 = vld [vmem:[#allocation5 + $0xa60] sm:$0xff]
    %v719 = vld [vmem:[#allocation5 + $0xa68] sm:$0xff]
    %v720 = vld [vmem:[#allocation5 + $0xa70] sm:$0xff]
    %v721 = vld [vmem:[#allocation5 + $0xa78] sm:$0xff]
    %v722 = vld [vmem:[#allocation5 + $0xa80] sm:$0xff]
    %v723 = vld [vmem:[#allocation5 + $0xa88] sm:$0xff]
    %v724 = vld [vmem:[#allocation5 + $0xa90] sm:$0xff]
    %v725 = vld [vmem:[#allocation5 + $0xa98] sm:$0xff]
    %v726 = vld [vmem:[#allocation5 + $0xaa0] sm:$0xff]
    %v727 = vld [vmem:[#allocation5 + $0xaa8] sm:$0xff]
    %v728 = vld [vmem:[#allocation5 + $0xab0] sm:$0xff]
    %v729 = vld [vmem:[#allocation5 + $0xab8] sm:$0xff]
    %v730 = vld [vmem:[#allocation5 + $0xac0] sm:$0xff]
    %v731 = vld [vmem:[#allocation5 + $0xac8] sm:$0xff]
    %v732 = vld [vmem:[#allocation5 + $0xad0] sm:$0xff]
    %v733 = vld [vmem:[#allocation5 + $0xad8] sm:$0xff]
    %v734 = vld [vmem:[#allocation5 + $0xae0] sm:$0xff]
    %v735 = vld [vmem:[#allocation5 + $0xae8] sm:$0xff]
    %v736 = vld [vmem:[#allocation5 + $0xaf0] sm:$0xff]
    %v737 = vld [vmem:[#allocation5 + $0xaf8] sm:$0xff]
    %v738 = vld [vmem:[#allocation5 + $0xb00] sm:$0xff]
    %v739 = vld [vmem:[#allocation5 + $0xb08] sm:$0xff]
    %v740 = vld [vmem:[#allocation5 + $0xb10] sm:$0xff]
    %v741 = vld [vmem:[#allocation5 + $0xb18] sm:$0xff]
    %v742 = vld [vmem:[#allocation5 + $0xb20] sm:$0xff]
    %v743 = vld [vmem:[#allocation5 + $0xb28] sm:$0xff]
    %v744 = vld [vmem:[#allocation5 + $0xb30] sm:$0xff]
    %v745 = vld [vmem:[#allocation5 + $0xb38] sm:$0xff]
    %v746 = vld [vmem:[#allocation5 + $0xb40] sm:$0xff]
    %v747 = vld [vmem:[#allocation5 + $0xb48] sm:$0xff]
    %v748 = vld [vmem:[#allocation5 + $0xb50] sm:$0xff]
    %v749 = vld [vmem:[#allocation5 + $0xb58] sm:$0xff]
    %v750 = vld [vmem:[#allocation5 + $0xb60] sm:$0xff]
    %v751 = vld [vmem:[#allocation5 + $0xb68] sm:$0xff]
    %v752 = vld [vmem:[#allocation5 + $0xb70] sm:$0xff]
    %v753 = vld [vmem:[#allocation5 + $0xb78] sm:$0xff]
    %v754 = vld [vmem:[#allocation5 + $0xb80] sm:$0xff]
    %v755 = vld [vmem:[#allocation5 + $0xb88] sm:$0xff]
    %v756 = vld [vmem:[#allocation5 + $0xb90] sm:$0xff]
    %v757 = vld [vmem:[#allocation5 + $0xb98] sm:$0xff]
    %v758 = vld [vmem:[#allocation5 + $0xba0] sm:$0xff]
    %v759 = vld [vmem:[#allocation5 + $0xba8] sm:$0xff]
    %v760 = vld [vmem:[#allocation5 + $0xbb0] sm:$0xff]
    %v761 = vld [vmem:[#allocation5 + $0xbb8] sm:$0xff]
    %v762 = vld [vmem:[#allocation5 + $0xbc0] sm:$0xff]
    %v763 = vld [vmem:[#allocation5 + $0xbc8] sm:$0xff]
    %v764 = vld [vmem:[#allocation5 + $0xbd0] sm:$0xff]
    %v765 = vld [vmem:[#allocation5 + $0xbd8] sm:$0xff]
    %v766 = vld [vmem:[#allocation5 + $0xbe0] sm:$0xff]
    %v767 = vld [vmem:[#allocation5 + $0xbe8] sm:$0xff]
    %v768 = vld [vmem:[#allocation5 + $0xbf0] sm:$0xff]
    %v769 = vld [vmem:[#allocation5 + $0xbf8] sm:$0xff]
    %v770 = vld [vmem:[#allocation5 + $0xc00] sm:$0xff]
    %v771 = vld [vmem:[#allocation5 + $0xc08] sm:$0xff]
    %v772 = vld [vmem:[#allocation5 + $0xc10] sm:$0xff]
    %v773 = vld [vmem:[#allocation5 + $0xc18] sm:$0xff]
    %v774 = vld [vmem:[#allocation5 + $0xc20] sm:$0xff]
    %v775 = vld [vmem:[#allocation5 + $0xc28] sm:$0xff]
    %v776 = vld [vmem:[#allocation5 + $0xc30] sm:$0xff]
    %v777 = vld [vmem:[#allocation5 + $0xc38] sm:$0xff]
    %v778 = vld [vmem:[#allocation5 + $0xc40] sm:$0xff]
    %v779 = vld [vmem:[#allocation5 + $0xc48] sm:$0xff]
    %v780 = vld [vmem:[#allocation5 + $0xc50] sm:$0xff]
    %v781 = vld [vmem:[#allocation5 + $0xc58] sm:$0xff]
    %v782 = vld [vmem:[#allocation5 + $0xc60] sm:$0xff]
    %v783 = vld [vmem:[#allocation5 + $0xc68] sm:$0xff]
    %v784 = vld [vmem:[#allocation5 + $0xc70] sm:$0xff]
    %v785 = vld [vmem:[#allocation5 + $0xc78] sm:$0xff]
    %v786 = vld [vmem:[#allocation5 + $0xc80] sm:$0xff]
    %v787 = vld [vmem:[#allocation5 + $0xc88] sm:$0xff]
    %v788 = vld [vmem:[#allocation5 + $0xc90] sm:$0xff]
    %v789 = vld [vmem:[#allocation5 + $0xc98] sm:$0xff]
    %v790 = vld [vmem:[#allocation5 + $0xca0] sm:$0xff]
    %v791 = vld [vmem:[#allocation5 + $0xca8] sm:$0xff]
    %v792 = vld [vmem:[#allocation5 + $0xcb0] sm:$0xff]
    %v793 = vld [vmem:[#allocation5 + $0xcb8] sm:$0xff]
    %v794 = vld [vmem:[#allocation5 + $0xcc0] sm:$0xff]
    %v795 = vld [vmem:[#allocation5 + $0xcc8] sm:$0xff]
    %v796 = vld [vmem:[#allocation5 + $0xcd0] sm:$0xff]
    %v797 = vld [vmem:[#allocation5 + $0xcd8] sm:$0xff]
    %v798 = vld [vmem:[#allocation5 + $0xce0] sm:$0xff]
    %v799 = vld [vmem:[#allocation5 + $0xce8] sm:$0xff]
    %v800 = vld [vmem:[#allocation5 + $0xcf0] sm:$0xff]
    %v801 = vld [vmem:[#allocation5 + $0xcf8] sm:$0xff]
    %v802 = vld [vmem:[#allocation5 + $0xd00] sm:$0xff]
    %v803 = vld [vmem:[#allocation5 + $0xd08] sm:$0xff]
    %v804 = vld [vmem:[#allocation5 + $0xd10] sm:$0xff]
    %v805 = vld [vmem:[#allocation5 + $0xd18] sm:$0xff]
    %v806 = vld [vmem:[#allocation5 + $0xd20] sm:$0xff]
    %v807 = vld [vmem:[#allocation5 + $0xd28] sm:$0xff]
    %v808 = vld [vmem:[#allocation5 + $0xd30] sm:$0xff]
    %v809 = vld [vmem:[#allocation5 + $0xd38] sm:$0xff]
    %v810 = vld [vmem:[#allocation5 + $0xd40] sm:$0xff]
    %v811 = vld [vmem:[#allocation5 + $0xd48] sm:$0xff]
    %v812 = vld [vmem:[#allocation5 + $0xd50] sm:$0xff]
    %v813 = vld [vmem:[#allocation5 + $0xd58] sm:$0xff]
    %v814 = vld [vmem:[#allocation5 + $0xd60] sm:$0xff]
    %v815 = vld [vmem:[#allocation5 + $0xd68] sm:$0xff]
    %v816 = vld [vmem:[#allocation5 + $0xd70] sm:$0xff]
    %v817 = vld [vmem:[#allocation5 + $0xd78] sm:$0xff]
    %v818 = vld [vmem:[#allocation5 + $0xd80] sm:$0xff]
    %v819 = vld [vmem:[#allocation5 + $0xd88] sm:$0xff]
    %v820 = vld [vmem:[#allocation5 + $0xd90] sm:$0xff]
    %v821 = vld [vmem:[#allocation5 + $0xd98] sm:$0xff]
    %v822 = vld [vmem:[#allocation5 + $0xda0] sm:$0xff]
    %v823 = vld [vmem:[#allocation5 + $0xda8] sm:$0xff]
    %v824 = vld [vmem:[#allocation5 + $0xdb0] sm:$0xff]
    %v825 = vld [vmem:[#allocation5 + $0xdb8] sm:$0xff]
    %v826 = vld [vmem:[#allocation5 + $0xdc0] sm:$0xff]
    %v827 = vld [vmem:[#allocation5 + $0xdc8] sm:$0xff]
    %v828 = vld [vmem:[#allocation5 + $0xdd0] sm:$0xff]
    %v829 = vld [vmem:[#allocation5 + $0xdd8] sm:$0xff]
    %v830 = vld [vmem:[#allocation5 + $0xde0] sm:$0xff]
    %v831 = vld [vmem:[#allocation5 + $0xde8] sm:$0xff]
    %v832 = vld [vmem:[#allocation5 + $0xdf0] sm:$0xff]
    %v833 = vld [vmem:[#allocation5 + $0xdf8] sm:$0xff]
    %v834 = vld [vmem:[#allocation5 + $0xe00] sm:$0xff]
    %v835 = vld [vmem:[#allocation5 + $0xe08] sm:$0xff]
    %v836 = vld [vmem:[#allocation5 + $0xe10] sm:$0xff]
    %v837 = vld [vmem:[#allocation5 + $0xe18] sm:$0xff]
    %v838 = vld [vmem:[#allocation5 + $0xe20] sm:$0xff]
    %v839 = vld [vmem:[#allocation5 + $0xe28] sm:$0xff]
    %v840 = vld [vmem:[#allocation5 + $0xe30] sm:$0xff]
    %v841 = vld [vmem:[#allocation5 + $0xe38] sm:$0xff]
    %v842 = vld [vmem:[#allocation5 + $0xe40] sm:$0xff]
    %v843 = vld [vmem:[#allocation5 + $0xe48] sm:$0xff]
    %v844 = vld [vmem:[#allocation5 + $0xe50] sm:$0xff]
    %v845 = vld [vmem:[#allocation5 + $0xe58] sm:$0xff]
    %v846 = vld [vmem:[#allocation5 + $0xe60] sm:$0xff]
    %v847 = vld [vmem:[#allocation5 + $0xe68] sm:$0xff]
    %v848 = vld [vmem:[#allocation5 + $0xe70] sm:$0xff]
    %v849 = vld [vmem:[#allocation5 + $0xe78] sm:$0xff]
    %v850 = vld [vmem:[#allocation5 + $0xe80] sm:$0xff]
    %v851 = vld [vmem:[#allocation5 + $0xe88] sm:$0xff]
    %v852 = vld [vmem:[#allocation5 + $0xe90] sm:$0xff]
    %v853 = vld [vmem:[#allocation5 + $0xe98] sm:$0xff]
    %v854 = vld [vmem:[#allocation5 + $0xea0] sm:$0xff]
    %v855 = vld [vmem:[#allocation5 + $0xea8] sm:$0xff]
    %v856 = vld [vmem:[#allocation5 + $0xeb0] sm:$0xff]
    %v857 = vld [vmem:[#allocation5 + $0xeb8] sm:$0xff]
    %v858 = vld [vmem:[#allocation5 + $0xec0] sm:$0xff]
    %v859 = vld [vmem:[#allocation5 + $0xec8] sm:$0xff]
    %v860 = vld [vmem:[#allocation5 + $0xed0] sm:$0xff]
    %v861 = vld [vmem:[#allocation5 + $0xed8] sm:$0xff]
    %v862 = vld [vmem:[#allocation5 + $0xee0] sm:$0xff]
    %v863 = vld [vmem:[#allocation5 + $0xee8] sm:$0xff]
    %v864 = vld [vmem:[#allocation5 + $0xef0] sm:$0xff]
    %v865 = vld [vmem:[#allocation5 + $0xef8] sm:$0xff]
    %v866 = vld [vmem:[#allocation5 + $0xf00] sm:$0xff]
    %v867 = vld [vmem:[#allocation5 + $0xf08] sm:$0xff]
    %v868 = vld [vmem:[#allocation5 + $0xf10] sm:$0xff]
    %v869 = vld [vmem:[#allocation5 + $0xf18] sm:$0xff]
    %v870 = vld [vmem:[#allocation5 + $0xf20] sm:$0xff]
    %v871 = vld [vmem:[#allocation5 + $0xf28] sm:$0xff]
    %v872 = vld [vmem:[#allocation5 + $0xf30] sm:$0xff]
    %v873 = vld [vmem:[#allocation5 + $0xf38] sm:$0xff]
    %v874 = vld [vmem:[#allocation5 + $0xf40] sm:$0xff]
    %v875 = vld [vmem:[#allocation5 + $0xf48] sm:$0xff]
    %v876 = vld [vmem:[#allocation5 + $0xf50] sm:$0xff]
    %v877 = vld [vmem:[#allocation5 + $0xf58] sm:$0xff]
    %v878 = vld [vmem:[#allocation5 + $0xf60] sm:$0xff]
    %v879 = vld [vmem:[#allocation5 + $0xf68] sm:$0xff]
    %v880 = vld [vmem:[#allocation5 + $0xf70] sm:$0xff]
    %v881 = vld [vmem:[#allocation5 + $0xf78] sm:$0xff]
    %v882 = vld [vmem:[#allocation5 + $0xf80] sm:$0xff]
    %v883 = vld [vmem:[#allocation5 + $0xf88] sm:$0xff]
    %v884 = vld [vmem:[#allocation5 + $0xf90] sm:$0xff]
    %v885 = vld [vmem:[#allocation5 + $0xf98] sm:$0xff]
    %v886 = vld [vmem:[#allocation5 + $0xfa0] sm:$0xff]
    %v887 = vld [vmem:[#allocation5 + $0xfa8] sm:$0xff]
    %v888 = vld [vmem:[#allocation5 + $0xfb0] sm:$0xff]
    %v889 = vld [vmem:[#allocation5 + $0xfb8] sm:$0xff]
    %v890 = vld [vmem:[#allocation5 + $0xfc0] sm:$0xff]
    %v891 = vld [vmem:[#allocation5 + $0xfc8] sm:$0xff]
    %v892 = vld [vmem:[#allocation5 + $0xfd0] sm:$0xff]
    %v893 = vld [vmem:[#allocation5 + $0xfd8] sm:$0xff]
    %v894 = vld [vmem:[#allocation5 + $0xfe0] sm:$0xff]
    %v895 = vld [vmem:[#allocation5 + $0xfe8] sm:$0xff]
    %v896 = vld [vmem:[#allocation5 + $0xff0] sm:$0xff]
    %v897 = vld [vmem:[#allocation5 + $0xff8] sm:$0xff]
    %v898 = vld [vmem:[#allocation5 + $0x1000] sm:$0xff]
    %v899 = vld [vmem:[#allocation5 + $0x1008] sm:$0xff]
    %v900 = vld [vmem:[#allocation5 + $0x1010] sm:$0xff]
    %v901 = vld [vmem:[#allocation5 + $0x1018] sm:$0xff]
    %v902 = vld [vmem:[#allocation5 + $0x1020] sm:$0xff]
    %v903 = vld [vmem:[#allocation5 + $0x1028] sm:$0xff]
    %v904 = vld [vmem:[#allocation5 + $0x1030] sm:$0xff]
    %v905 = vld [vmem:[#allocation5 + $0x1038] sm:$0xff]
    %v906 = vld [vmem:[#allocation5 + $0x1040] sm:$0xff]
    %v907 = vld [vmem:[#allocation5 + $0x1048] sm:$0xff]
    %v908 = vld [vmem:[#allocation5 + $0x1050] sm:$0xff]
    %v909 = vld [vmem:[#allocation5 + $0x1058] sm:$0xff]
    %v910 = vld [vmem:[#allocation5 + $0x1060] sm:$0xff]
    %v911 = vld [vmem:[#allocation5 + $0x1068] sm:$0xff]
    %v912 = vld [vmem:[#allocation5 + $0x1070] sm:$0xff]
    %v913 = vld [vmem:[#allocation5 + $0x1078] sm:$0xff]
    %v914 = vld [vmem:[#allocation5 + $0x1080] sm:$0xff]
    %v915 = vld [vmem:[#allocation5 + $0x1088] sm:$0xff]
    %v916 = vld [vmem:[#allocation5 + $0x1090] sm:$0xff]
    %v917 = vld [vmem:[#allocation5 + $0x1098] sm:$0xff]
    %v918 = vld [vmem:[#allocation5 + $0x10a0] sm:$0xff]
    %v919 = vld [vmem:[#allocation5 + $0x10a8] sm:$0xff]
    %v920 = vld [vmem:[#allocation5 + $0x10b0] sm:$0xff]
    %v921 = vld [vmem:[#allocation5 + $0x10b8] sm:$0xff]
    %v922 = vld [vmem:[#allocation5 + $0x10c0] sm:$0xff]
    %v923 = vld [vmem:[#allocation5 + $0x10c8] sm:$0xff]
    %v924 = vld [vmem:[#allocation5 + $0x10d0] sm:$0xff]
    %v925 = vld [vmem:[#allocation5 + $0x10d8] sm:$0xff]
    %v926 = vld [vmem:[#allocation5 + $0x10e0] sm:$0xff]
    %v927 = vld [vmem:[#allocation5 + $0x10e8] sm:$0xff]
    %v928 = vld [vmem:[#allocation5 + $0x10f0] sm:$0xff]
    %v929 = vld [vmem:[#allocation5 + $0x10f8] sm:$0xff]
    %v930 = vld [vmem:[#allocation5 + $0x1100] sm:$0xff]
    %v931 = vld [vmem:[#allocation5 + $0x1108] sm:$0xff]
    %v932 = vld [vmem:[#allocation5 + $0x1110] sm:$0xff]
    %v933 = vld [vmem:[#allocation5 + $0x1118] sm:$0xff]
    %v934 = vld [vmem:[#allocation5 + $0x1120] sm:$0xff]
    %v935 = vld [vmem:[#allocation5 + $0x1128] sm:$0xff]
    %v936 = vld [vmem:[#allocation5 + $0x1130] sm:$0xff]
    %v937 = vld [vmem:[#allocation5 + $0x1138] sm:$0xff]
    %v938 = vld [vmem:[#allocation5 + $0x1140] sm:$0xff]
    %v939 = vld [vmem:[#allocation5 + $0x1148] sm:$0xff]
    %v940 = vld [vmem:[#allocation5 + $0x1150] sm:$0xff]
    %v941 = vld [vmem:[#allocation5 + $0x1158] sm:$0xff]
    %v942 = vld [vmem:[#allocation5 + $0x1160] sm:$0xff]
    %v943 = vld [vmem:[#allocation5 + $0x1168] sm:$0xff]
    %v944 = vld [vmem:[#allocation5 + $0x1170] sm:$0xff]
    %v945 = vld [vmem:[#allocation5 + $0x1178] sm:$0xff]
    %v946 = vld [vmem:[#allocation5 + $0x1180] sm:$0xff]
    %v947 = vld [vmem:[#allocation5 + $0x1188] sm:$0xff]
    %v948 = vld [vmem:[#allocation5 + $0x1190] sm:$0xff]
    %v949 = vld [vmem:[#allocation5 + $0x1198] sm:$0xff]
    %v950 = vld [vmem:[#allocation5 + $0x11a0] sm:$0xff]
    %v951 = vld [vmem:[#allocation5 + $0x11a8] sm:$0xff]
    %v952 = vld [vmem:[#allocation5 + $0x11b0] sm:$0xff]
    %v953 = vld [vmem:[#allocation5 + $0x11b8] sm:$0xff]
    %v954 = vld [vmem:[#allocation5 + $0x11c0] sm:$0xff]
    %v955 = vld [vmem:[#allocation5 + $0x11c8] sm:$0xff]
    %v956 = vld [vmem:[#allocation5 + $0x11d0] sm:$0xff]
    %v957 = vld [vmem:[#allocation5 + $0x11d8] sm:$0xff]
    %v958 = vld [vmem:[#allocation5 + $0x11e0] sm:$0xff]
    %v959 = vld [vmem:[#allocation5 + $0x11e8] sm:$0xff]
    %v960 = vld [vmem:[#allocation5 + $0x11f0] sm:$0xff]
    %v961 = vld [vmem:[#allocation5 + $0x11f8] sm:$0xff]
    %v962 = vld [vmem:[#allocation7] sm:$0x3f]
    %v964 = vlaneseq
    %v965 = vshrl.u32 %v964, 7
    %v966 = vsub.s32 0, %v965
    %v967 = vrot.slane %v962, %v966
    %v968 = vlaneseq
    %v969 = vshrl.u32 %v968, 7
    %v970 = vsub.s32 1, %v969
    %v971 = vrot.slane %v962, %v970
    %v972 = vlaneseq
    %v973 = vshrl.u32 %v972, 7
    %v974 = vsub.s32 2, %v973
    %v975 = vrot.slane %v962, %v974
    %v976 = vlaneseq
    %v977 = vshrl.u32 %v976, 7
    %v978 = vsub.s32 3, %v977
    %v979 = vrot.slane %v962, %v978
    %v980 = vlaneseq
    %v981 = vshrl.u32 %v980, 7
    %v982 = vsub.s32 4, %v981
    %v983 = vrot.slane %v962, %v982
    %v984 = vlaneseq
    %v985 = vshrl.u32 %v984, 7
    %v986 = vsub.s32 5, %v985
    %v987 = vrot.slane %v962, %v986
    %v1570 = vunpack.c.l.b16 %v386
    %v1571 = vunpack.c.h.b16 %v386
    %v1572 = vunpack.c.l.b16 %v387
    %v1573 = vunpack.c.h.b16 %v387
    %v1574 = vunpack.c.l.b16 %v388
    %v1575 = vunpack.c.h.b16 %v388
    %v1576 = vunpack.c.l.b16 %v389
    %v1577 = vunpack.c.h.b16 %v389
    %v1578 = vunpack.c.l.b16 %v390
    %v1579 = vunpack.c.h.b16 %v390
    %v1580 = vunpack.c.l.b16 %v391
    %v1581 = vunpack.c.h.b16 %v391
    %v1582 = vunpack.c.l.b16 %v392
    %v1583 = vunpack.c.h.b16 %v392
    %v1584 = vunpack.c.l.b16 %v393
    %v1585 = vunpack.c.h.b16 %v393
    %v1586 = vunpack.c.l.b16 %v394
    %v1587 = vunpack.c.h.b16 %v394
    %v1588 = vunpack.c.l.b16 %v395
    %v1589 = vunpack.c.h.b16 %v395
    %v1590 = vunpack.c.l.b16 %v396
    %v1591 = vunpack.c.h.b16 %v396
    %v1592 = vunpack.c.l.b16 %v397
    %v1593 = vunpack.c.h.b16 %v397
    %v1594 = vunpack.c.l.b16 %v398
    %v1595 = vunpack.c.h.b16 %v398
    %v1596 = vunpack.c.l.b16 %v399
    %v1597 = vunpack.c.h.b16 %v399
    %v1598 = vunpack.c.l.b16 %v400
    %v1599 = vunpack.c.h.b16 %v400
    %v1600 = vunpack.c.l.b16 %v401
    %v1601 = vunpack.c.h.b16 %v401
    %v1602 = vunpack.c.l.b16 %v402
    %v1603 = vunpack.c.h.b16 %v402
    %v1604 = vunpack.c.l.b16 %v403
    %v1605 = vunpack.c.h.b16 %v403
    %v1606 = vunpack.c.l.b16 %v404
    %v1607 = vunpack.c.h.b16 %v404
    %v1608 = vunpack.c.l.b16 %v405
    %v1609 = vunpack.c.h.b16 %v405
    %v1610 = vunpack.c.l.b16 %v406
    %v1611 = vunpack.c.h.b16 %v406
    %v1612 = vunpack.c.l.b16 %v407
    %v1613 = vunpack.c.h.b16 %v407
    %v1614 = vunpack.c.l.b16 %v408
    %v1615 = vunpack.c.h.b16 %v408
    %v1616 = vunpack.c.l.b16 %v409
    %v1617 = vunpack.c.h.b16 %v409
    %v1618 = vunpack.c.l.b16 %v410
    %v1619 = vunpack.c.h.b16 %v410
    %v1620 = vunpack.c.l.b16 %v411
    %v1621 = vunpack.c.h.b16 %v411
    %v1622 = vunpack.c.l.b16 %v412
    %v1623 = vunpack.c.h.b16 %v412
    %v1624 = vunpack.c.l.b16 %v413
    %v1625 = vunpack.c.h.b16 %v413
    %v1626 = vunpack.c.l.b16 %v414
    %v1627 = vunpack.c.h.b16 %v414
    %v1628 = vunpack.c.l.b16 %v415
    %v1629 = vunpack.c.h.b16 %v415
    %v1630 = vunpack.c.l.b16 %v416
    %v1631 = vunpack.c.h.b16 %v416
    %v1632 = vunpack.c.l.b16 %v417
    %v1633 = vunpack.c.h.b16 %v417
    %v1634 = vunpack.c.l.b16 %v418
    %v1635 = vunpack.c.h.b16 %v418
    %v1636 = vunpack.c.l.b16 %v419
    %v1637 = vunpack.c.h.b16 %v419
    %v1638 = vunpack.c.l.b16 %v420
    %v1639 = vunpack.c.h.b16 %v420
    %v1640 = vunpack.c.l.b16 %v421
    %v1641 = vunpack.c.h.b16 %v421
    %v1642 = vunpack.c.l.b16 %v422
    %v1643 = vunpack.c.h.b16 %v422
    %v1644 = vunpack.c.l.b16 %v423
    %v1645 = vunpack.c.h.b16 %v423
    %v1646 = vunpack.c.l.b16 %v424
    %v1647 = vunpack.c.h.b16 %v424
    %v1648 = vunpack.c.l.b16 %v425
    %v1649 = vunpack.c.h.b16 %v425
    %v1650 = vunpack.c.l.b16 %v426
    %v1651 = vunpack.c.h.b16 %v426
    %v1652 = vunpack.c.l.b16 %v427
    %v1653 = vunpack.c.h.b16 %v427
    %v1654 = vunpack.c.l.b16 %v428
    %v1655 = vunpack.c.h.b16 %v428
    %v1656 = vunpack.c.l.b16 %v429
    %v1657 = vunpack.c.h.b16 %v429
    %v1658 = vunpack.c.l.b16 %v430
    %v1659 = vunpack.c.h.b16 %v430
    %v1660 = vunpack.c.l.b16 %v431
    %v1661 = vunpack.c.h.b16 %v431
    %v1662 = vunpack.c.l.b16 %v432
    %v1663 = vunpack.c.h.b16 %v432
    %v1664 = vunpack.c.l.b16 %v433
    %v1665 = vunpack.c.h.b16 %v433
    %v1666 = vunpack.c.l.b16 %v434
    %v1667 = vunpack.c.h.b16 %v434
    %v1668 = vunpack.c.l.b16 %v435
    %v1669 = vunpack.c.h.b16 %v435
    %v1670 = vunpack.c.l.b16 %v436
    %v1671 = vunpack.c.h.b16 %v436
    %v1672 = vunpack.c.l.b16 %v437
    %v1673 = vunpack.c.h.b16 %v437
    %v1674 = vunpack.c.l.b16 %v438
    %v1675 = vunpack.c.h.b16 %v438
    %v1676 = vunpack.c.l.b16 %v439
    %v1677 = vunpack.c.h.b16 %v439
    %v1678 = vunpack.c.l.b16 %v440
    %v1679 = vunpack.c.h.b16 %v440
    %v1680 = vunpack.c.l.b16 %v441
    %v1681 = vunpack.c.h.b16 %v441
    %v1682 = vunpack.c.l.b16 %v442
    %v1683 = vunpack.c.h.b16 %v442
    %v1684 = vunpack.c.l.b16 %v443
    %v1685 = vunpack.c.h.b16 %v443
    %v1686 = vunpack.c.l.b16 %v444
    %v1687 = vunpack.c.h.b16 %v444
    %v1688 = vunpack.c.l.b16 %v445
    %v1689 = vunpack.c.h.b16 %v445
    %v1690 = vunpack.c.l.b16 %v446
    %v1691 = vunpack.c.h.b16 %v446
    %v1692 = vunpack.c.l.b16 %v447
    %v1693 = vunpack.c.h.b16 %v447
    %v1694 = vunpack.c.l.b16 %v448
    %v1695 = vunpack.c.h.b16 %v448
    %v1696 = vunpack.c.l.b16 %v449
    %v1697 = vunpack.c.h.b16 %v449
    %v1698 = vunpack.c.l.b16 %v450
    %v1699 = vunpack.c.h.b16 %v450
    %v1700 = vunpack.c.l.b16 %v451
    %v1701 = vunpack.c.h.b16 %v451
    %v1702 = vunpack.c.l.b16 %v452
    %v1703 = vunpack.c.h.b16 %v452
    %v1704 = vunpack.c.l.b16 %v453
    %v1705 = vunpack.c.h.b16 %v453
    %v1706 = vunpack.c.l.b16 %v454
    %v1707 = vunpack.c.h.b16 %v454
    %v1708 = vunpack.c.l.b16 %v455
    %v1709 = vunpack.c.h.b16 %v455
    %v1710 = vunpack.c.l.b16 %v456
    %v1711 = vunpack.c.h.b16 %v456
    %v1712 = vunpack.c.l.b16 %v457
    %v1713 = vunpack.c.h.b16 %v457
    %v1714 = vunpack.c.l.b16 %v458
    %v1715 = vunpack.c.h.b16 %v458
    %v1716 = vunpack.c.l.b16 %v459
    %v1717 = vunpack.c.h.b16 %v459
    %v1718 = vunpack.c.l.b16 %v460
    %v1719 = vunpack.c.h.b16 %v460
    %v1720 = vunpack.c.l.b16 %v461
    %v1721 = vunpack.c.h.b16 %v461
    %v1722 = vunpack.c.l.b16 %v462
    %v1723 = vunpack.c.h.b16 %v462
    %v1724 = vunpack.c.l.b16 %v463
    %v1725 = vunpack.c.h.b16 %v463
    %v1726 = vunpack.c.l.b16 %v464
    %v1727 = vunpack.c.h.b16 %v464
    %v1728 = vunpack.c.l.b16 %v465
    %v1729 = vunpack.c.h.b16 %v465
    %v1730 = vunpack.c.l.b16 %v466
    %v1731 = vunpack.c.h.b16 %v466
    %v1732 = vunpack.c.l.b16 %v467
    %v1733 = vunpack.c.h.b16 %v467
    %v1734 = vunpack.c.l.b16 %v468
    %v1735 = vunpack.c.h.b16 %v468
    %v1736 = vunpack.c.l.b16 %v469
    %v1737 = vunpack.c.h.b16 %v469
    %v1738 = vunpack.c.l.b16 %v470
    %v1739 = vunpack.c.h.b16 %v470
    %v1740 = vunpack.c.l.b16 %v471
    %v1741 = vunpack.c.h.b16 %v471
    %v1742 = vunpack.c.l.b16 %v472
    %v1743 = vunpack.c.h.b16 %v472
    %v1744 = vunpack.c.l.b16 %v473
    %v1745 = vunpack.c.h.b16 %v473
    %v1746 = vunpack.c.l.b16 %v474
    %v1747 = vunpack.c.h.b16 %v474
    %v1748 = vunpack.c.l.b16 %v475
    %v1749 = vunpack.c.h.b16 %v475
    %v1750 = vunpack.c.l.b16 %v476
    %v1751 = vunpack.c.h.b16 %v476
    %v1752 = vunpack.c.l.b16 %v477
    %v1753 = vunpack.c.h.b16 %v477
    %v1754 = vunpack.c.l.b16 %v478
    %v1755 = vunpack.c.h.b16 %v478
    %v1756 = vunpack.c.l.b16 %v479
    %v1757 = vunpack.c.h.b16 %v479
    %v1758 = vunpack.c.l.b16 %v480
    %v1759 = vunpack.c.h.b16 %v480
    %v1760 = vunpack.c.l.b16 %v481
    %v1761 = vunpack.c.h.b16 %v481
    %v1762 = vunpack.c.l.b16 %v482
    %v1763 = vunpack.c.h.b16 %v482
    %v1764 = vunpack.c.l.b16 %v483
    %v1765 = vunpack.c.h.b16 %v483
    %v1766 = vunpack.c.l.b16 %v484
    %v1767 = vunpack.c.h.b16 %v484
    %v1768 = vunpack.c.l.b16 %v485
    %v1769 = vunpack.c.h.b16 %v485
    %v1770 = vunpack.c.l.b16 %v486
    %v1771 = vunpack.c.h.b16 %v486
    %v1772 = vunpack.c.l.b16 %v487
    %v1773 = vunpack.c.h.b16 %v487
    %v1774 = vunpack.c.l.b16 %v488
    %v1775 = vunpack.c.h.b16 %v488
    %v1776 = vunpack.c.l.b16 %v489
    %v1777 = vunpack.c.h.b16 %v489
    %v1778 = vunpack.c.l.b16 %v490
    %v1779 = vunpack.c.h.b16 %v490
    %v1780 = vunpack.c.l.b16 %v491
    %v1781 = vunpack.c.h.b16 %v491
    %v1782 = vunpack.c.l.b16 %v492
    %v1783 = vunpack.c.h.b16 %v492
    %v1784 = vunpack.c.l.b16 %v493
    %v1785 = vunpack.c.h.b16 %v493
    %v1786 = vunpack.c.l.b16 %v494
    %v1787 = vunpack.c.h.b16 %v494
    %v1788 = vunpack.c.l.b16 %v495
    %v1789 = vunpack.c.h.b16 %v495
    %v1790 = vunpack.c.l.b16 %v496
    %v1791 = vunpack.c.h.b16 %v496
    %v1792 = vunpack.c.l.b16 %v497
    %v1793 = vunpack.c.h.b16 %v497
    %v1794 = vunpack.c.l.b16 %v498
    %v1795 = vunpack.c.h.b16 %v498
    %v1796 = vunpack.c.l.b16 %v499
    %v1797 = vunpack.c.h.b16 %v499
    %v1798 = vunpack.c.l.b16 %v500
    %v1799 = vunpack.c.h.b16 %v500
    %v1800 = vunpack.c.l.b16 %v501
    %v1801 = vunpack.c.h.b16 %v501
    %v1802 = vunpack.c.l.b16 %v502
    %v1803 = vunpack.c.h.b16 %v502
    %v1804 = vunpack.c.l.b16 %v503
    %v1805 = vunpack.c.h.b16 %v503
    %v1806 = vunpack.c.l.b16 %v504
    %v1807 = vunpack.c.h.b16 %v504
    %v1808 = vunpack.c.l.b16 %v505
    %v1809 = vunpack.c.h.b16 %v505
    %v1810 = vunpack.c.l.b16 %v506
    %v1811 = vunpack.c.h.b16 %v506
    %v1812 = vunpack.c.l.b16 %v507
    %v1813 = vunpack.c.h.b16 %v507
    %v1814 = vunpack.c.l.b16 %v508
    %v1815 = vunpack.c.h.b16 %v508
    %v1816 = vunpack.c.l.b16 %v509
    %v1817 = vunpack.c.h.b16 %v509
    %v1818 = vunpack.c.l.b16 %v510
    %v1819 = vunpack.c.h.b16 %v510
    %v1820 = vunpack.c.l.b16 %v511
    %v1821 = vunpack.c.h.b16 %v511
    %v1822 = vunpack.c.l.b16 %v512
    %v1823 = vunpack.c.h.b16 %v512
    %v1824 = vunpack.c.l.b16 %v513
    %v1825 = vunpack.c.h.b16 %v513
    %v1826 = vunpack.c.l.b16 %v514
    %v1827 = vunpack.c.h.b16 %v514
    %v1828 = vunpack.c.l.b16 %v515
    %v1829 = vunpack.c.h.b16 %v515
    %v1830 = vunpack.c.l.b16 %v516
    %v1831 = vunpack.c.h.b16 %v516
    %v1832 = vunpack.c.l.b16 %v517
    %v1833 = vunpack.c.h.b16 %v517
    %v1834 = vunpack.c.l.b16 %v518
    %v1835 = vunpack.c.h.b16 %v518
    %v1836 = vunpack.c.l.b16 %v519
    %v1837 = vunpack.c.h.b16 %v519
    %v1838 = vunpack.c.l.b16 %v520
    %v1839 = vunpack.c.h.b16 %v520
    %v1840 = vunpack.c.l.b16 %v521
    %v1841 = vunpack.c.h.b16 %v521
    %v1842 = vunpack.c.l.b16 %v522
    %v1843 = vunpack.c.h.b16 %v522
    %v1844 = vunpack.c.l.b16 %v523
    %v1845 = vunpack.c.h.b16 %v523
    %v1846 = vunpack.c.l.b16 %v524
    %v1847 = vunpack.c.h.b16 %v524
    %v1848 = vunpack.c.l.b16 %v525
    %v1849 = vunpack.c.h.b16 %v525
    %v1850 = vunpack.c.l.b16 %v526
    %v1851 = vunpack.c.h.b16 %v526
    %v1852 = vunpack.c.l.b16 %v527
    %v1853 = vunpack.c.h.b16 %v527
    %v1854 = vunpack.c.l.b16 %v528
    %v1855 = vunpack.c.h.b16 %v528
    %v1856 = vunpack.c.l.b16 %v529
    %v1857 = vunpack.c.h.b16 %v529
    %v1858 = vunpack.c.l.b16 %v530
    %v1859 = vunpack.c.h.b16 %v530
    %v1860 = vunpack.c.l.b16 %v531
    %v1861 = vunpack.c.h.b16 %v531
    %v1862 = vunpack.c.l.b16 %v532
    %v1863 = vunpack.c.h.b16 %v532
    %v1864 = vunpack.c.l.b16 %v533
    %v1865 = vunpack.c.h.b16 %v533
    %v1866 = vunpack.c.l.b16 %v534
    %v1867 = vunpack.c.h.b16 %v534
    %v1868 = vunpack.c.l.b16 %v535
    %v1869 = vunpack.c.h.b16 %v535
    %v1870 = vunpack.c.l.b16 %v536
    %v1871 = vunpack.c.h.b16 %v536
    %v1872 = vunpack.c.l.b16 %v537
    %v1873 = vunpack.c.h.b16 %v537
    %v1874 = vunpack.c.l.b16 %v538
    %v1875 = vunpack.c.h.b16 %v538
    %v1876 = vunpack.c.l.b16 %v539
    %v1877 = vunpack.c.h.b16 %v539
    %v1878 = vunpack.c.l.b16 %v540
    %v1879 = vunpack.c.h.b16 %v540
    %v1880 = vunpack.c.l.b16 %v541
    %v1881 = vunpack.c.h.b16 %v541
    %v1882 = vunpack.c.l.b16 %v542
    %v1883 = vunpack.c.h.b16 %v542
    %v1884 = vunpack.c.l.b16 %v543
    %v1885 = vunpack.c.h.b16 %v543
    %v1886 = vunpack.c.l.b16 %v544
    %v1887 = vunpack.c.h.b16 %v544
    %v1888 = vunpack.c.l.b16 %v545
    %v1889 = vunpack.c.h.b16 %v545
    %v1890 = vunpack.c.l.b16 %v546
    %v1891 = vunpack.c.h.b16 %v546
    %v1892 = vunpack.c.l.b16 %v547
    %v1893 = vunpack.c.h.b16 %v547
    %v1894 = vunpack.c.l.b16 %v548
    %v1895 = vunpack.c.h.b16 %v548
    %v1896 = vunpack.c.l.b16 %v549
    %v1897 = vunpack.c.h.b16 %v549
    %v1898 = vunpack.c.l.b16 %v550
    %v1899 = vunpack.c.h.b16 %v550
    %v1900 = vunpack.c.l.b16 %v551
    %v1901 = vunpack.c.h.b16 %v551
    %v1902 = vunpack.c.l.b16 %v552
    %v1903 = vunpack.c.h.b16 %v552
    %v1904 = vunpack.c.l.b16 %v553
    %v1905 = vunpack.c.h.b16 %v553
    %v1906 = vunpack.c.l.b16 %v554
    %v1907 = vunpack.c.h.b16 %v554
    %v1908 = vunpack.c.l.b16 %v555
    %v1909 = vunpack.c.h.b16 %v555
    %v1910 = vunpack.c.l.b16 %v556
    %v1911 = vunpack.c.h.b16 %v556
    %v1912 = vunpack.c.l.b16 %v557
    %v1913 = vunpack.c.h.b16 %v557
    %v1914 = vunpack.c.l.b16 %v558
    %v1915 = vunpack.c.h.b16 %v558
    %v1916 = vunpack.c.l.b16 %v559
    %v1917 = vunpack.c.h.b16 %v559
    %v1918 = vunpack.c.l.b16 %v560
    %v1919 = vunpack.c.h.b16 %v560
    %v1920 = vunpack.c.l.b16 %v561
    %v1921 = vunpack.c.h.b16 %v561
    %v1922 = vunpack.c.l.b16 %v562
    %v1923 = vunpack.c.h.b16 %v562
    %v1924 = vunpack.c.l.b16 %v563
    %v1925 = vunpack.c.h.b16 %v563
    %v1926 = vunpack.c.l.b16 %v564
    %v1927 = vunpack.c.h.b16 %v564
    %v1928 = vunpack.c.l.b16 %v565
    %v1929 = vunpack.c.h.b16 %v565
    %v1930 = vunpack.c.l.b16 %v566
    %v1931 = vunpack.c.h.b16 %v566
    %v1932 = vunpack.c.l.b16 %v567
    %v1933 = vunpack.c.h.b16 %v567
    %v1934 = vunpack.c.l.b16 %v568
    %v1935 = vunpack.c.h.b16 %v568
    %v1936 = vunpack.c.l.b16 %v569
    %v1937 = vunpack.c.h.b16 %v569
    %v1938 = vunpack.c.l.b16 %v570
    %v1939 = vunpack.c.h.b16 %v570
    %v1940 = vunpack.c.l.b16 %v571
    %v1941 = vunpack.c.h.b16 %v571
    %v1942 = vunpack.c.l.b16 %v572
    %v1943 = vunpack.c.h.b16 %v572
    %v1944 = vunpack.c.l.b16 %v573
    %v1945 = vunpack.c.h.b16 %v573
    %v1946 = vunpack.c.l.b16 %v574
    %v1947 = vunpack.c.h.b16 %v574
    %v1948 = vunpack.c.l.b16 %v575
    %v1949 = vunpack.c.h.b16 %v575
    %v1950 = vunpack.c.l.b16 %v576
    %v1951 = vunpack.c.h.b16 %v576
    %v1952 = vunpack.c.l.b16 %v577
    %v1953 = vunpack.c.h.b16 %v577
    %v1954 = vunpack.c.l.b16 %v578
    %v1955 = vunpack.c.h.b16 %v578
    %v1956 = vunpack.c.l.b16 %v579
    %v1957 = vunpack.c.h.b16 %v579
    %v1958 = vunpack.c.l.b16 %v580
    %v1959 = vunpack.c.h.b16 %v580
    %v1960 = vunpack.c.l.b16 %v581
    %v1961 = vunpack.c.h.b16 %v581
    %v1962 = vunpack.c.l.b16 %v582
    %v1963 = vunpack.c.h.b16 %v582
    %v1964 = vunpack.c.l.b16 %v583
    %v1965 = vunpack.c.h.b16 %v583
    %v1966 = vunpack.c.l.b16 %v584
    %v1967 = vunpack.c.h.b16 %v584
    %v1968 = vunpack.c.l.b16 %v585
    %v1969 = vunpack.c.h.b16 %v585
    %v1970 = vunpack.c.l.b16 %v586
    %v1971 = vunpack.c.h.b16 %v586
    %v1972 = vunpack.c.l.b16 %v587
    %v1973 = vunpack.c.h.b16 %v587
    %v1974 = vunpack.c.l.b16 %v588
    %v1975 = vunpack.c.h.b16 %v588
    %v1976 = vunpack.c.l.b16 %v589
    %v1977 = vunpack.c.h.b16 %v589
    %v1978 = vunpack.c.l.b16 %v590
    %v1979 = vunpack.c.h.b16 %v590
    %v1980 = vunpack.c.l.b16 %v591
    %v1981 = vunpack.c.h.b16 %v591
    %v1982 = vunpack.c.l.b16 %v592
    %v1983 = vunpack.c.h.b16 %v592
    %v1984 = vunpack.c.l.b16 %v593
    %v1985 = vunpack.c.h.b16 %v593
    %v1986 = vunpack.c.l.b16 %v594
    %v1987 = vunpack.c.h.b16 %v594
    %v1988 = vunpack.c.l.b16 %v595
    %v1989 = vunpack.c.h.b16 %v595
    %v1990 = vunpack.c.l.b16 %v596
    %v1991 = vunpack.c.h.b16 %v596
    %v1992 = vunpack.c.l.b16 %v597
    %v1993 = vunpack.c.h.b16 %v597
    %v1994 = vunpack.c.l.b16 %v598
    %v1995 = vunpack.c.h.b16 %v598
    %v1996 = vunpack.c.l.b16 %v599
    %v1997 = vunpack.c.h.b16 %v599
    %v1998 = vunpack.c.l.b16 %v600
    %v1999 = vunpack.c.h.b16 %v600
    %v2000 = vunpack.c.l.b16 %v601
    %v2001 = vunpack.c.h.b16 %v601
    %v2002 = vunpack.c.l.b16 %v602
    %v2003 = vunpack.c.h.b16 %v602
    %v2004 = vunpack.c.l.b16 %v603
    %v2005 = vunpack.c.h.b16 %v603
    %v2006 = vunpack.c.l.b16 %v604
    %v2007 = vunpack.c.h.b16 %v604
    %v2008 = vunpack.c.l.b16 %v605
    %v2009 = vunpack.c.h.b16 %v605
    %v2010 = vunpack.c.l.b16 %v606
    %v2011 = vunpack.c.h.b16 %v606
    %v2012 = vunpack.c.l.b16 %v607
    %v2013 = vunpack.c.h.b16 %v607
    %v2014 = vunpack.c.l.b16 %v608
    %v2015 = vunpack.c.h.b16 %v608
    %v2016 = vunpack.c.l.b16 %v609
    %v2017 = vunpack.c.h.b16 %v609
    %v2018 = vunpack.c.l.b16 %v610
    %v2019 = vunpack.c.h.b16 %v610
    %v2020 = vunpack.c.l.b16 %v611
    %v2021 = vunpack.c.h.b16 %v611
    %v2022 = vunpack.c.l.b16 %v612
    %v2023 = vunpack.c.h.b16 %v612
    %v2024 = vunpack.c.l.b16 %v613
    %v2025 = vunpack.c.h.b16 %v613
    %v2026 = vunpack.c.l.b16 %v614
    %v2027 = vunpack.c.h.b16 %v614
    %v2028 = vunpack.c.l.b16 %v615
    %v2029 = vunpack.c.h.b16 %v615
    %v2030 = vunpack.c.l.b16 %v616
    %v2031 = vunpack.c.h.b16 %v616
    %v2032 = vunpack.c.l.b16 %v617
    %v2033 = vunpack.c.h.b16 %v617
    %v2034 = vunpack.c.l.b16 %v618
    %v2035 = vunpack.c.h.b16 %v618
    %v2036 = vunpack.c.l.b16 %v619
    %v2037 = vunpack.c.h.b16 %v619
    %v2038 = vunpack.c.l.b16 %v620
    %v2039 = vunpack.c.h.b16 %v620
    %v2040 = vunpack.c.l.b16 %v621
    %v2041 = vunpack.c.h.b16 %v621
    %v2042 = vunpack.c.l.b16 %v622
    %v2043 = vunpack.c.h.b16 %v622
    %v2044 = vunpack.c.l.b16 %v623
    %v2045 = vunpack.c.h.b16 %v623
    %v2046 = vunpack.c.l.b16 %v624
    %v2047 = vunpack.c.h.b16 %v624
    %v2048 = vunpack.c.l.b16 %v625
    %v2049 = vunpack.c.h.b16 %v625
    %v2050 = vunpack.c.l.b16 %v626
    %v2051 = vunpack.c.h.b16 %v626
    %v2052 = vunpack.c.l.b16 %v627
    %v2053 = vunpack.c.h.b16 %v627
    %v2054 = vunpack.c.l.b16 %v628
    %v2055 = vunpack.c.h.b16 %v628
    %v2056 = vunpack.c.l.b16 %v629
    %v2057 = vunpack.c.h.b16 %v629
    %v2058 = vunpack.c.l.b16 %v630
    %v2059 = vunpack.c.h.b16 %v630
    %v2060 = vunpack.c.l.b16 %v631
    %v2061 = vunpack.c.h.b16 %v631
    %v2062 = vunpack.c.l.b16 %v632
    %v2063 = vunpack.c.h.b16 %v632
    %v2064 = vunpack.c.l.b16 %v633
    %v2065 = vunpack.c.h.b16 %v633
    %v2066 = vunpack.c.l.b16 %v634
    %v2067 = vunpack.c.h.b16 %v634
    %v2068 = vunpack.c.l.b16 %v635
    %v2069 = vunpack.c.h.b16 %v635
    %v2070 = vunpack.c.l.b16 %v636
    %v2071 = vunpack.c.h.b16 %v636
    %v2072 = vunpack.c.l.b16 %v637
    %v2073 = vunpack.c.h.b16 %v637
    %v2074 = vunpack.c.l.b16 %v638
    %v2075 = vunpack.c.h.b16 %v638
    %v2076 = vunpack.c.l.b16 %v639
    %v2077 = vunpack.c.h.b16 %v639
    %v2078 = vunpack.c.l.b16 %v640
    %v2079 = vunpack.c.h.b16 %v640
    %v2080 = vunpack.c.l.b16 %v641
    %v2081 = vunpack.c.h.b16 %v641
    %v2082 = vunpack.c.l.b16 %v642
    %v2083 = vunpack.c.h.b16 %v642
    %v2084 = vunpack.c.l.b16 %v643
    %v2085 = vunpack.c.h.b16 %v643
    %v2086 = vunpack.c.l.b16 %v644
    %v2087 = vunpack.c.h.b16 %v644
    %v2088 = vunpack.c.l.b16 %v645
    %v2089 = vunpack.c.h.b16 %v645
    %v2090 = vunpack.c.l.b16 %v646
    %v2091 = vunpack.c.h.b16 %v646
    %v2092 = vunpack.c.l.b16 %v647
    %v2093 = vunpack.c.h.b16 %v647
    %v2094 = vunpack.c.l.b16 %v648
    %v2095 = vunpack.c.h.b16 %v648
    %v2096 = vunpack.c.l.b16 %v649
    %v2097 = vunpack.c.h.b16 %v649
    %v2098 = vunpack.c.l.b16 %v650
    %v2099 = vunpack.c.h.b16 %v650
    %v2100 = vunpack.c.l.b16 %v651
    %v2101 = vunpack.c.h.b16 %v651
    %v2102 = vunpack.c.l.b16 %v652
    %v2103 = vunpack.c.h.b16 %v652
    %v2104 = vunpack.c.l.b16 %v653
    %v2105 = vunpack.c.h.b16 %v653
    %v2106 = vunpack.c.l.b16 %v654
    %v2107 = vunpack.c.h.b16 %v654
    %v2108 = vunpack.c.l.b16 %v655
    %v2109 = vunpack.c.h.b16 %v655
    %v2110 = vunpack.c.l.b16 %v656
    %v2111 = vunpack.c.h.b16 %v656
    %v2112 = vunpack.c.l.b16 %v657
    %v2113 = vunpack.c.h.b16 %v657
    %v2114 = vunpack.c.l.b16 %v658
    %v2115 = vunpack.c.h.b16 %v658
    %v2116 = vunpack.c.l.b16 %v659
    %v2117 = vunpack.c.h.b16 %v659
    %v2118 = vunpack.c.l.b16 %v660
    %v2119 = vunpack.c.h.b16 %v660
    %v2120 = vunpack.c.l.b16 %v661
    %v2121 = vunpack.c.h.b16 %v661
    %v2122 = vunpack.c.l.b16 %v662
    %v2123 = vunpack.c.h.b16 %v662
    %v2124 = vunpack.c.l.b16 %v663
    %v2125 = vunpack.c.h.b16 %v663
    %v2126 = vunpack.c.l.b16 %v664
    %v2127 = vunpack.c.h.b16 %v664
    %v2128 = vunpack.c.l.b16 %v665
    %v2129 = vunpack.c.h.b16 %v665
    %v2130 = vunpack.c.l.b16 %v666
    %v2131 = vunpack.c.h.b16 %v666
    %v2132 = vunpack.c.l.b16 %v667
    %v2133 = vunpack.c.h.b16 %v667
    %v2134 = vunpack.c.l.b16 %v668
    %v2135 = vunpack.c.h.b16 %v668
    %v2136 = vunpack.c.l.b16 %v669
    %v2137 = vunpack.c.h.b16 %v669
    %v2138 = vunpack.c.l.b16 %v670
    %v2139 = vunpack.c.h.b16 %v670
    %v2140 = vunpack.c.l.b16 %v671
    %v2141 = vunpack.c.h.b16 %v671
    %v2142 = vunpack.c.l.b16 %v672
    %v2143 = vunpack.c.h.b16 %v672
    %v2144 = vunpack.c.l.b16 %v673
    %v2145 = vunpack.c.h.b16 %v673
    %v2146 = vunpack.c.l.b16 %v674
    %v2147 = vunpack.c.h.b16 %v674
    %v2148 = vunpack.c.l.b16 %v675
    %v2149 = vunpack.c.h.b16 %v675
    %v2150 = vunpack.c.l.b16 %v676
    %v2151 = vunpack.c.h.b16 %v676
    %v2152 = vunpack.c.l.b16 %v677
    %v2153 = vunpack.c.h.b16 %v677
    %v2154 = vunpack.c.l.b16 %v678
    %v2155 = vunpack.c.h.b16 %v678
    %v2156 = vunpack.c.l.b16 %v679
    %v2157 = vunpack.c.h.b16 %v679
    %v2158 = vunpack.c.l.b16 %v680
    %v2159 = vunpack.c.h.b16 %v680
    %v2160 = vunpack.c.l.b16 %v681
    %v2161 = vunpack.c.h.b16 %v681
    %v2162 = vunpack.c.l.b16 %v682
    %v2163 = vunpack.c.h.b16 %v682
    %v2164 = vunpack.c.l.b16 %v683
    %v2165 = vunpack.c.h.b16 %v683
    %v2166 = vunpack.c.l.b16 %v684
    %v2167 = vunpack.c.h.b16 %v684
    %v2168 = vunpack.c.l.b16 %v685
    %v2169 = vunpack.c.h.b16 %v685
    %v2170 = vunpack.c.l.b16 %v686
    %v2171 = vunpack.c.h.b16 %v686
    %v2172 = vunpack.c.l.b16 %v687
    %v2173 = vunpack.c.h.b16 %v687
    %v2174 = vunpack.c.l.b16 %v688
    %v2175 = vunpack.c.h.b16 %v688
    %v2176 = vunpack.c.l.b16 %v689
    %v2177 = vunpack.c.h.b16 %v689
    %v2178 = vunpack.c.l.b16 %v690
    %v2179 = vunpack.c.h.b16 %v690
    %v2180 = vunpack.c.l.b16 %v691
    %v2181 = vunpack.c.h.b16 %v691
    %v2182 = vunpack.c.l.b16 %v692
    %v2183 = vunpack.c.h.b16 %v692
    %v2184 = vunpack.c.l.b16 %v693
    %v2185 = vunpack.c.h.b16 %v693
    %v2186 = vunpack.c.l.b16 %v694
    %v2187 = vunpack.c.h.b16 %v694
    %v2188 = vunpack.c.l.b16 %v695
    %v2189 = vunpack.c.h.b16 %v695
    %v2190 = vunpack.c.l.b16 %v696
    %v2191 = vunpack.c.h.b16 %v696
    %v2192 = vunpack.c.l.b16 %v697
    %v2193 = vunpack.c.h.b16 %v697
    %v2194 = vunpack.c.l.b16 %v698
    %v2195 = vunpack.c.h.b16 %v698
    %v2196 = vunpack.c.l.b16 %v699
    %v2197 = vunpack.c.h.b16 %v699
    %v2198 = vunpack.c.l.b16 %v700
    %v2199 = vunpack.c.h.b16 %v700
    %v2200 = vunpack.c.l.b16 %v701
    %v2201 = vunpack.c.h.b16 %v701
    %v2202 = vunpack.c.l.b16 %v702
    %v2203 = vunpack.c.h.b16 %v702
    %v2204 = vunpack.c.l.b16 %v703
    %v2205 = vunpack.c.h.b16 %v703
    %v2206 = vunpack.c.l.b16 %v704
    %v2207 = vunpack.c.h.b16 %v704
    %v2208 = vunpack.c.l.b16 %v705
    %v2209 = vunpack.c.h.b16 %v705
    %v2210 = vunpack.c.l.b16 %v706
    %v2211 = vunpack.c.h.b16 %v706
    %v2212 = vunpack.c.l.b16 %v707
    %v2213 = vunpack.c.h.b16 %v707
    %v2214 = vunpack.c.l.b16 %v708
    %v2215 = vunpack.c.h.b16 %v708
    %v2216 = vunpack.c.l.b16 %v709
    %v2217 = vunpack.c.h.b16 %v709
    %v2218 = vunpack.c.l.b16 %v710
    %v2219 = vunpack.c.h.b16 %v710
    %v2220 = vunpack.c.l.b16 %v711
    %v2221 = vunpack.c.h.b16 %v711
    %v2222 = vunpack.c.l.b16 %v712
    %v2223 = vunpack.c.h.b16 %v712
    %v2224 = vunpack.c.l.b16 %v713
    %v2225 = vunpack.c.h.b16 %v713
    %v2226 = vunpack.c.l.b16 %v714
    %v2227 = vunpack.c.h.b16 %v714
    %v2228 = vunpack.c.l.b16 %v715
    %v2229 = vunpack.c.h.b16 %v715
    %v2230 = vunpack.c.l.b16 %v716
    %v2231 = vunpack.c.h.b16 %v716
    %v2232 = vunpack.c.l.b16 %v717
    %v2233 = vunpack.c.h.b16 %v717
    %v2234 = vunpack.c.l.b16 %v718
    %v2235 = vunpack.c.h.b16 %v718
    %v2236 = vunpack.c.l.b16 %v719
    %v2237 = vunpack.c.h.b16 %v719
    %v2238 = vunpack.c.l.b16 %v720
    %v2239 = vunpack.c.h.b16 %v720
    %v2240 = vunpack.c.l.b16 %v721
    %v2241 = vunpack.c.h.b16 %v721
    %v2242 = vunpack.c.l.b16 %v722
    %v2243 = vunpack.c.h.b16 %v722
    %v2244 = vunpack.c.l.b16 %v723
    %v2245 = vunpack.c.h.b16 %v723
    %v2246 = vunpack.c.l.b16 %v724
    %v2247 = vunpack.c.h.b16 %v724
    %v2248 = vunpack.c.l.b16 %v725
    %v2249 = vunpack.c.h.b16 %v725
    %v2250 = vunpack.c.l.b16 %v726
    %v2251 = vunpack.c.h.b16 %v726
    %v2252 = vunpack.c.l.b16 %v727
    %v2253 = vunpack.c.h.b16 %v727
    %v2254 = vunpack.c.l.b16 %v728
    %v2255 = vunpack.c.h.b16 %v728
    %v2256 = vunpack.c.l.b16 %v729
    %v2257 = vunpack.c.h.b16 %v729
    %v2258 = vunpack.c.l.b16 %v730
    %v2259 = vunpack.c.h.b16 %v730
    %v2260 = vunpack.c.l.b16 %v731
    %v2261 = vunpack.c.h.b16 %v731
    %v2262 = vunpack.c.l.b16 %v732
    %v2263 = vunpack.c.h.b16 %v732
    %v2264 = vunpack.c.l.b16 %v733
    %v2265 = vunpack.c.h.b16 %v733
    %v2266 = vunpack.c.l.b16 %v734
    %v2267 = vunpack.c.h.b16 %v734
    %v2268 = vunpack.c.l.b16 %v735
    %v2269 = vunpack.c.h.b16 %v735
    %v2270 = vunpack.c.l.b16 %v736
    %v2271 = vunpack.c.h.b16 %v736
    %v2272 = vunpack.c.l.b16 %v737
    %v2273 = vunpack.c.h.b16 %v737
    %v2274 = vunpack.c.l.b16 %v738
    %v2275 = vunpack.c.h.b16 %v738
    %v2276 = vunpack.c.l.b16 %v739
    %v2277 = vunpack.c.h.b16 %v739
    %v2278 = vunpack.c.l.b16 %v740
    %v2279 = vunpack.c.h.b16 %v740
    %v2280 = vunpack.c.l.b16 %v741
    %v2281 = vunpack.c.h.b16 %v741
    %v2282 = vunpack.c.l.b16 %v742
    %v2283 = vunpack.c.h.b16 %v742
    %v2284 = vunpack.c.l.b16 %v743
    %v2285 = vunpack.c.h.b16 %v743
    %v2286 = vunpack.c.l.b16 %v744
    %v2287 = vunpack.c.h.b16 %v744
    %v2288 = vunpack.c.l.b16 %v745
    %v2289 = vunpack.c.h.b16 %v745
    %v2290 = vunpack.c.l.b16 %v746
    %v2291 = vunpack.c.h.b16 %v746
    %v2292 = vunpack.c.l.b16 %v747
    %v2293 = vunpack.c.h.b16 %v747
    %v2294 = vunpack.c.l.b16 %v748
    %v2295 = vunpack.c.h.b16 %v748
    %v2296 = vunpack.c.l.b16 %v749
    %v2297 = vunpack.c.h.b16 %v749
    %v2298 = vunpack.c.l.b16 %v750
    %v2299 = vunpack.c.h.b16 %v750
    %v2300 = vunpack.c.l.b16 %v751
    %v2301 = vunpack.c.h.b16 %v751
    %v2302 = vunpack.c.l.b16 %v752
    %v2303 = vunpack.c.h.b16 %v752
    %v2304 = vunpack.c.l.b16 %v753
    %v2305 = vunpack.c.h.b16 %v753
    %v2306 = vunpack.c.l.b16 %v754
    %v2307 = vunpack.c.h.b16 %v754
    %v2308 = vunpack.c.l.b16 %v755
    %v2309 = vunpack.c.h.b16 %v755
    %v2310 = vunpack.c.l.b16 %v756
    %v2311 = vunpack.c.h.b16 %v756
    %v2312 = vunpack.c.l.b16 %v757
    %v2313 = vunpack.c.h.b16 %v757
    %v2314 = vunpack.c.l.b16 %v758
    %v2315 = vunpack.c.h.b16 %v758
    %v2316 = vunpack.c.l.b16 %v759
    %v2317 = vunpack.c.h.b16 %v759
    %v2318 = vunpack.c.l.b16 %v760
    %v2319 = vunpack.c.h.b16 %v760
    %v2320 = vunpack.c.l.b16 %v761
    %v2321 = vunpack.c.h.b16 %v761
    %v2322 = vunpack.c.l.b16 %v762
    %v2323 = vunpack.c.h.b16 %v762
    %v2324 = vunpack.c.l.b16 %v763
    %v2325 = vunpack.c.h.b16 %v763
    %v2326 = vunpack.c.l.b16 %v764
    %v2327 = vunpack.c.h.b16 %v764
    %v2328 = vunpack.c.l.b16 %v765
    %v2329 = vunpack.c.h.b16 %v765
    %v2330 = vunpack.c.l.b16 %v766
    %v2331 = vunpack.c.h.b16 %v766
    %v2332 = vunpack.c.l.b16 %v767
    %v2333 = vunpack.c.h.b16 %v767
    %v2334 = vunpack.c.l.b16 %v768
    %v2335 = vunpack.c.h.b16 %v768
    %v2336 = vunpack.c.l.b16 %v769
    %v2337 = vunpack.c.h.b16 %v769
    %v2338 = vunpack.c.l.b16 %v770
    %v2339 = vunpack.c.h.b16 %v770
    %v2340 = vunpack.c.l.b16 %v771
    %v2341 = vunpack.c.h.b16 %v771
    %v2342 = vunpack.c.l.b16 %v772
    %v2343 = vunpack.c.h.b16 %v772
    %v2344 = vunpack.c.l.b16 %v773
    %v2345 = vunpack.c.h.b16 %v773
    %v2346 = vunpack.c.l.b16 %v774
    %v2347 = vunpack.c.h.b16 %v774
    %v2348 = vunpack.c.l.b16 %v775
    %v2349 = vunpack.c.h.b16 %v775
    %v2350 = vunpack.c.l.b16 %v776
    %v2351 = vunpack.c.h.b16 %v776
    %v2352 = vunpack.c.l.b16 %v777
    %v2353 = vunpack.c.h.b16 %v777
    %v2354 = vunpack.c.l.b16 %v778
    %v2355 = vunpack.c.h.b16 %v778
    %v2356 = vunpack.c.l.b16 %v779
    %v2357 = vunpack.c.h.b16 %v779
    %v2358 = vunpack.c.l.b16 %v780
    %v2359 = vunpack.c.h.b16 %v780
    %v2360 = vunpack.c.l.b16 %v781
    %v2361 = vunpack.c.h.b16 %v781
    %v2362 = vunpack.c.l.b16 %v782
    %v2363 = vunpack.c.h.b16 %v782
    %v2364 = vunpack.c.l.b16 %v783
    %v2365 = vunpack.c.h.b16 %v783
    %v2366 = vunpack.c.l.b16 %v784
    %v2367 = vunpack.c.h.b16 %v784
    %v2368 = vunpack.c.l.b16 %v785
    %v2369 = vunpack.c.h.b16 %v785
    %v2370 = vunpack.c.l.b16 %v786
    %v2371 = vunpack.c.h.b16 %v786
    %v2372 = vunpack.c.l.b16 %v787
    %v2373 = vunpack.c.h.b16 %v787
    %v2374 = vunpack.c.l.b16 %v788
    %v2375 = vunpack.c.h.b16 %v788
    %v2376 = vunpack.c.l.b16 %v789
    %v2377 = vunpack.c.h.b16 %v789
    %v2378 = vunpack.c.l.b16 %v790
    %v2379 = vunpack.c.h.b16 %v790
    %v2380 = vunpack.c.l.b16 %v791
    %v2381 = vunpack.c.h.b16 %v791
    %v2382 = vunpack.c.l.b16 %v792
    %v2383 = vunpack.c.h.b16 %v792
    %v2384 = vunpack.c.l.b16 %v793
    %v2385 = vunpack.c.h.b16 %v793
    %v2386 = vunpack.c.l.b16 %v794
    %v2387 = vunpack.c.h.b16 %v794
    %v2388 = vunpack.c.l.b16 %v795
    %v2389 = vunpack.c.h.b16 %v795
    %v2390 = vunpack.c.l.b16 %v796
    %v2391 = vunpack.c.h.b16 %v796
    %v2392 = vunpack.c.l.b16 %v797
    %v2393 = vunpack.c.h.b16 %v797
    %v2394 = vunpack.c.l.b16 %v798
    %v2395 = vunpack.c.h.b16 %v798
    %v2396 = vunpack.c.l.b16 %v799
    %v2397 = vunpack.c.h.b16 %v799
    %v2398 = vunpack.c.l.b16 %v800
    %v2399 = vunpack.c.h.b16 %v800
    %v2400 = vunpack.c.l.b16 %v801
    %v2401 = vunpack.c.h.b16 %v801
    %v2402 = vunpack.c.l.b16 %v802
    %v2403 = vunpack.c.h.b16 %v802
    %v2404 = vunpack.c.l.b16 %v803
    %v2405 = vunpack.c.h.b16 %v803
    %v2406 = vunpack.c.l.b16 %v804
    %v2407 = vunpack.c.h.b16 %v804
    %v2408 = vunpack.c.l.b16 %v805
    %v2409 = vunpack.c.h.b16 %v805
    %v2410 = vunpack.c.l.b16 %v806
    %v2411 = vunpack.c.h.b16 %v806
    %v2412 = vunpack.c.l.b16 %v807
    %v2413 = vunpack.c.h.b16 %v807
    %v2414 = vunpack.c.l.b16 %v808
    %v2415 = vunpack.c.h.b16 %v808
    %v2416 = vunpack.c.l.b16 %v809
    %v2417 = vunpack.c.h.b16 %v809
    %v2418 = vunpack.c.l.b16 %v810
    %v2419 = vunpack.c.h.b16 %v810
    %v2420 = vunpack.c.l.b16 %v811
    %v2421 = vunpack.c.h.b16 %v811
    %v2422 = vunpack.c.l.b16 %v812
    %v2423 = vunpack.c.h.b16 %v812
    %v2424 = vunpack.c.l.b16 %v813
    %v2425 = vunpack.c.h.b16 %v813
    %v2426 = vunpack.c.l.b16 %v814
    %v2427 = vunpack.c.h.b16 %v814
    %v2428 = vunpack.c.l.b16 %v815
    %v2429 = vunpack.c.h.b16 %v815
    %v2430 = vunpack.c.l.b16 %v816
    %v2431 = vunpack.c.h.b16 %v816
    %v2432 = vunpack.c.l.b16 %v817
    %v2433 = vunpack.c.h.b16 %v817
    %v2434 = vunpack.c.l.b16 %v818
    %v2435 = vunpack.c.h.b16 %v818
    %v2436 = vunpack.c.l.b16 %v819
    %v2437 = vunpack.c.h.b16 %v819
    %v2438 = vunpack.c.l.b16 %v820
    %v2439 = vunpack.c.h.b16 %v820
    %v2440 = vunpack.c.l.b16 %v821
    %v2441 = vunpack.c.h.b16 %v821
    %v2442 = vunpack.c.l.b16 %v822
    %v2443 = vunpack.c.h.b16 %v822
    %v2444 = vunpack.c.l.b16 %v823
    %v2445 = vunpack.c.h.b16 %v823
    %v2446 = vunpack.c.l.b16 %v824
    %v2447 = vunpack.c.h.b16 %v824
    %v2448 = vunpack.c.l.b16 %v825
    %v2449 = vunpack.c.h.b16 %v825
    %v2450 = vunpack.c.l.b16 %v826
    %v2451 = vunpack.c.h.b16 %v826
    %v2452 = vunpack.c.l.b16 %v827
    %v2453 = vunpack.c.h.b16 %v827
    %v2454 = vunpack.c.l.b16 %v828
    %v2455 = vunpack.c.h.b16 %v828
    %v2456 = vunpack.c.l.b16 %v829
    %v2457 = vunpack.c.h.b16 %v829
    %v2458 = vunpack.c.l.b16 %v830
    %v2459 = vunpack.c.h.b16 %v830
    %v2460 = vunpack.c.l.b16 %v831
    %v2461 = vunpack.c.h.b16 %v831
    %v2462 = vunpack.c.l.b16 %v832
    %v2463 = vunpack.c.h.b16 %v832
    %v2464 = vunpack.c.l.b16 %v833
    %v2465 = vunpack.c.h.b16 %v833
    %v2466 = vunpack.c.l.b16 %v834
    %v2467 = vunpack.c.h.b16 %v834
    %v2468 = vunpack.c.l.b16 %v835
    %v2469 = vunpack.c.h.b16 %v835
    %v2470 = vunpack.c.l.b16 %v836
    %v2471 = vunpack.c.h.b16 %v836
    %v2472 = vunpack.c.l.b16 %v837
    %v2473 = vunpack.c.h.b16 %v837
    %v2474 = vunpack.c.l.b16 %v838
    %v2475 = vunpack.c.h.b16 %v838
    %v2476 = vunpack.c.l.b16 %v839
    %v2477 = vunpack.c.h.b16 %v839
    %v2478 = vunpack.c.l.b16 %v840
    %v2479 = vunpack.c.h.b16 %v840
    %v2480 = vunpack.c.l.b16 %v841
    %v2481 = vunpack.c.h.b16 %v841
    %v2482 = vunpack.c.l.b16 %v842
    %v2483 = vunpack.c.h.b16 %v842
    %v2484 = vunpack.c.l.b16 %v843
    %v2485 = vunpack.c.h.b16 %v843
    %v2486 = vunpack.c.l.b16 %v844
    %v2487 = vunpack.c.h.b16 %v844
    %v2488 = vunpack.c.l.b16 %v845
    %v2489 = vunpack.c.h.b16 %v845
    %v2490 = vunpack.c.l.b16 %v846
    %v2491 = vunpack.c.h.b16 %v846
    %v2492 = vunpack.c.l.b16 %v847
    %v2493 = vunpack.c.h.b16 %v847
    %v2494 = vunpack.c.l.b16 %v848
    %v2495 = vunpack.c.h.b16 %v848
    %v2496 = vunpack.c.l.b16 %v849
    %v2497 = vunpack.c.h.b16 %v849
    %v2498 = vunpack.c.l.b16 %v850
    %v2499 = vunpack.c.h.b16 %v850
    %v2500 = vunpack.c.l.b16 %v851
    %v2501 = vunpack.c.h.b16 %v851
    %v2502 = vunpack.c.l.b16 %v852
    %v2503 = vunpack.c.h.b16 %v852
    %v2504 = vunpack.c.l.b16 %v853
    %v2505 = vunpack.c.h.b16 %v853
    %v2506 = vunpack.c.l.b16 %v854
    %v2507 = vunpack.c.h.b16 %v854
    %v2508 = vunpack.c.l.b16 %v855
    %v2509 = vunpack.c.h.b16 %v855
    %v2510 = vunpack.c.l.b16 %v856
    %v2511 = vunpack.c.h.b16 %v856
    %v2512 = vunpack.c.l.b16 %v857
    %v2513 = vunpack.c.h.b16 %v857
    %v2514 = vunpack.c.l.b16 %v858
    %v2515 = vunpack.c.h.b16 %v858
    %v2516 = vunpack.c.l.b16 %v859
    %v2517 = vunpack.c.h.b16 %v859
    %v2518 = vunpack.c.l.b16 %v860
    %v2519 = vunpack.c.h.b16 %v860
    %v2520 = vunpack.c.l.b16 %v861
    %v2521 = vunpack.c.h.b16 %v861
    %v2522 = vunpack.c.l.b16 %v862
    %v2523 = vunpack.c.h.b16 %v862
    %v2524 = vunpack.c.l.b16 %v863
    %v2525 = vunpack.c.h.b16 %v863
    %v2526 = vunpack.c.l.b16 %v864
    %v2527 = vunpack.c.h.b16 %v864
    %v2528 = vunpack.c.l.b16 %v865
    %v2529 = vunpack.c.h.b16 %v865
    %v2530 = vunpack.c.l.b16 %v866
    %v2531 = vunpack.c.h.b16 %v866
    %v2532 = vunpack.c.l.b16 %v867
    %v2533 = vunpack.c.h.b16 %v867
    %v2534 = vunpack.c.l.b16 %v868
    %v2535 = vunpack.c.h.b16 %v868
    %v2536 = vunpack.c.l.b16 %v869
    %v2537 = vunpack.c.h.b16 %v869
    %v2538 = vunpack.c.l.b16 %v870
    %v2539 = vunpack.c.h.b16 %v870
    %v2540 = vunpack.c.l.b16 %v871
    %v2541 = vunpack.c.h.b16 %v871
    %v2542 = vunpack.c.l.b16 %v872
    %v2543 = vunpack.c.h.b16 %v872
    %v2544 = vunpack.c.l.b16 %v873
    %v2545 = vunpack.c.h.b16 %v873
    %v2546 = vunpack.c.l.b16 %v874
    %v2547 = vunpack.c.h.b16 %v874
    %v2548 = vunpack.c.l.b16 %v875
    %v2549 = vunpack.c.h.b16 %v875
    %v2550 = vunpack.c.l.b16 %v876
    %v2551 = vunpack.c.h.b16 %v876
    %v2552 = vunpack.c.l.b16 %v877
    %v2553 = vunpack.c.h.b16 %v877
    %v2554 = vunpack.c.l.b16 %v878
    %v2555 = vunpack.c.h.b16 %v878
    %v2556 = vunpack.c.l.b16 %v879
    %v2557 = vunpack.c.h.b16 %v879
    %v2558 = vunpack.c.l.b16 %v880
    %v2559 = vunpack.c.h.b16 %v880
    %v2560 = vunpack.c.l.b16 %v881
    %v2561 = vunpack.c.h.b16 %v881
    %v2562 = vunpack.c.l.b16 %v882
    %v2563 = vunpack.c.h.b16 %v882
    %v2564 = vunpack.c.l.b16 %v883
    %v2565 = vunpack.c.h.b16 %v883
    %v2566 = vunpack.c.l.b16 %v884
    %v2567 = vunpack.c.h.b16 %v884
    %v2568 = vunpack.c.l.b16 %v885
    %v2569 = vunpack.c.h.b16 %v885
    %v2570 = vunpack.c.l.b16 %v886
    %v2571 = vunpack.c.h.b16 %v886
    %v2572 = vunpack.c.l.b16 %v887
    %v2573 = vunpack.c.h.b16 %v887
    %v2574 = vunpack.c.l.b16 %v888
    %v2575 = vunpack.c.h.b16 %v888
    %v2576 = vunpack.c.l.b16 %v889
    %v2577 = vunpack.c.h.b16 %v889
    %v2578 = vunpack.c.l.b16 %v890
    %v2579 = vunpack.c.h.b16 %v890
    %v2580 = vunpack.c.l.b16 %v891
    %v2581 = vunpack.c.h.b16 %v891
    %v2582 = vunpack.c.l.b16 %v892
    %v2583 = vunpack.c.h.b16 %v892
    %v2584 = vunpack.c.l.b16 %v893
    %v2585 = vunpack.c.h.b16 %v893
    %v2586 = vunpack.c.l.b16 %v894
    %v2587 = vunpack.c.h.b16 %v894
    %v2588 = vunpack.c.l.b16 %v895
    %v2589 = vunpack.c.h.b16 %v895
    %v2590 = vunpack.c.l.b16 %v896
    %v2591 = vunpack.c.h.b16 %v896
    %v2592 = vunpack.c.l.b16 %v897
    %v2593 = vunpack.c.h.b16 %v897
    %v2594 = vunpack.c.l.b16 %v898
    %v2595 = vunpack.c.h.b16 %v898
    %v2596 = vunpack.c.l.b16 %v899
    %v2597 = vunpack.c.h.b16 %v899
    %v2598 = vunpack.c.l.b16 %v900
    %v2599 = vunpack.c.h.b16 %v900
    %v2600 = vunpack.c.l.b16 %v901
    %v2601 = vunpack.c.h.b16 %v901
    %v2602 = vunpack.c.l.b16 %v902
    %v2603 = vunpack.c.h.b16 %v902
    %v2604 = vunpack.c.l.b16 %v903
    %v2605 = vunpack.c.h.b16 %v903
    %v2606 = vunpack.c.l.b16 %v904
    %v2607 = vunpack.c.h.b16 %v904
    %v2608 = vunpack.c.l.b16 %v905
    %v2609 = vunpack.c.h.b16 %v905
    %v2610 = vunpack.c.l.b16 %v906
    %v2611 = vunpack.c.h.b16 %v906
    %v2612 = vunpack.c.l.b16 %v907
    %v2613 = vunpack.c.h.b16 %v907
    %v2614 = vunpack.c.l.b16 %v908
    %v2615 = vunpack.c.h.b16 %v908
    %v2616 = vunpack.c.l.b16 %v909
    %v2617 = vunpack.c.h.b16 %v909
    %v2618 = vunpack.c.l.b16 %v910
    %v2619 = vunpack.c.h.b16 %v910
    %v2620 = vunpack.c.l.b16 %v911
    %v2621 = vunpack.c.h.b16 %v911
    %v2622 = vunpack.c.l.b16 %v912
    %v2623 = vunpack.c.h.b16 %v912
    %v2624 = vunpack.c.l.b16 %v913
    %v2625 = vunpack.c.h.b16 %v913
    %v2626 = vunpack.c.l.b16 %v914
    %v2627 = vunpack.c.h.b16 %v914
    %v2628 = vunpack.c.l.b16 %v915
    %v2629 = vunpack.c.h.b16 %v915
    %v2630 = vunpack.c.l.b16 %v916
    %v2631 = vunpack.c.h.b16 %v916
    %v2632 = vunpack.c.l.b16 %v917
    %v2633 = vunpack.c.h.b16 %v917
    %v2634 = vunpack.c.l.b16 %v918
    %v2635 = vunpack.c.h.b16 %v918
    %v2636 = vunpack.c.l.b16 %v919
    %v2637 = vunpack.c.h.b16 %v919
    %v2638 = vunpack.c.l.b16 %v920
    %v2639 = vunpack.c.h.b16 %v920
    %v2640 = vunpack.c.l.b16 %v921
    %v2641 = vunpack.c.h.b16 %v921
    %v2642 = vunpack.c.l.b16 %v922
    %v2643 = vunpack.c.h.b16 %v922
    %v2644 = vunpack.c.l.b16 %v923
    %v2645 = vunpack.c.h.b16 %v923
    %v2646 = vunpack.c.l.b16 %v924
    %v2647 = vunpack.c.h.b16 %v924
    %v2648 = vunpack.c.l.b16 %v925
    %v2649 = vunpack.c.h.b16 %v925
    %v2650 = vunpack.c.l.b16 %v926
    %v2651 = vunpack.c.h.b16 %v926
    %v2652 = vunpack.c.l.b16 %v927
    %v2653 = vunpack.c.h.b16 %v927
    %v2654 = vunpack.c.l.b16 %v928
    %v2655 = vunpack.c.h.b16 %v928
    %v2656 = vunpack.c.l.b16 %v929
    %v2657 = vunpack.c.h.b16 %v929
    %v2658 = vunpack.c.l.b16 %v930
    %v2659 = vunpack.c.h.b16 %v930
    %v2660 = vunpack.c.l.b16 %v931
    %v2661 = vunpack.c.h.b16 %v931
    %v2662 = vunpack.c.l.b16 %v932
    %v2663 = vunpack.c.h.b16 %v932
    %v2664 = vunpack.c.l.b16 %v933
    %v2665 = vunpack.c.h.b16 %v933
    %v2666 = vunpack.c.l.b16 %v934
    %v2667 = vunpack.c.h.b16 %v934
    %v2668 = vunpack.c.l.b16 %v935
    %v2669 = vunpack.c.h.b16 %v935
    %v2670 = vunpack.c.l.b16 %v936
    %v2671 = vunpack.c.h.b16 %v936
    %v2672 = vunpack.c.l.b16 %v937
    %v2673 = vunpack.c.h.b16 %v937
    %v2674 = vunpack.c.l.b16 %v938
    %v2675 = vunpack.c.h.b16 %v938
    %v2676 = vunpack.c.l.b16 %v939
    %v2677 = vunpack.c.h.b16 %v939
    %v2678 = vunpack.c.l.b16 %v940
    %v2679 = vunpack.c.h.b16 %v940
    %v2680 = vunpack.c.l.b16 %v941
    %v2681 = vunpack.c.h.b16 %v941
    %v2682 = vunpack.c.l.b16 %v942
    %v2683 = vunpack.c.h.b16 %v942
    %v2684 = vunpack.c.l.b16 %v943
    %v2685 = vunpack.c.h.b16 %v943
    %v2686 = vunpack.c.l.b16 %v944
    %v2687 = vunpack.c.h.b16 %v944
    %v2688 = vunpack.c.l.b16 %v945
    %v2689 = vunpack.c.h.b16 %v945
    %v2690 = vunpack.c.l.b16 %v946
    %v2691 = vunpack.c.h.b16 %v946
    %v2692 = vunpack.c.l.b16 %v947
    %v2693 = vunpack.c.h.b16 %v947
    %v2694 = vunpack.c.l.b16 %v948
    %v2695 = vunpack.c.h.b16 %v948
    %v2696 = vunpack.c.l.b16 %v949
    %v2697 = vunpack.c.h.b16 %v949
    %v2698 = vunpack.c.l.b16 %v950
    %v2699 = vunpack.c.h.b16 %v950
    %v2700 = vunpack.c.l.b16 %v951
    %v2701 = vunpack.c.h.b16 %v951
    %v2702 = vunpack.c.l.b16 %v952
    %v2703 = vunpack.c.h.b16 %v952
    %v2704 = vunpack.c.l.b16 %v953
    %v2705 = vunpack.c.h.b16 %v953
    %v2706 = vunpack.c.l.b16 %v954
    %v2707 = vunpack.c.h.b16 %v954
    %v2708 = vunpack.c.l.b16 %v955
    %v2709 = vunpack.c.h.b16 %v955
    %v2710 = vunpack.c.l.b16 %v956
    %v2711 = vunpack.c.h.b16 %v956
    %v2712 = vunpack.c.l.b16 %v957
    %v2713 = vunpack.c.h.b16 %v957
    %v2714 = vunpack.c.l.b16 %v958
    %v2715 = vunpack.c.h.b16 %v958
    %v2716 = vunpack.c.l.b16 %v959
    %v2717 = vunpack.c.h.b16 %v959
    %v2718 = vunpack.c.l.b16 %v960
    %v2719 = vunpack.c.h.b16 %v960
    %v2720 = vunpack.c.l.b16 %v961
    %v2721 = vunpack.c.h.b16 %v961
    %v2722 = vpack.c.b16 %v1576, %v1570
    %v2723 = vpack.c.b16 %v1577, %v1571
    %v2724 = vpack.c.b16 %v1578, %v1572
    %v2725 = vpack.c.b16 %v1579, %v1573
    %v2726 = vpack.c.b16 %v1580, %v1574
    %v2727 = vpack.c.b16 %v1581, %v1575
    %v2728 = vpack.c.b16 %v1588, %v1582
    %v2729 = vpack.c.b16 %v1589, %v1583
    %v2730 = vpack.c.b16 %v1590, %v1584
    %v2731 = vpack.c.b16 %v1591, %v1585
    %v2732 = vpack.c.b16 %v1592, %v1586
    %v2733 = vpack.c.b16 %v1593, %v1587
    %v2734 = vpack.c.b16 %v1600, %v1594
    %v2735 = vpack.c.b16 %v1601, %v1595
    %v2736 = vpack.c.b16 %v1602, %v1596
    %v2737 = vpack.c.b16 %v1603, %v1597
    %v2738 = vpack.c.b16 %v1604, %v1598
    %v2739 = vpack.c.b16 %v1605, %v1599
    %v2740 = vpack.c.b16 %v1612, %v1606
    %v2741 = vpack.c.b16 %v1613, %v1607
    %v2742 = vpack.c.b16 %v1614, %v1608
    %v2743 = vpack.c.b16 %v1615, %v1609
    %v2744 = vpack.c.b16 %v1616, %v1610
    %v2745 = vpack.c.b16 %v1617, %v1611
    %v2746 = vpack.c.b16 %v1624, %v1618
    %v2747 = vpack.c.b16 %v1625, %v1619
    %v2748 = vpack.c.b16 %v1626, %v1620
    %v2749 = vpack.c.b16 %v1627, %v1621
    %v2750 = vpack.c.b16 %v1628, %v1622
    %v2751 = vpack.c.b16 %v1629, %v1623
    %v2752 = vpack.c.b16 %v1636, %v1630
    %v2753 = vpack.c.b16 %v1637, %v1631
    %v2754 = vpack.c.b16 %v1638, %v1632
    %v2755 = vpack.c.b16 %v1639, %v1633
    %v2756 = vpack.c.b16 %v1640, %v1634
    %v2757 = vpack.c.b16 %v1641, %v1635
    %v2758 = vpack.c.b16 %v1648, %v1642
    %v2759 = vpack.c.b16 %v1649, %v1643
    %v2760 = vpack.c.b16 %v1650, %v1644
    %v2761 = vpack.c.b16 %v1651, %v1645
    %v2762 = vpack.c.b16 %v1652, %v1646
    %v2763 = vpack.c.b16 %v1653, %v1647
    %v2764 = vpack.c.b16 %v1660, %v1654
    %v2765 = vpack.c.b16 %v1661, %v1655
    %v2766 = vpack.c.b16 %v1662, %v1656
    %v2767 = vpack.c.b16 %v1663, %v1657
    %v2768 = vpack.c.b16 %v1664, %v1658
    %v2769 = vpack.c.b16 %v1665, %v1659
    %v2770 = vpack.c.b16 %v1672, %v1666
    %v2771 = vpack.c.b16 %v1673, %v1667
    %v2772 = vpack.c.b16 %v1674, %v1668
    %v2773 = vpack.c.b16 %v1675, %v1669
    %v2774 = vpack.c.b16 %v1676, %v1670
    %v2775 = vpack.c.b16 %v1677, %v1671
    %v2776 = vpack.c.b16 %v1684, %v1678
    %v2777 = vpack.c.b16 %v1685, %v1679
    %v2778 = vpack.c.b16 %v1686, %v1680
    %v2779 = vpack.c.b16 %v1687, %v1681
    %v2780 = vpack.c.b16 %v1688, %v1682
    %v2781 = vpack.c.b16 %v1689, %v1683
    %v2782 = vpack.c.b16 %v1696, %v1690
    %v2783 = vpack.c.b16 %v1697, %v1691
    %v2784 = vpack.c.b16 %v1698, %v1692
    %v2785 = vpack.c.b16 %v1699, %v1693
    %v2786 = vpack.c.b16 %v1700, %v1694
    %v2787 = vpack.c.b16 %v1701, %v1695
    %v2788 = vpack.c.b16 %v1708, %v1702
    %v2789 = vpack.c.b16 %v1709, %v1703
    %v2790 = vpack.c.b16 %v1710, %v1704
    %v2791 = vpack.c.b16 %v1711, %v1705
    %v2792 = vpack.c.b16 %v1712, %v1706
    %v2793 = vpack.c.b16 %v1713, %v1707
    %v2794 = vpack.c.b16 %v1720, %v1714
    %v2795 = vpack.c.b16 %v1721, %v1715
    %v2796 = vpack.c.b16 %v1722, %v1716
    %v2797 = vpack.c.b16 %v1723, %v1717
    %v2798 = vpack.c.b16 %v1724, %v1718
    %v2799 = vpack.c.b16 %v1725, %v1719
    %v2800 = vpack.c.b16 %v1732, %v1726
    %v2801 = vpack.c.b16 %v1733, %v1727
    %v2802 = vpack.c.b16 %v1734, %v1728
    %v2803 = vpack.c.b16 %v1735, %v1729
    %v2804 = vpack.c.b16 %v1736, %v1730
    %v2805 = vpack.c.b16 %v1737, %v1731
    %v2806 = vpack.c.b16 %v1744, %v1738
    %v2807 = vpack.c.b16 %v1745, %v1739
    %v2808 = vpack.c.b16 %v1746, %v1740
    %v2809 = vpack.c.b16 %v1747, %v1741
    %v2810 = vpack.c.b16 %v1748, %v1742
    %v2811 = vpack.c.b16 %v1749, %v1743
    %v2812 = vpack.c.b16 %v1756, %v1750
    %v2813 = vpack.c.b16 %v1757, %v1751
    %v2814 = vpack.c.b16 %v1758, %v1752
    %v2815 = vpack.c.b16 %v1759, %v1753
    %v2816 = vpack.c.b16 %v1760, %v1754
    %v2817 = vpack.c.b16 %v1761, %v1755
    %v2818 = vpack.c.b16 %v1768, %v1762
    %v2819 = vpack.c.b16 %v1769, %v1763
    %v2820 = vpack.c.b16 %v1770, %v1764
    %v2821 = vpack.c.b16 %v1771, %v1765
    %v2822 = vpack.c.b16 %v1772, %v1766
    %v2823 = vpack.c.b16 %v1773, %v1767
    %v2824 = vpack.c.b16 %v1780, %v1774
    %v2825 = vpack.c.b16 %v1781, %v1775
    %v2826 = vpack.c.b16 %v1782, %v1776
    %v2827 = vpack.c.b16 %v1783, %v1777
    %v2828 = vpack.c.b16 %v1784, %v1778
    %v2829 = vpack.c.b16 %v1785, %v1779
    %v2830 = vpack.c.b16 %v1792, %v1786
    %v2831 = vpack.c.b16 %v1793, %v1787
    %v2832 = vpack.c.b16 %v1794, %v1788
    %v2833 = vpack.c.b16 %v1795, %v1789
    %v2834 = vpack.c.b16 %v1796, %v1790
    %v2835 = vpack.c.b16 %v1797, %v1791
    %v2836 = vpack.c.b16 %v1804, %v1798
    %v2837 = vpack.c.b16 %v1805, %v1799
    %v2838 = vpack.c.b16 %v1806, %v1800
    %v2839 = vpack.c.b16 %v1807, %v1801
    %v2840 = vpack.c.b16 %v1808, %v1802
    %v2841 = vpack.c.b16 %v1809, %v1803
    %v2842 = vpack.c.b16 %v1816, %v1810
    %v2843 = vpack.c.b16 %v1817, %v1811
    %v2844 = vpack.c.b16 %v1818, %v1812
    %v2845 = vpack.c.b16 %v1819, %v1813
    %v2846 = vpack.c.b16 %v1820, %v1814
    %v2847 = vpack.c.b16 %v1821, %v1815
    %v2848 = vpack.c.b16 %v1828, %v1822
    %v2849 = vpack.c.b16 %v1829, %v1823
    %v2850 = vpack.c.b16 %v1830, %v1824
    %v2851 = vpack.c.b16 %v1831, %v1825
    %v2852 = vpack.c.b16 %v1832, %v1826
    %v2853 = vpack.c.b16 %v1833, %v1827
    %v2854 = vpack.c.b16 %v1840, %v1834
    %v2855 = vpack.c.b16 %v1841, %v1835
    %v2856 = vpack.c.b16 %v1842, %v1836
    %v2857 = vpack.c.b16 %v1843, %v1837
    %v2858 = vpack.c.b16 %v1844, %v1838
    %v2859 = vpack.c.b16 %v1845, %v1839
    %v2860 = vpack.c.b16 %v1852, %v1846
    %v2861 = vpack.c.b16 %v1853, %v1847
    %v2862 = vpack.c.b16 %v1854, %v1848
    %v2863 = vpack.c.b16 %v1855, %v1849
    %v2864 = vpack.c.b16 %v1856, %v1850
    %v2865 = vpack.c.b16 %v1857, %v1851
    %v2866 = vpack.c.b16 %v1864, %v1858
    %v2867 = vpack.c.b16 %v1865, %v1859
    %v2868 = vpack.c.b16 %v1866, %v1860
    %v2869 = vpack.c.b16 %v1867, %v1861
    %v2870 = vpack.c.b16 %v1868, %v1862
    %v2871 = vpack.c.b16 %v1869, %v1863
    %v2872 = vpack.c.b16 %v1876, %v1870
    %v2873 = vpack.c.b16 %v1877, %v1871
    %v2874 = vpack.c.b16 %v1878, %v1872
    %v2875 = vpack.c.b16 %v1879, %v1873
    %v2876 = vpack.c.b16 %v1880, %v1874
    %v2877 = vpack.c.b16 %v1881, %v1875
    %v2878 = vpack.c.b16 %v1888, %v1882
    %v2879 = vpack.c.b16 %v1889, %v1883
    %v2880 = vpack.c.b16 %v1890, %v1884
    %v2881 = vpack.c.b16 %v1891, %v1885
    %v2882 = vpack.c.b16 %v1892, %v1886
    %v2883 = vpack.c.b16 %v1893, %v1887
    %v2884 = vpack.c.b16 %v1900, %v1894
    %v2885 = vpack.c.b16 %v1901, %v1895
    %v2886 = vpack.c.b16 %v1902, %v1896
    %v2887 = vpack.c.b16 %v1903, %v1897
    %v2888 = vpack.c.b16 %v1904, %v1898
    %v2889 = vpack.c.b16 %v1905, %v1899
    %v2890 = vpack.c.b16 %v1912, %v1906
    %v2891 = vpack.c.b16 %v1913, %v1907
    %v2892 = vpack.c.b16 %v1914, %v1908
    %v2893 = vpack.c.b16 %v1915, %v1909
    %v2894 = vpack.c.b16 %v1916, %v1910
    %v2895 = vpack.c.b16 %v1917, %v1911
    %v2896 = vpack.c.b16 %v1924, %v1918
    %v2897 = vpack.c.b16 %v1925, %v1919
    %v2898 = vpack.c.b16 %v1926, %v1920
    %v2899 = vpack.c.b16 %v1927, %v1921
    %v2900 = vpack.c.b16 %v1928, %v1922
    %v2901 = vpack.c.b16 %v1929, %v1923
    %v2902 = vpack.c.b16 %v1936, %v1930
    %v2903 = vpack.c.b16 %v1937, %v1931
    %v2904 = vpack.c.b16 %v1938, %v1932
    %v2905 = vpack.c.b16 %v1939, %v1933
    %v2906 = vpack.c.b16 %v1940, %v1934
    %v2907 = vpack.c.b16 %v1941, %v1935
    %v2908 = vpack.c.b16 %v1948, %v1942
    %v2909 = vpack.c.b16 %v1949, %v1943
    %v2910 = vpack.c.b16 %v1950, %v1944
    %v2911 = vpack.c.b16 %v1951, %v1945
    %v2912 = vpack.c.b16 %v1952, %v1946
    %v2913 = vpack.c.b16 %v1953, %v1947
    %v2914 = vpack.c.b16 %v1960, %v1954
    %v2915 = vpack.c.b16 %v1961, %v1955
    %v2916 = vpack.c.b16 %v1962, %v1956
    %v2917 = vpack.c.b16 %v1963, %v1957
    %v2918 = vpack.c.b16 %v1964, %v1958
    %v2919 = vpack.c.b16 %v1965, %v1959
    %v2920 = vpack.c.b16 %v1972, %v1966
    %v2921 = vpack.c.b16 %v1973, %v1967
    %v2922 = vpack.c.b16 %v1974, %v1968
    %v2923 = vpack.c.b16 %v1975, %v1969
    %v2924 = vpack.c.b16 %v1976, %v1970
    %v2925 = vpack.c.b16 %v1977, %v1971
    %v2926 = vpack.c.b16 %v1984, %v1978
    %v2927 = vpack.c.b16 %v1985, %v1979
    %v2928 = vpack.c.b16 %v1986, %v1980
    %v2929 = vpack.c.b16 %v1987, %v1981
    %v2930 = vpack.c.b16 %v1988, %v1982
    %v2931 = vpack.c.b16 %v1989, %v1983
    %v2932 = vpack.c.b16 %v1996, %v1990
    %v2933 = vpack.c.b16 %v1997, %v1991
    %v2934 = vpack.c.b16 %v1998, %v1992
    %v2935 = vpack.c.b16 %v1999, %v1993
    %v2936 = vpack.c.b16 %v2000, %v1994
    %v2937 = vpack.c.b16 %v2001, %v1995
    %v2938 = vpack.c.b16 %v2008, %v2002
    %v2939 = vpack.c.b16 %v2009, %v2003
    %v2940 = vpack.c.b16 %v2010, %v2004
    %v2941 = vpack.c.b16 %v2011, %v2005
    %v2942 = vpack.c.b16 %v2012, %v2006
    %v2943 = vpack.c.b16 %v2013, %v2007
    %v2944 = vpack.c.b16 %v2020, %v2014
    %v2945 = vpack.c.b16 %v2021, %v2015
    %v2946 = vpack.c.b16 %v2022, %v2016
    %v2947 = vpack.c.b16 %v2023, %v2017
    %v2948 = vpack.c.b16 %v2024, %v2018
    %v2949 = vpack.c.b16 %v2025, %v2019
    %v2950 = vpack.c.b16 %v2032, %v2026
    %v2951 = vpack.c.b16 %v2033, %v2027
    %v2952 = vpack.c.b16 %v2034, %v2028
    %v2953 = vpack.c.b16 %v2035, %v2029
    %v2954 = vpack.c.b16 %v2036, %v2030
    %v2955 = vpack.c.b16 %v2037, %v2031
    %v2956 = vpack.c.b16 %v2044, %v2038
    %v2957 = vpack.c.b16 %v2045, %v2039
    %v2958 = vpack.c.b16 %v2046, %v2040
    %v2959 = vpack.c.b16 %v2047, %v2041
    %v2960 = vpack.c.b16 %v2048, %v2042
    %v2961 = vpack.c.b16 %v2049, %v2043
    %v2962 = vpack.c.b16 %v2056, %v2050
    %v2963 = vpack.c.b16 %v2057, %v2051
    %v2964 = vpack.c.b16 %v2058, %v2052
    %v2965 = vpack.c.b16 %v2059, %v2053
    %v2966 = vpack.c.b16 %v2060, %v2054
    %v2967 = vpack.c.b16 %v2061, %v2055
    %v2968 = vpack.c.b16 %v2068, %v2062
    %v2969 = vpack.c.b16 %v2069, %v2063
    %v2970 = vpack.c.b16 %v2070, %v2064
    %v2971 = vpack.c.b16 %v2071, %v2065
    %v2972 = vpack.c.b16 %v2072, %v2066
    %v2973 = vpack.c.b16 %v2073, %v2067
    %v2974 = vpack.c.b16 %v2080, %v2074
    %v2975 = vpack.c.b16 %v2081, %v2075
    %v2976 = vpack.c.b16 %v2082, %v2076
    %v2977 = vpack.c.b16 %v2083, %v2077
    %v2978 = vpack.c.b16 %v2084, %v2078
    %v2979 = vpack.c.b16 %v2085, %v2079
    %v2980 = vpack.c.b16 %v2092, %v2086
    %v2981 = vpack.c.b16 %v2093, %v2087
    %v2982 = vpack.c.b16 %v2094, %v2088
    %v2983 = vpack.c.b16 %v2095, %v2089
    %v2984 = vpack.c.b16 %v2096, %v2090
    %v2985 = vpack.c.b16 %v2097, %v2091
    %v2986 = vpack.c.b16 %v2104, %v2098
    %v2987 = vpack.c.b16 %v2105, %v2099
    %v2988 = vpack.c.b16 %v2106, %v2100
    %v2989 = vpack.c.b16 %v2107, %v2101
    %v2990 = vpack.c.b16 %v2108, %v2102
    %v2991 = vpack.c.b16 %v2109, %v2103
    %v2992 = vpack.c.b16 %v2116, %v2110
    %v2993 = vpack.c.b16 %v2117, %v2111
    %v2994 = vpack.c.b16 %v2118, %v2112
    %v2995 = vpack.c.b16 %v2119, %v2113
    %v2996 = vpack.c.b16 %v2120, %v2114
    %v2997 = vpack.c.b16 %v2121, %v2115
    %v2998 = vpack.c.b16 %v2128, %v2122
    %v2999 = vpack.c.b16 %v2129, %v2123
    %v3000 = vpack.c.b16 %v2130, %v2124
    %v3001 = vpack.c.b16 %v2131, %v2125
    %v3002 = vpack.c.b16 %v2132, %v2126
    %v3003 = vpack.c.b16 %v2133, %v2127
    %v3004 = vpack.c.b16 %v2140, %v2134
    %v3005 = vpack.c.b16 %v2141, %v2135
    %v3006 = vpack.c.b16 %v2142, %v2136
    %v3007 = vpack.c.b16 %v2143, %v2137
    %v3008 = vpack.c.b16 %v2144, %v2138
    %v3009 = vpack.c.b16 %v2145, %v2139
    %v3010 = vpack.c.b16 %v2152, %v2146
    %v3011 = vpack.c.b16 %v2153, %v2147
    %v3012 = vpack.c.b16 %v2154, %v2148
    %v3013 = vpack.c.b16 %v2155, %v2149
    %v3014 = vpack.c.b16 %v2156, %v2150
    %v3015 = vpack.c.b16 %v2157, %v2151
    %v3016 = vpack.c.b16 %v2164, %v2158
    %v3017 = vpack.c.b16 %v2165, %v2159
    %v3018 = vpack.c.b16 %v2166, %v2160
    %v3019 = vpack.c.b16 %v2167, %v2161
    %v3020 = vpack.c.b16 %v2168, %v2162
    %v3021 = vpack.c.b16 %v2169, %v2163
    %v3022 = vpack.c.b16 %v2176, %v2170
    %v3023 = vpack.c.b16 %v2177, %v2171
    %v3024 = vpack.c.b16 %v2178, %v2172
    %v3025 = vpack.c.b16 %v2179, %v2173
    %v3026 = vpack.c.b16 %v2180, %v2174
    %v3027 = vpack.c.b16 %v2181, %v2175
    %v3028 = vpack.c.b16 %v2188, %v2182
    %v3029 = vpack.c.b16 %v2189, %v2183
    %v3030 = vpack.c.b16 %v2190, %v2184
    %v3031 = vpack.c.b16 %v2191, %v2185
    %v3032 = vpack.c.b16 %v2192, %v2186
    %v3033 = vpack.c.b16 %v2193, %v2187
    %v3034 = vpack.c.b16 %v2200, %v2194
    %v3035 = vpack.c.b16 %v2201, %v2195
    %v3036 = vpack.c.b16 %v2202, %v2196
    %v3037 = vpack.c.b16 %v2203, %v2197
    %v3038 = vpack.c.b16 %v2204, %v2198
    %v3039 = vpack.c.b16 %v2205, %v2199
    %v3040 = vpack.c.b16 %v2212, %v2206
    %v3041 = vpack.c.b16 %v2213, %v2207
    %v3042 = vpack.c.b16 %v2214, %v2208
    %v3043 = vpack.c.b16 %v2215, %v2209
    %v3044 = vpack.c.b16 %v2216, %v2210
    %v3045 = vpack.c.b16 %v2217, %v2211
    %v3046 = vpack.c.b16 %v2224, %v2218
    %v3047 = vpack.c.b16 %v2225, %v2219
    %v3048 = vpack.c.b16 %v2226, %v2220
    %v3049 = vpack.c.b16 %v2227, %v2221
    %v3050 = vpack.c.b16 %v2228, %v2222
    %v3051 = vpack.c.b16 %v2229, %v2223
    %v3052 = vpack.c.b16 %v2236, %v2230
    %v3053 = vpack.c.b16 %v2237, %v2231
    %v3054 = vpack.c.b16 %v2238, %v2232
    %v3055 = vpack.c.b16 %v2239, %v2233
    %v3056 = vpack.c.b16 %v2240, %v2234
    %v3057 = vpack.c.b16 %v2241, %v2235
    %v3058 = vpack.c.b16 %v2248, %v2242
    %v3059 = vpack.c.b16 %v2249, %v2243
    %v3060 = vpack.c.b16 %v2250, %v2244
    %v3061 = vpack.c.b16 %v2251, %v2245
    %v3062 = vpack.c.b16 %v2252, %v2246
    %v3063 = vpack.c.b16 %v2253, %v2247
    %v3064 = vpack.c.b16 %v2260, %v2254
    %v3065 = vpack.c.b16 %v2261, %v2255
    %v3066 = vpack.c.b16 %v2262, %v2256
    %v3067 = vpack.c.b16 %v2263, %v2257
    %v3068 = vpack.c.b16 %v2264, %v2258
    %v3069 = vpack.c.b16 %v2265, %v2259
    %v3070 = vpack.c.b16 %v2272, %v2266
    %v3071 = vpack.c.b16 %v2273, %v2267
    %v3072 = vpack.c.b16 %v2274, %v2268
    %v3073 = vpack.c.b16 %v2275, %v2269
    %v3074 = vpack.c.b16 %v2276, %v2270
    %v3075 = vpack.c.b16 %v2277, %v2271
    %v3076 = vpack.c.b16 %v2284, %v2278
    %v3077 = vpack.c.b16 %v2285, %v2279
    %v3078 = vpack.c.b16 %v2286, %v2280
    %v3079 = vpack.c.b16 %v2287, %v2281
    %v3080 = vpack.c.b16 %v2288, %v2282
    %v3081 = vpack.c.b16 %v2289, %v2283
    %v3082 = vpack.c.b16 %v2296, %v2290
    %v3083 = vpack.c.b16 %v2297, %v2291
    %v3084 = vpack.c.b16 %v2298, %v2292
    %v3085 = vpack.c.b16 %v2299, %v2293
    %v3086 = vpack.c.b16 %v2300, %v2294
    %v3087 = vpack.c.b16 %v2301, %v2295
    %v3088 = vpack.c.b16 %v2308, %v2302
    %v3089 = vpack.c.b16 %v2309, %v2303
    %v3090 = vpack.c.b16 %v2310, %v2304
    %v3091 = vpack.c.b16 %v2311, %v2305
    %v3092 = vpack.c.b16 %v2312, %v2306
    %v3093 = vpack.c.b16 %v2313, %v2307
    %v3094 = vpack.c.b16 %v2320, %v2314
    %v3095 = vpack.c.b16 %v2321, %v2315
    %v3096 = vpack.c.b16 %v2322, %v2316
    %v3097 = vpack.c.b16 %v2323, %v2317
    %v3098 = vpack.c.b16 %v2324, %v2318
    %v3099 = vpack.c.b16 %v2325, %v2319
    %v3100 = vpack.c.b16 %v2332, %v2326
    %v3101 = vpack.c.b16 %v2333, %v2327
    %v3102 = vpack.c.b16 %v2334, %v2328
    %v3103 = vpack.c.b16 %v2335, %v2329
    %v3104 = vpack.c.b16 %v2336, %v2330
    %v3105 = vpack.c.b16 %v2337, %v2331
    %v3106 = vpack.c.b16 %v2344, %v2338
    %v3107 = vpack.c.b16 %v2345, %v2339
    %v3108 = vpack.c.b16 %v2346, %v2340
    %v3109 = vpack.c.b16 %v2347, %v2341
    %v3110 = vpack.c.b16 %v2348, %v2342
    %v3111 = vpack.c.b16 %v2349, %v2343
    %v3112 = vpack.c.b16 %v2356, %v2350
    %v3113 = vpack.c.b16 %v2357, %v2351
    %v3114 = vpack.c.b16 %v2358, %v2352
    %v3115 = vpack.c.b16 %v2359, %v2353
    %v3116 = vpack.c.b16 %v2360, %v2354
    %v3117 = vpack.c.b16 %v2361, %v2355
    %v3118 = vpack.c.b16 %v2368, %v2362
    %v3119 = vpack.c.b16 %v2369, %v2363
    %v3120 = vpack.c.b16 %v2370, %v2364
    %v3121 = vpack.c.b16 %v2371, %v2365
    %v3122 = vpack.c.b16 %v2372, %v2366
    %v3123 = vpack.c.b16 %v2373, %v2367
    %v3124 = vpack.c.b16 %v2380, %v2374
    %v3125 = vpack.c.b16 %v2381, %v2375
    %v3126 = vpack.c.b16 %v2382, %v2376
    %v3127 = vpack.c.b16 %v2383, %v2377
    %v3128 = vpack.c.b16 %v2384, %v2378
    %v3129 = vpack.c.b16 %v2385, %v2379
    %v3130 = vpack.c.b16 %v2392, %v2386
    %v3131 = vpack.c.b16 %v2393, %v2387
    %v3132 = vpack.c.b16 %v2394, %v2388
    %v3133 = vpack.c.b16 %v2395, %v2389
    %v3134 = vpack.c.b16 %v2396, %v2390
    %v3135 = vpack.c.b16 %v2397, %v2391
    %v3136 = vpack.c.b16 %v2404, %v2398
    %v3137 = vpack.c.b16 %v2405, %v2399
    %v3138 = vpack.c.b16 %v2406, %v2400
    %v3139 = vpack.c.b16 %v2407, %v2401
    %v3140 = vpack.c.b16 %v2408, %v2402
    %v3141 = vpack.c.b16 %v2409, %v2403
    %v3142 = vpack.c.b16 %v2416, %v2410
    %v3143 = vpack.c.b16 %v2417, %v2411
    %v3144 = vpack.c.b16 %v2418, %v2412
    %v3145 = vpack.c.b16 %v2419, %v2413
    %v3146 = vpack.c.b16 %v2420, %v2414
    %v3147 = vpack.c.b16 %v2421, %v2415
    %v3148 = vpack.c.b16 %v2428, %v2422
    %v3149 = vpack.c.b16 %v2429, %v2423
    %v3150 = vpack.c.b16 %v2430, %v2424
    %v3151 = vpack.c.b16 %v2431, %v2425
    %v3152 = vpack.c.b16 %v2432, %v2426
    %v3153 = vpack.c.b16 %v2433, %v2427
    %v3154 = vpack.c.b16 %v2440, %v2434
    %v3155 = vpack.c.b16 %v2441, %v2435
    %v3156 = vpack.c.b16 %v2442, %v2436
    %v3157 = vpack.c.b16 %v2443, %v2437
    %v3158 = vpack.c.b16 %v2444, %v2438
    %v3159 = vpack.c.b16 %v2445, %v2439
    %v3160 = vpack.c.b16 %v2452, %v2446
    %v3161 = vpack.c.b16 %v2453, %v2447
    %v3162 = vpack.c.b16 %v2454, %v2448
    %v3163 = vpack.c.b16 %v2455, %v2449
    %v3164 = vpack.c.b16 %v2456, %v2450
    %v3165 = vpack.c.b16 %v2457, %v2451
    %v3166 = vpack.c.b16 %v2464, %v2458
    %v3167 = vpack.c.b16 %v2465, %v2459
    %v3168 = vpack.c.b16 %v2466, %v2460
    %v3169 = vpack.c.b16 %v2467, %v2461
    %v3170 = vpack.c.b16 %v2468, %v2462
    %v3171 = vpack.c.b16 %v2469, %v2463
    %v3172 = vpack.c.b16 %v2476, %v2470
    %v3173 = vpack.c.b16 %v2477, %v2471
    %v3174 = vpack.c.b16 %v2478, %v2472
    %v3175 = vpack.c.b16 %v2479, %v2473
    %v3176 = vpack.c.b16 %v2480, %v2474
    %v3177 = vpack.c.b16 %v2481, %v2475
    %v3178 = vpack.c.b16 %v2488, %v2482
    %v3179 = vpack.c.b16 %v2489, %v2483
    %v3180 = vpack.c.b16 %v2490, %v2484
    %v3181 = vpack.c.b16 %v2491, %v2485
    %v3182 = vpack.c.b16 %v2492, %v2486
    %v3183 = vpack.c.b16 %v2493, %v2487
    %v3184 = vpack.c.b16 %v2500, %v2494
    %v3185 = vpack.c.b16 %v2501, %v2495
    %v3186 = vpack.c.b16 %v2502, %v2496
    %v3187 = vpack.c.b16 %v2503, %v2497
    %v3188 = vpack.c.b16 %v2504, %v2498
    %v3189 = vpack.c.b16 %v2505, %v2499
    %v3190 = vpack.c.b16 %v2512, %v2506
    %v3191 = vpack.c.b16 %v2513, %v2507
    %v3192 = vpack.c.b16 %v2514, %v2508
    %v3193 = vpack.c.b16 %v2515, %v2509
    %v3194 = vpack.c.b16 %v2516, %v2510
    %v3195 = vpack.c.b16 %v2517, %v2511
    %v3196 = vpack.c.b16 %v2524, %v2518
    %v3197 = vpack.c.b16 %v2525, %v2519
    %v3198 = vpack.c.b16 %v2526, %v2520
    %v3199 = vpack.c.b16 %v2527, %v2521
    %v3200 = vpack.c.b16 %v2528, %v2522
    %v3201 = vpack.c.b16 %v2529, %v2523
    %v3202 = vpack.c.b16 %v2536, %v2530
    %v3203 = vpack.c.b16 %v2537, %v2531
    %v3204 = vpack.c.b16 %v2538, %v2532
    %v3205 = vpack.c.b16 %v2539, %v2533
    %v3206 = vpack.c.b16 %v2540, %v2534
    %v3207 = vpack.c.b16 %v2541, %v2535
    %v3208 = vpack.c.b16 %v2548, %v2542
    %v3209 = vpack.c.b16 %v2549, %v2543
    %v3210 = vpack.c.b16 %v2550, %v2544
    %v3211 = vpack.c.b16 %v2551, %v2545
    %v3212 = vpack.c.b16 %v2552, %v2546
    %v3213 = vpack.c.b16 %v2553, %v2547
    %v3214 = vpack.c.b16 %v2560, %v2554
    %v3215 = vpack.c.b16 %v2561, %v2555
    %v3216 = vpack.c.b16 %v2562, %v2556
    %v3217 = vpack.c.b16 %v2563, %v2557
    %v3218 = vpack.c.b16 %v2564, %v2558
    %v3219 = vpack.c.b16 %v2565, %v2559
    %v3220 = vpack.c.b16 %v2572, %v2566
    %v3221 = vpack.c.b16 %v2573, %v2567
    %v3222 = vpack.c.b16 %v2574, %v2568
    %v3223 = vpack.c.b16 %v2575, %v2569
    %v3224 = vpack.c.b16 %v2576, %v2570
    %v3225 = vpack.c.b16 %v2577, %v2571
    %v3226 = vpack.c.b16 %v2584, %v2578
    %v3227 = vpack.c.b16 %v2585, %v2579
    %v3228 = vpack.c.b16 %v2586, %v2580
    %v3229 = vpack.c.b16 %v2587, %v2581
    %v3230 = vpack.c.b16 %v2588, %v2582
    %v3231 = vpack.c.b16 %v2589, %v2583
    %v3232 = vpack.c.b16 %v2596, %v2590
    %v3233 = vpack.c.b16 %v2597, %v2591
    %v3234 = vpack.c.b16 %v2598, %v2592
    %v3235 = vpack.c.b16 %v2599, %v2593
    %v3236 = vpack.c.b16 %v2600, %v2594
    %v3237 = vpack.c.b16 %v2601, %v2595
    %v3238 = vpack.c.b16 %v2608, %v2602
    %v3239 = vpack.c.b16 %v2609, %v2603
    %v3240 = vpack.c.b16 %v2610, %v2604
    %v3241 = vpack.c.b16 %v2611, %v2605
    %v3242 = vpack.c.b16 %v2612, %v2606
    %v3243 = vpack.c.b16 %v2613, %v2607
    %v3244 = vpack.c.b16 %v2620, %v2614
    %v3245 = vpack.c.b16 %v2621, %v2615
    %v3246 = vpack.c.b16 %v2622, %v2616
    %v3247 = vpack.c.b16 %v2623, %v2617
    %v3248 = vpack.c.b16 %v2624, %v2618
    %v3249 = vpack.c.b16 %v2625, %v2619
    %v3250 = vpack.c.b16 %v2632, %v2626
    %v3251 = vpack.c.b16 %v2633, %v2627
    %v3252 = vpack.c.b16 %v2634, %v2628
    %v3253 = vpack.c.b16 %v2635, %v2629
    %v3254 = vpack.c.b16 %v2636, %v2630
    %v3255 = vpack.c.b16 %v2637, %v2631
    %v3256 = vpack.c.b16 %v2644, %v2638
    %v3257 = vpack.c.b16 %v2645, %v2639
    %v3258 = vpack.c.b16 %v2646, %v2640
    %v3259 = vpack.c.b16 %v2647, %v2641
    %v3260 = vpack.c.b16 %v2648, %v2642
    %v3261 = vpack.c.b16 %v2649, %v2643
    %v3262 = vpack.c.b16 %v2656, %v2650
    %v3263 = vpack.c.b16 %v2657, %v2651
    %v3264 = vpack.c.b16 %v2658, %v2652
    %v3265 = vpack.c.b16 %v2659, %v2653
    %v3266 = vpack.c.b16 %v2660, %v2654
    %v3267 = vpack.c.b16 %v2661, %v2655
    %v3268 = vpack.c.b16 %v2668, %v2662
    %v3269 = vpack.c.b16 %v2669, %v2663
    %v3270 = vpack.c.b16 %v2670, %v2664
    %v3271 = vpack.c.b16 %v2671, %v2665
    %v3272 = vpack.c.b16 %v2672, %v2666
    %v3273 = vpack.c.b16 %v2673, %v2667
    %v3274 = vpack.c.b16 %v2680, %v2674
    %v3275 = vpack.c.b16 %v2681, %v2675
    %v3276 = vpack.c.b16 %v2682, %v2676
    %v3277 = vpack.c.b16 %v2683, %v2677
    %v3278 = vpack.c.b16 %v2684, %v2678
    %v3279 = vpack.c.b16 %v2685, %v2679
    %v3280 = vpack.c.b16 %v2692, %v2686
    %v3281 = vpack.c.b16 %v2693, %v2687
    %v3282 = vpack.c.b16 %v2694, %v2688
    %v3283 = vpack.c.b16 %v2695, %v2689
    %v3284 = vpack.c.b16 %v2696, %v2690
    %v3285 = vpack.c.b16 %v2697, %v2691
    %v3286 = vpack.c.b16 %v2704, %v2698
    %v3287 = vpack.c.b16 %v2705, %v2699
    %v3288 = vpack.c.b16 %v2706, %v2700
    %v3289 = vpack.c.b16 %v2707, %v2701
    %v3290 = vpack.c.b16 %v2708, %v2702
    %v3291 = vpack.c.b16 %v2709, %v2703
    %v3292 = vpack.c.b16 %v2716, %v2710
    %v3293 = vpack.c.b16 %v2717, %v2711
    %v3294 = vpack.c.b16 %v2718, %v2712
    %v3295 = vpack.c.b16 %v2719, %v2713
    %v3296 = vpack.c.b16 %v2720, %v2714
    %v3297 = vpack.c.b16 %v2721, %v2715
    %3874 = vmatprep.subr.bf16.mxu0 %v2723
    %3875 = vmatpush1.bf16.msra.mxu0 %v2722
    %3876 = vmatprep.subr.bf16.mxu0 %v2729
    %3877 = vmatpush1.bf16.msra.mxu0 %v2728
    %3878 = vmatprep.subr.bf16.mxu0 %v2735
    %3879 = vmatpush1.bf16.msra.mxu0 %v2734
    %3880 = vmatprep.subr.bf16.mxu0 %v2741
    %3881 = vmatpush1.bf16.msra.mxu0 %v2740
    %3882 = vmatprep.subr.bf16.mxu0 %v2747
    %3883 = vmatpush1.bf16.msra.mxu0 %v2746
    %3884 = vmatprep.subr.bf16.mxu0 %v2753
    %3885 = vmatpush1.bf16.msra.mxu0 %v2752
    %3886 = vmatprep.subr.bf16.mxu0 %v2759
    %3887 = vmatpush1.bf16.msra.mxu0 %v2758
    %3888 = vmatprep.subr.bf16.mxu0 %v2765
    %3889 = vmatpush1.bf16.msra.mxu0 %v2764
    %3890 = vmatprep.subr.bf16.mxu0 %v2771
    %3891 = vmatpush1.bf16.msra.mxu0 %v2770
    %3892 = vmatprep.subr.bf16.mxu0 %v2777
    %3893 = vmatpush1.bf16.msra.mxu0 %v2776
    %3894 = vmatprep.subr.bf16.mxu0 %v2783
    %3895 = vmatpush1.bf16.msra.mxu0 %v2782
    %3896 = vmatprep.subr.bf16.mxu0 %v2789
    %3897 = vmatpush1.bf16.msra.mxu0 %v2788
    %3898 = vmatprep.subr.bf16.mxu0 %v2795
    %3899 = vmatpush1.bf16.msra.mxu0 %v2794
    %3900 = vmatprep.subr.bf16.mxu0 %v2801
    %3901 = vmatpush1.bf16.msra.mxu0 %v2800
    %3902 = vmatprep.subr.bf16.mxu0 %v2807
    %3903 = vmatpush1.bf16.msra.mxu0 %v2806
    %3904 = vmatprep.subr.bf16.mxu0 %v2813
    %3905 = vmatpush1.bf16.msra.mxu0 %v2812
    %3906 = vmatprep.mubr.bf16.mxu0 %v375
    %3907 = vmatmul.mubr.bf16.gmra.mrb[0].mxu0 %v374
    %v3908 = vpop.f32.mrb[0].mxu0
    %v3909 = vadd.f32 %v967, %v3908
    %v3910 = vpop.f32.mrb[0].mxu0
    %v3911 = vadd.f32 %v971, %v3910
    %v3912 = vpop.f32.mrb[0].mxu0
    %v3913 = vadd.f32 %v967, %v3912
    %v3914 = vpop.f32.mrb[0].mxu0
    %v3915 = vadd.f32 %v971, %v3914
    %3916 = vdwg.mxu0
    %3917 = vmatprep.subr.bf16.mxu0 %v2819
    %3918 = vmatpush1.bf16.msra.mxu0 %v2818
    %3919 = vmatprep.subr.bf16.mxu0 %v2825
    %3920 = vmatpush1.bf16.msra.mxu0 %v2824
    %3921 = vmatprep.subr.bf16.mxu0 %v2831
    %3922 = vmatpush1.bf16.msra.mxu0 %v2830
    %3923 = vmatprep.subr.bf16.mxu0 %v2837
    %3924 = vmatpush1.bf16.msra.mxu0 %v2836
    %3925 = vmatprep.subr.bf16.mxu0 %v2843
    %3926 = vmatpush1.bf16.msra.mxu0 %v2842
    %3927 = vmatprep.subr.bf16.mxu0 %v2849
    %3928 = vmatpush1.bf16.msra.mxu0 %v2848
    %3929 = vmatprep.subr.bf16.mxu0 %v2855
    %3930 = vmatpush1.bf16.msra.mxu0 %v2854
    %3931 = vmatprep.subr.bf16.mxu0 %v2861
    %3932 = vmatpush1.bf16.msra.mxu0 %v2860
    %3933 = vmatprep.subr.bf16.mxu0 %v2867
    %3934 = vmatpush1.bf16.msra.mxu0 %v2866
    %3935 = vmatprep.subr.bf16.mxu0 %v2873
    %3936 = vmatpush1.bf16.msra.mxu0 %v2872
    %3937 = vmatprep.subr.bf16.mxu0 %v2879
    %3938 = vmatpush1.bf16.msra.mxu0 %v2878
    %3939 = vmatprep.subr.bf16.mxu0 %v2885
    %3940 = vmatpush1.bf16.msra.mxu0 %v2884
    %3941 = vmatprep.subr.bf16.mxu0 %v2891
    %3942 = vmatpush1.bf16.msra.mxu0 %v2890
    %3943 = vmatprep.subr.bf16.mxu0 %v2897
    %3944 = vmatpush1.bf16.msra.mxu0 %v2896
    %3945 = vmatprep.subr.bf16.mxu0 %v2903
    %3946 = vmatpush1.bf16.msra.mxu0 %v2902
    %3947 = vmatprep.subr.bf16.mxu0 %v2909
    %3948 = vmatpush1.bf16.msra.mxu0 %v2908
    %3949 = vmatprep.mubr.bf16.mxu0 %v377
    %3950 = vmatmul.mubr.bf16.gmra.mrb[0].mxu0 %v376
    %v3951 = vpop.f32.mrb[0].mxu0
    %v3952 = vadd.f32 %v3909, %v3951
    %v3953 = vpop.f32.mrb[0].mxu0
    %v3954 = vadd.f32 %v3911, %v3953
    %v3955 = vpop.f32.mrb[0].mxu0
    %v3956 = vadd.f32 %v3913, %v3955
    %v3957 = vpop.f32.mrb[0].mxu0
    %v3958 = vadd.f32 %v3915, %v3957
    %3959 = vdwg.mxu0
    %3960 = vmatprep.subr.bf16.mxu0 %v2915
    %3961 = vmatpush1.bf16.msra.mxu0 %v2914
    %3962 = vmatprep.subr.bf16.mxu0 %v2921
    %3963 = vmatpush1.bf16.msra.mxu0 %v2920
    %3964 = vmatprep.subr.bf16.mxu0 %v2927
    %3965 = vmatpush1.bf16.msra.mxu0 %v2926
    %3966 = vmatprep.subr.bf16.mxu0 %v2933
    %3967 = vmatpush1.bf16.msra.mxu0 %v2932
    %3968 = vmatprep.subr.bf16.mxu0 %v2939
    %3969 = vmatpush1.bf16.msra.mxu0 %v2938
    %3970 = vmatprep.subr.bf16.mxu0 %v2945
    %3971 = vmatpush1.bf16.msra.mxu0 %v2944
    %3972 = vmatprep.subr.bf16.mxu0 %v2951
    %3973 = vmatpush1.bf16.msra.mxu0 %v2950
    %3974 = vmatprep.subr.bf16.mxu0 %v2957
    %3975 = vmatpush1.bf16.msra.mxu0 %v2956
    %3976 = vmatprep.subr.bf16.mxu0 %v2963
    %3977 = vmatpush1.bf16.msra.mxu0 %v2962
    %3978 = vmatprep.subr.bf16.mxu0 %v2969
    %3979 = vmatpush1.bf16.msra.mxu0 %v2968
    %3980 = vmatprep.subr.bf16.mxu0 %v2975
    %3981 = vmatpush1.bf16.msra.mxu0 %v2974
    %3982 = vmatprep.subr.bf16.mxu0 %v2981
    %3983 = vmatpush1.bf16.msra.mxu0 %v2980
    %3984 = vmatprep.subr.bf16.mxu0 %v2987
    %3985 = vmatpush1.bf16.msra.mxu0 %v2986
    %3986 = vmatprep.subr.bf16.mxu0 %v2993
    %3987 = vmatpush1.bf16.msra.mxu0 %v2992
    %3988 = vmatprep.subr.bf16.mxu0 %v2999
    %3989 = vmatpush1.bf16.msra.mxu0 %v2998
    %3990 = vmatprep.subr.bf16.mxu0 %v3005
    %3991 = vmatpush1.bf16.msra.mxu0 %v3004
    %3992 = vmatprep.mubr.bf16.mxu0 %v379
    %3993 = vmatmul.mubr.bf16.gmra.mrb[0].mxu0 %v378
    %v3994 = vpop.f32.mrb[0].mxu0
    %v3995 = vadd.f32 %v3952, %v3994
    %v3996 = vpop.f32.mrb[0].mxu0
    %v3997 = vadd.f32 %v3954, %v3996
    %v3998 = vpop.f32.mrb[0].mxu0
    %v3999 = vadd.f32 %v3956, %v3998
    %v4000 = vpop.f32.mrb[0].mxu0
    %v4001 = vadd.f32 %v3958, %v4000
    %4002 = vdwg.mxu0
    %4003 = vmatprep.subr.bf16.mxu0 %v3011
    %4004 = vmatpush1.bf16.msra.mxu0 %v3010
    %4005 = vmatprep.subr.bf16.mxu0 %v3017
    %4006 = vmatpush1.bf16.msra.mxu0 %v3016
    %4007 = vmatprep.subr.bf16.mxu0 %v3023
    %4008 = vmatpush1.bf16.msra.mxu0 %v3022
    %4009 = vmatprep.subr.bf16.mxu0 %v3029
    %4010 = vmatpush1.bf16.msra.mxu0 %v3028
    %4011 = vmatprep.subr.bf16.mxu0 %v3035
    %4012 = vmatpush1.bf16.msra.mxu0 %v3034
    %4013 = vmatprep.subr.bf16.mxu0 %v3041
    %4014 = vmatpush1.bf16.msra.mxu0 %v3040
    %4015 = vmatprep.subr.bf16.mxu0 %v3047
    %4016 = vmatpush1.bf16.msra.mxu0 %v3046
    %4017 = vmatprep.subr.bf16.mxu0 %v3053
    %4018 = vmatpush1.bf16.msra.mxu0 %v3052
    %4019 = vmatprep.subr.bf16.mxu0 %v3059
    %4020 = vmatpush1.bf16.msra.mxu0 %v3058
    %4021 = vmatprep.subr.bf16.mxu0 %v3065
    %4022 = vmatpush1.bf16.msra.mxu0 %v3064
    %4023 = vmatprep.subr.bf16.mxu0 %v3071
    %4024 = vmatpush1.bf16.msra.mxu0 %v3070
    %4025 = vmatprep.subr.bf16.mxu0 %v3077
    %4026 = vmatpush1.bf16.msra.mxu0 %v3076
    %4027 = vmatprep.subr.bf16.mxu0 %v3083
    %4028 = vmatpush1.bf16.msra.mxu0 %v3082
    %4029 = vmatprep.subr.bf16.mxu0 %v3089
    %4030 = vmatpush1.bf16.msra.mxu0 %v3088
    %4031 = vmatprep.subr.bf16.mxu0 %v3095
    %4032 = vmatpush1.bf16.msra.mxu0 %v3094
    %4033 = vmatprep.subr.bf16.mxu0 %v3101
    %4034 = vmatpush1.bf16.msra.mxu0 %v3100
    %4035 = vmatprep.mubr.bf16.mxu0 %v381
    %4036 = vmatmul.mubr.bf16.gmra.mrb[0].mxu0 %v380
    %v4037 = vpop.f32.mrb[0].mxu0
    %v4038 = vadd.f32 %v3995, %v4037
    %v4039 = vpop.f32.mrb[0].mxu0
    %v4040 = vadd.f32 %v3997, %v4039
    %v4041 = vpop.f32.mrb[0].mxu0
    %v4042 = vadd.f32 %v3999, %v4041
    %v4043 = vpop.f32.mrb[0].mxu0
    %v4044 = vadd.f32 %v4001, %v4043
    %4045 = vdwg.mxu0
    %4046 = vmatprep.subr.bf16.mxu0 %v3107
    %4047 = vmatpush1.bf16.msra.mxu0 %v3106
    %4048 = vmatprep.subr.bf16.mxu0 %v3113
    %4049 = vmatpush1.bf16.msra.mxu0 %v3112
    %4050 = vmatprep.subr.bf16.mxu0 %v3119
    %4051 = vmatpush1.bf16.msra.mxu0 %v3118
    %4052 = vmatprep.subr.bf16.mxu0 %v3125
    %4053 = vmatpush1.bf16.msra.mxu0 %v3124
    %4054 = vmatprep.subr.bf16.mxu0 %v3131
    %4055 = vmatpush1.bf16.msra.mxu0 %v3130
    %4056 = vmatprep.subr.bf16.mxu0 %v3137
    %4057 = vmatpush1.bf16.msra.mxu0 %v3136
    %4058 = vmatprep.subr.bf16.mxu0 %v3143
    %4059 = vmatpush1.bf16.msra.mxu0 %v3142
    %4060 = vmatprep.subr.bf16.mxu0 %v3149
    %4061 = vmatpush1.bf16.msra.mxu0 %v3148
    %4062 = vmatprep.subr.bf16.mxu0 %v3155
    %4063 = vmatpush1.bf16.msra.mxu0 %v3154
    %4064 = vmatprep.subr.bf16.mxu0 %v3161
    %4065 = vmatpush1.bf16.msra.mxu0 %v3160
    %4066 = vmatprep.subr.bf16.mxu0 %v3167
    %4067 = vmatpush1.bf16.msra.mxu0 %v3166
    %4068 = vmatprep.subr.bf16.mxu0 %v3173
    %4069 = vmatpush1.bf16.msra.mxu0 %v3172
    %4070 = vmatprep.subr.bf16.mxu0 %v3179
    %4071 = vmatpush1.bf16.msra.mxu0 %v3178
    %4072 = vmatprep.subr.bf16.mxu0 %v3185
    %4073 = vmatpush1.bf16.msra.mxu0 %v3184
    %4074 = vmatprep.subr.bf16.mxu0 %v3191
    %4075 = vmatpush1.bf16.msra.mxu0 %v3190
    %4076 = vmatprep.subr.bf16.mxu0 %v3197
    %4077 = vmatpush1.bf16.msra.mxu0 %v3196
    %4078 = vmatprep.mubr.bf16.mxu0 %v383
    %4079 = vmatmul.mubr.bf16.gmra.mrb[0].mxu0 %v382
    %v4080 = vpop.f32.mrb[0].mxu0
    %v4081 = vadd.f32 %v4038, %v4080
    %v4082 = vpop.f32.mrb[0].mxu0
    %v4083 = vadd.f32 %v4040, %v4082
    %v4084 = vpop.f32.mrb[0].mxu0
    %v4085 = vadd.f32 %v4042, %v4084
    %v4086 = vpop.f32.mrb[0].mxu0
    %v4087 = vadd.f32 %v4044, %v4086
    %4088 = vdwg.mxu0
    %4089 = vmatprep.subr.bf16.mxu0 %v3203
    %4090 = vmatpush1.bf16.msra.mxu0 %v3202
    %4091 = vmatprep.subr.bf16.mxu0 %v3209
    %4092 = vmatpush1.bf16.msra.mxu0 %v3208
    %4093 = vmatprep.subr.bf16.mxu0 %v3215
    %4094 = vmatpush1.bf16.msra.mxu0 %v3214
    %4095 = vmatprep.subr.bf16.mxu0 %v3221
    %4096 = vmatpush1.bf16.msra.mxu0 %v3220
    %4097 = vmatprep.subr.bf16.mxu0 %v3227
    %4098 = vmatpush1.bf16.msra.mxu0 %v3226
    %4099 = vmatprep.subr.bf16.mxu0 %v3233
    %4100 = vmatpush1.bf16.msra.mxu0 %v3232
    %4101 = vmatprep.subr.bf16.mxu0 %v3239
    %4102 = vmatpush1.bf16.msra.mxu0 %v3238
    %4103 = vmatprep.subr.bf16.mxu0 %v3245
    %4104 = vmatpush1.bf16.msra.mxu0 %v3244
    %4105 = vmatprep.subr.bf16.mxu0 %v3251
    %4106 = vmatpush1.bf16.msra.mxu0 %v3250
    %4107 = vmatprep.subr.bf16.mxu0 %v3257
    %4108 = vmatpush1.bf16.msra.mxu0 %v3256
    %4109 = vmatprep.subr.bf16.mxu0 %v3263
    %4110 = vmatpush1.bf16.msra.mxu0 %v3262
    %4111 = vmatprep.subr.bf16.mxu0 %v3269
    %4112 = vmatpush1.bf16.msra.mxu0 %v3268
    %4113 = vmatprep.subr.bf16.mxu0 %v3275
    %4114 = vmatpush1.bf16.msra.mxu0 %v3274
    %4115 = vmatprep.subr.bf16.mxu0 %v3281
    %4116 = vmatpush1.bf16.msra.mxu0 %v3280
    %4117 = vmatprep.subr.bf16.mxu0 %v3287
    %4118 = vmatpush1.bf16.msra.mxu0 %v3286
    %4119 = vmatprep.subr.bf16.mxu0 %v3293
    %4120 = vmatpush1.bf16.msra.mxu0 %v3292
    %4121 = vmatprep.mubr.bf16.mxu0 %v385
    %4122 = vmatmul.mubr.bf16.gmra.mrb[0].mxu0 %v384
    %v4123 = vpop.f32.mrb[0].mxu0
    %v4124 = vadd.f32 %v4081, %v4123
    %v4125 = vpop.f32.mrb[0].mxu0
    %v4126 = vadd.f32 %v4083, %v4125
    %v4127 = vpop.f32.mrb[0].mxu0
    %v4128 = vadd.f32 %v4085, %v4127
    %v4129 = vpop.f32.mrb[0].mxu0
    %v4130 = vadd.f32 %v4087, %v4129
    %4131 = vdwg.mxu0
    %4132 = vmatprep.subr.bf16.mxu0 %v2725
    %4133 = vmatpush1.bf16.msra.mxu0 %v2724
    %4134 = vmatprep.subr.bf16.mxu0 %v2731
    %4135 = vmatpush1.bf16.msra.mxu0 %v2730
    %4136 = vmatprep.subr.bf16.mxu0 %v2737
    %4137 = vmatpush1.bf16.msra.mxu0 %v2736
    %4138 = vmatprep.subr.bf16.mxu0 %v2743
    %4139 = vmatpush1.bf16.msra.mxu0 %v2742
    %4140 = vmatprep.subr.bf16.mxu0 %v2749
    %4141 = vmatpush1.bf16.msra.mxu0 %v2748
    %4142 = vmatprep.subr.bf16.mxu0 %v2755
    %4143 = vmatpush1.bf16.msra.mxu0 %v2754
    %4144 = vmatprep.subr.bf16.mxu0 %v2761
    %4145 = vmatpush1.bf16.msra.mxu0 %v2760
    %4146 = vmatprep.subr.bf16.mxu0 %v2767
    %4147 = vmatpush1.bf16.msra.mxu0 %v2766
    %4148 = vmatprep.subr.bf16.mxu0 %v2773
    %4149 = vmatpush1.bf16.msra.mxu0 %v2772
    %4150 = vmatprep.subr.bf16.mxu0 %v2779
    %4151 = vmatpush1.bf16.msra.mxu0 %v2778
    %4152 = vmatprep.subr.bf16.mxu0 %v2785
    %4153 = vmatpush1.bf16.msra.mxu0 %v2784
    %4154 = vmatprep.subr.bf16.mxu0 %v2791
    %4155 = vmatpush1.bf16.msra.mxu0 %v2790
    %4156 = vmatprep.subr.bf16.mxu0 %v2797
    %4157 = vmatpush1.bf16.msra.mxu0 %v2796
    %4158 = vmatprep.subr.bf16.mxu0 %v2803
    %4159 = vmatpush1.bf16.msra.mxu0 %v2802
    %4160 = vmatprep.subr.bf16.mxu0 %v2809
    %4161 = vmatpush1.bf16.msra.mxu0 %v2808
    %4162 = vmatprep.subr.bf16.mxu0 %v2815
    %4163 = vmatpush1.bf16.msra.mxu0 %v2814
    %4164 = vmatprep.mubr.bf16.mxu0 %v375
    %4165 = vmatmul.mubr.bf16.gmra.mrb[0].mxu0 %v374
    %v4166 = vpop.f32.mrb[0].mxu0
    %v4167 = vadd.f32 %v975, %v4166
    %v4168 = vpop.f32.mrb[0].mxu0
    %v4169 = vadd.f32 %v979, %v4168
    %v4170 = vpop.f32.mrb[0].mxu0
    %v4171 = vadd.f32 %v975, %v4170
    %v4172 = vpop.f32.mrb[0].mxu0
    %v4173 = vadd.f32 %v979, %v4172
    %4174 = vdwg.mxu0
    %4175 = vmatprep.subr.bf16.mxu0 %v2821
    %4176 = vmatpush1.bf16.msra.mxu0 %v2820
    %4177 = vmatprep.subr.bf16.mxu0 %v2827
    %4178 = vmatpush1.bf16.msra.mxu0 %v2826
    %4179 = vmatprep.subr.bf16.mxu0 %v2833
    %4180 = vmatpush1.bf16.msra.mxu0 %v2832
    %4181 = vmatprep.subr.bf16.mxu0 %v2839
    %4182 = vmatpush1.bf16.msra.mxu0 %v2838
    %4183 = vmatprep.subr.bf16.mxu0 %v2845
    %4184 = vmatpush1.bf16.msra.mxu0 %v2844
    %4185 = vmatprep.subr.bf16.mxu0 %v2851
    %4186 = vmatpush1.bf16.msra.mxu0 %v2850
    %4187 = vmatprep.subr.bf16.mxu0 %v2857
    %4188 = vmatpush1.bf16.msra.mxu0 %v2856
    %4189 = vmatprep.subr.bf16.mxu0 %v2863
    %4190 = vmatpush1.bf16.msra.mxu0 %v2862
    %4191 = vmatprep.subr.bf16.mxu0 %v2869
    %4192 = vmatpush1.bf16.msra.mxu0 %v2868
    %4193 = vmatprep.subr.bf16.mxu0 %v2875
    %4194 = vmatpush1.bf16.msra.mxu0 %v2874
    %4195 = vmatprep.subr.bf16.mxu0 %v2881
    %4196 = vmatpush1.bf16.msra.mxu0 %v2880
    %4197 = vmatprep.subr.bf16.mxu0 %v2887
    %4198 = vmatpush1.bf16.msra.mxu0 %v2886
    %4199 = vmatprep.subr.bf16.mxu0 %v2893
    %4200 = vmatpush1.bf16.msra.mxu0 %v2892
    %4201 = vmatprep.subr.bf16.mxu0 %v2899
    %4202 = vmatpush1.bf16.msra.mxu0 %v2898
    %4203 = vmatprep.subr.bf16.mxu0 %v2905
    %4204 = vmatpush1.bf16.msra.mxu0 %v2904
    %4205 = vmatprep.subr.bf16.mxu0 %v2911
    %4206 = vmatpush1.bf16.msra.mxu0 %v2910
    %4207 = vmatprep.mubr.bf16.mxu0 %v377
    %4208 = vmatmul.mubr.bf16.gmra.mrb[0].mxu0 %v376
    %v4209 = vpop.f32.mrb[0].mxu0
    %v4210 = vadd.f32 %v4167, %v4209
    %v4211 = vpop.f32.mrb[0].mxu0
    %v4212 = vadd.f32 %v4169, %v4211
    %v4213 = vpop.f32.mrb[0].mxu0
    %v4214 = vadd.f32 %v4171, %v4213
    %v4215 = vpop.f32.mrb[0].mxu0
    %v4216 = vadd.f32 %v4173, %v4215
    %4217 = vdwg.mxu0
    %4218 = vmatprep.subr.bf16.mxu0 %v2917
    %4219 = vmatpush1.bf16.msra.mxu0 %v2916
    %4220 = vmatprep.subr.bf16.mxu0 %v2923
    %4221 = vmatpush1.bf16.msra.mxu0 %v2922
    %4222 = vmatprep.subr.bf16.mxu0 %v2929
    %4223 = vmatpush1.bf16.msra.mxu0 %v2928
    %4224 = vmatprep.subr.bf16.mxu0 %v2935
    %4225 = vmatpush1.bf16.msra.mxu0 %v2934
    %4226 = vmatprep.subr.bf16.mxu0 %v2941
    %4227 = vmatpush1.bf16.msra.mxu0 %v2940
    %4228 = vmatprep.subr.bf16.mxu0 %v2947
    %4229 = vmatpush1.bf16.msra.mxu0 %v2946
    %4230 = vmatprep.subr.bf16.mxu0 %v2953
    %4231 = vmatpush1.bf16.msra.mxu0 %v2952
    %4232 = vmatprep.subr.bf16.mxu0 %v2959
    %4233 = vmatpush1.bf16.msra.mxu0 %v2958
    %4234 = vmatprep.subr.bf16.mxu0 %v2965
    %4235 = vmatpush1.bf16.msra.mxu0 %v2964
    %4236 = vmatprep.subr.bf16.mxu0 %v2971
    %4237 = vmatpush1.bf16.msra.mxu0 %v2970
    %4238 = vmatprep.subr.bf16.mxu0 %v2977
    %4239 = vmatpush1.bf16.msra.mxu0 %v2976
    %4240 = vmatprep.subr.bf16.mxu0 %v2983
    %4241 = vmatpush1.bf16.msra.mxu0 %v2982
    %4242 = vmatprep.subr.bf16.mxu0 %v2989
    %4243 = vmatpush1.bf16.msra.mxu0 %v2988
    %4244 = vmatprep.subr.bf16.mxu0 %v2995
    %4245 = vmatpush1.bf16.msra.mxu0 %v2994
    %4246 = vmatprep.subr.bf16.mxu0 %v3001
    %4247 = vmatpush1.bf16.msra.mxu0 %v3000
    %4248 = vmatprep.subr.bf16.mxu0 %v3007
    %4249 = vmatpush1.bf16.msra.mxu0 %v3006
    %4250 = vmatprep.mubr.bf16.mxu0 %v379
    %4251 = vmatmul.mubr.bf16.gmra.mrb[0].mxu0 %v378
    %v4252 = vpop.f32.mrb[0].mxu0
    %v4253 = vadd.f32 %v4210, %v4252
    %v4254 = vpop.f32.mrb[0].mxu0
    %v4255 = vadd.f32 %v4212, %v4254
    %v4256 = vpop.f32.mrb[0].mxu0
    %v4257 = vadd.f32 %v4214, %v4256
    %v4258 = vpop.f32.mrb[0].mxu0
    %v4259 = vadd.f32 %v4216, %v4258
    %4260 = vdwg.mxu0
    %4261 = vmatprep.subr.bf16.mxu0 %v3013
    %4262 = vmatpush1.bf16.msra.mxu0 %v3012
    %4263 = vmatprep.subr.bf16.mxu0 %v3019
    %4264 = vmatpush1.bf16.msra.mxu0 %v3018
    %4265 = vmatprep.subr.bf16.mxu0 %v3025
    %4266 = vmatpush1.bf16.msra.mxu0 %v3024
    %4267 = vmatprep.subr.bf16.mxu0 %v3031
    %4268 = vmatpush1.bf16.msra.mxu0 %v3030
    %4269 = vmatprep.subr.bf16.mxu0 %v3037
    %4270 = vmatpush1.bf16.msra.mxu0 %v3036
    %4271 = vmatprep.subr.bf16.mxu0 %v3043
    %4272 = vmatpush1.bf16.msra.mxu0 %v3042
    %4273 = vmatprep.subr.bf16.mxu0 %v3049
    %4274 = vmatpush1.bf16.msra.mxu0 %v3048
    %4275 = vmatprep.subr.bf16.mxu0 %v3055
    %4276 = vmatpush1.bf16.msra.mxu0 %v3054
    %4277 = vmatprep.subr.bf16.mxu0 %v3061
    %4278 = vmatpush1.bf16.msra.mxu0 %v3060
    %4279 = vmatprep.subr.bf16.mxu0 %v3067
    %4280 = vmatpush1.bf16.msra.mxu0 %v3066
    %4281 = vmatprep.subr.bf16.mxu0 %v3073
    %4282 = vmatpush1.bf16.msra.mxu0 %v3072
    %4283 = vmatprep.subr.bf16.mxu0 %v3079
    %4284 = vmatpush1.bf16.msra.mxu0 %v3078
    %4285 = vmatprep.subr.bf16.mxu0 %v3085
    %4286 = vmatpush1.bf16.msra.mxu0 %v3084
    %4287 = vmatprep.subr.bf16.mxu0 %v3091
    %4288 = vmatpush1.bf16.msra.mxu0 %v3090
    %4289 = vmatprep.subr.bf16.mxu0 %v3097
    %4290 = vmatpush1.bf16.msra.mxu0 %v3096
    %4291 = vmatprep.subr.bf16.mxu0 %v3103
    %4292 = vmatpush1.bf16.msra.mxu0 %v3102
    %4293 = vmatprep.mubr.bf16.mxu0 %v381
    %4294 = vmatmul.mubr.bf16.gmra.mrb[0].mxu0 %v380
    %v4295 = vpop.f32.mrb[0].mxu0
    %v4296 = vadd.f32 %v4253, %v4295
    %v4297 = vpop.f32.mrb[0].mxu0
    %v4298 = vadd.f32 %v4255, %v4297
    %v4299 = vpop.f32.mrb[0].mxu0
    %v4300 = vadd.f32 %v4257, %v4299
    %v4301 = vpop.f32.mrb[0].mxu0
    %v4302 = vadd.f32 %v4259, %v4301
    %4303 = vdwg.mxu0
    %4304 = vmatprep.subr.bf16.mxu0 %v3109
    %4305 = vmatpush1.bf16.msra.mxu0 %v3108
    %4306 = vmatprep.subr.bf16.mxu0 %v3115
    %4307 = vmatpush1.bf16.msra.mxu0 %v3114
    %4308 = vmatprep.subr.bf16.mxu0 %v3121
    %4309 = vmatpush1.bf16.msra.mxu0 %v3120
    %4310 = vmatprep.subr.bf16.mxu0 %v3127
    %4311 = vmatpush1.bf16.msra.mxu0 %v3126
    %4312 = vmatprep.subr.bf16.mxu0 %v3133
    %4313 = vmatpush1.bf16.msra.mxu0 %v3132
    %4314 = vmatprep.subr.bf16.mxu0 %v3139
    %4315 = vmatpush1.bf16.msra.mxu0 %v3138
    %4316 = vmatprep.subr.bf16.mxu0 %v3145
    %4317 = vmatpush1.bf16.msra.mxu0 %v3144
    %4318 = vmatprep.subr.bf16.mxu0 %v3151
    %4319 = vmatpush1.bf16.msra.mxu0 %v3150
    %4320 = vmatprep.subr.bf16.mxu0 %v3157
    %4321 = vmatpush1.bf16.msra.mxu0 %v3156
    %4322 = vmatprep.subr.bf16.mxu0 %v3163
    %4323 = vmatpush1.bf16.msra.mxu0 %v3162
    %4324 = vmatprep.subr.bf16.mxu0 %v3169
    %4325 = vmatpush1.bf16.msra.mxu0 %v3168
    %4326 = vmatprep.subr.bf16.mxu0 %v3175
    %4327 = vmatpush1.bf16.msra.mxu0 %v3174
    %4328 = vmatprep.subr.bf16.mxu0 %v3181
    %4329 = vmatpush1.bf16.msra.mxu0 %v3180
    %4330 = vmatprep.subr.bf16.mxu0 %v3187
    %4331 = vmatpush1.bf16.msra.mxu0 %v3186
    %4332 = vmatprep.subr.bf16.mxu0 %v3193
    %4333 = vmatpush1.bf16.msra.mxu0 %v3192
    %4334 = vmatprep.subr.bf16.mxu0 %v3199
    %4335 = vmatpush1.bf16.msra.mxu0 %v3198
    %4336 = vmatprep.mubr.bf16.mxu0 %v383
    %4337 = vmatmul.mubr.bf16.gmra.mrb[0].mxu0 %v382
    %v4338 = vpop.f32.mrb[0].mxu0
    %v4339 = vadd.f32 %v4296, %v4338
    %v4340 = vpop.f32.mrb[0].mxu0
    %v4341 = vadd.f32 %v4298, %v4340
    %v4342 = vpop.f32.mrb[0].mxu0
    %v4343 = vadd.f32 %v4300, %v4342
    %v4344 = vpop.f32.mrb[0].mxu0
    %v4345 = vadd.f32 %v4302, %v4344
    %4346 = vdwg.mxu0
    %4347 = vmatprep.subr.bf16.mxu0 %v3205
    %4348 = vmatpush1.bf16.msra.mxu0 %v3204
    %4349 = vmatprep.subr.bf16.mxu0 %v3211
    %4350 = vmatpush1.bf16.msra.mxu0 %v3210
    %4351 = vmatprep.subr.bf16.mxu0 %v3217
    %4352 = vmatpush1.bf16.msra.mxu0 %v3216
    %4353 = vmatprep.subr.bf16.mxu0 %v3223
    %4354 = vmatpush1.bf16.msra.mxu0 %v3222
    %4355 = vmatprep.subr.bf16.mxu0 %v3229
    %4356 = vmatpush1.bf16.msra.mxu0 %v3228
    %4357 = vmatprep.subr.bf16.mxu0 %v3235
    %4358 = vmatpush1.bf16.msra.mxu0 %v3234
    %4359 = vmatprep.subr.bf16.mxu0 %v3241
    %4360 = vmatpush1.bf16.msra.mxu0 %v3240
    %4361 = vmatprep.subr.bf16.mxu0 %v3247
    %4362 = vmatpush1.bf16.msra.mxu0 %v3246
    %4363 = vmatprep.subr.bf16.mxu0 %v3253
    %4364 = vmatpush1.bf16.msra.mxu0 %v3252
    %4365 = vmatprep.subr.bf16.mxu0 %v3259
    %4366 = vmatpush1.bf16.msra.mxu0 %v3258
    %4367 = vmatprep.subr.bf16.mxu0 %v3265
    %4368 = vmatpush1.bf16.msra.mxu0 %v3264
    %4369 = vmatprep.subr.bf16.mxu0 %v3271
    %4370 = vmatpush1.bf16.msra.mxu0 %v3270
    %4371 = vmatprep.subr.bf16.mxu0 %v3277
    %4372 = vmatpush1.bf16.msra.mxu0 %v3276
    %4373 = vmatprep.subr.bf16.mxu0 %v3283
    %4374 = vmatpush1.bf16.msra.mxu0 %v3282
    %4375 = vmatprep.subr.bf16.mxu0 %v3289
    %4376 = vmatpush1.bf16.msra.mxu0 %v3288
    %4377 = vmatprep.subr.bf16.mxu0 %v3295
    %4378 = vmatpush1.bf16.msra.mxu0 %v3294
    %4379 = vmatprep.mubr.bf16.mxu0 %v385
    %4380 = vmatmul.mubr.bf16.gmra.mrb[0].mxu0 %v384
    %v4381 = vpop.f32.mrb[0].mxu0
    %v4382 = vadd.f32 %v4339, %v4381
    %v4383 = vpop.f32.mrb[0].mxu0
    %v4384 = vadd.f32 %v4341, %v4383
    %v4385 = vpop.f32.mrb[0].mxu0
    %v4386 = vadd.f32 %v4343, %v4385
    %v4387 = vpop.f32.mrb[0].mxu0
    %v4388 = vadd.f32 %v4345, %v4387
    %4389 = vdwg.mxu0
    %4390 = vmatprep.subr.bf16.mxu0 %v2727
    %4391 = vmatpush1.bf16.msra.mxu0 %v2726
    %4392 = vmatprep.subr.bf16.mxu0 %v2733
    %4393 = vmatpush1.bf16.msra.mxu0 %v2732
    %4394 = vmatprep.subr.bf16.mxu0 %v2739
    %4395 = vmatpush1.bf16.msra.mxu0 %v2738
    %4396 = vmatprep.subr.bf16.mxu0 %v2745
    %4397 = vmatpush1.bf16.msra.mxu0 %v2744
    %4398 = vmatprep.subr.bf16.mxu0 %v2751
    %4399 = vmatpush1.bf16.msra.mxu0 %v2750
    %4400 = vmatprep.subr.bf16.mxu0 %v2757
    %4401 = vmatpush1.bf16.msra.mxu0 %v2756
    %4402 = vmatprep.subr.bf16.mxu0 %v2763
    %4403 = vmatpush1.bf16.msra.mxu0 %v2762
    %4404 = vmatprep.subr.bf16.mxu0 %v2769
    %4405 = vmatpush1.bf16.msra.mxu0 %v2768
    %4406 = vmatprep.subr.bf16.mxu0 %v2775
    %4407 = vmatpush1.bf16.msra.mxu0 %v2774
    %4408 = vmatprep.subr.bf16.mxu0 %v2781
    %4409 = vmatpush1.bf16.msra.mxu0 %v2780
    %4410 = vmatprep.subr.bf16.mxu0 %v2787
    %4411 = vmatpush1.bf16.msra.mxu0 %v2786
    %4412 = vmatprep.subr.bf16.mxu0 %v2793
    %4413 = vmatpush1.bf16.msra.mxu0 %v2792
    %4414 = vmatprep.subr.bf16.mxu0 %v2799
    %4415 = vmatpush1.bf16.msra.mxu0 %v2798
    %4416 = vmatprep.subr.bf16.mxu0 %v2805
    %4417 = vmatpush1.bf16.msra.mxu0 %v2804
    %4418 = vmatprep.subr.bf16.mxu0 %v2811
    %4419 = vmatpush1.bf16.msra.mxu0 %v2810
    %4420 = vmatprep.subr.bf16.mxu0 %v2817
    %4421 = vmatpush1.bf16.msra.mxu0 %v2816
    %4422 = vmatprep.mubr.bf16.mxu0 %v375
    %4423 = vmatmul.mubr.bf16.gmra.mrb[0].mxu0 %v374
    %v4424 = vpop.f32.mrb[0].mxu0
    %v4425 = vadd.f32 %v983, %v4424
    %v4426 = vpop.f32.mrb[0].mxu0
    %v4427 = vadd.f32 %v987, %v4426
    %v4428 = vpop.f32.mrb[0].mxu0
    %v4429 = vadd.f32 %v983, %v4428
    %v4430 = vpop.f32.mrb[0].mxu0
    %v4431 = vadd.f32 %v987, %v4430
    %4432 = vdwg.mxu0
    %4433 = vmatprep.subr.bf16.mxu0 %v2823
    %4434 = vmatpush1.bf16.msra.mxu0 %v2822
    %4435 = vmatprep.subr.bf16.mxu0 %v2829
    %4436 = vmatpush1.bf16.msra.mxu0 %v2828
    %4437 = vmatprep.subr.bf16.mxu0 %v2835
    %4438 = vmatpush1.bf16.msra.mxu0 %v2834
    %4439 = vmatprep.subr.bf16.mxu0 %v2841
    %4440 = vmatpush1.bf16.msra.mxu0 %v2840
    %4441 = vmatprep.subr.bf16.mxu0 %v2847
    %4442 = vmatpush1.bf16.msra.mxu0 %v2846
    %4443 = vmatprep.subr.bf16.mxu0 %v2853
    %4444 = vmatpush1.bf16.msra.mxu0 %v2852
    %4445 = vmatprep.subr.bf16.mxu0 %v2859
    %4446 = vmatpush1.bf16.msra.mxu0 %v2858
    %4447 = vmatprep.subr.bf16.mxu0 %v2865
    %4448 = vmatpush1.bf16.msra.mxu0 %v2864
    %4449 = vmatprep.subr.bf16.mxu0 %v2871
    %4450 = vmatpush1.bf16.msra.mxu0 %v2870
    %4451 = vmatprep.subr.bf16.mxu0 %v2877
    %4452 = vmatpush1.bf16.msra.mxu0 %v2876
    %4453 = vmatprep.subr.bf16.mxu0 %v2883
    %4454 = vmatpush1.bf16.msra.mxu0 %v2882
    %4455 = vmatprep.subr.bf16.mxu0 %v2889
    %4456 = vmatpush1.bf16.msra.mxu0 %v2888
    %4457 = vmatprep.subr.bf16.mxu0 %v2895
    %4458 = vmatpush1.bf16.msra.mxu0 %v2894
    %4459 = vmatprep.subr.bf16.mxu0 %v2901
    %4460 = vmatpush1.bf16.msra.mxu0 %v2900
    %4461 = vmatprep.subr.bf16.mxu0 %v2907
    %4462 = vmatpush1.bf16.msra.mxu0 %v2906
    %4463 = vmatprep.subr.bf16.mxu0 %v2913
    %4464 = vmatpush1.bf16.msra.mxu0 %v2912
    %4465 = vmatprep.mubr.bf16.mxu0 %v377
    %4466 = vmatmul.mubr.bf16.gmra.mrb[0].mxu0 %v376
    %v4467 = vpop.f32.mrb[0].mxu0
    %v4468 = vadd.f32 %v4425, %v4467
    %v4469 = vpop.f32.mrb[0].mxu0
    %v4470 = vadd.f32 %v4427, %v4469
    %v4471 = vpop.f32.mrb[0].mxu0
    %v4472 = vadd.f32 %v4429, %v4471
    %v4473 = vpop.f32.mrb[0].mxu0
    %v4474 = vadd.f32 %v4431, %v4473
    %4475 = vdwg.mxu0
    %4476 = vmatprep.subr.bf16.mxu0 %v2919
    %4477 = vmatpush1.bf16.msra.mxu0 %v2918
    %4478 = vmatprep.subr.bf16.mxu0 %v2925
    %4479 = vmatpush1.bf16.msra.mxu0 %v2924
    %4480 = vmatprep.subr.bf16.mxu0 %v2931
    %4481 = vmatpush1.bf16.msra.mxu0 %v2930
    %4482 = vmatprep.subr.bf16.mxu0 %v2937
    %4483 = vmatpush1.bf16.msra.mxu0 %v2936
    %4484 = vmatprep.subr.bf16.mxu0 %v2943
    %4485 = vmatpush1.bf16.msra.mxu0 %v2942
    %4486 = vmatprep.subr.bf16.mxu0 %v2949
    %4487 = vmatpush1.bf16.msra.mxu0 %v2948
    %4488 = vmatprep.subr.bf16.mxu0 %v2955
    %4489 = vmatpush1.bf16.msra.mxu0 %v2954
    %4490 = vmatprep.subr.bf16.mxu0 %v2961
    %4491 = vmatpush1.bf16.msra.mxu0 %v2960
    %4492 = vmatprep.subr.bf16.mxu0 %v2967
    %4493 = vmatpush1.bf16.msra.mxu0 %v2966
    %4494 = vmatprep.subr.bf16.mxu0 %v2973
    %4495 = vmatpush1.bf16.msra.mxu0 %v2972
    %4496 = vmatprep.subr.bf16.mxu0 %v2979
    %4497 = vmatpush1.bf16.msra.mxu0 %v2978
    %4498 = vmatprep.subr.bf16.mxu0 %v2985
    %4499 = vmatpush1.bf16.msra.mxu0 %v2984
    %4500 = vmatprep.subr.bf16.mxu0 %v2991
    %4501 = vmatpush1.bf16.msra.mxu0 %v2990
    %4502 = vmatprep.subr.bf16.mxu0 %v2997
    %4503 = vmatpush1.bf16.msra.mxu0 %v2996
    %4504 = vmatprep.subr.bf16.mxu0 %v3003
    %4505 = vmatpush1.bf16.msra.mxu0 %v3002
    %4506 = vmatprep.subr.bf16.mxu0 %v3009
    %4507 = vmatpush1.bf16.msra.mxu0 %v3008
    %4508 = vmatprep.mubr.bf16.mxu0 %v379
    %4509 = vmatmul.mubr.bf16.gmra.mrb[0].mxu0 %v378
    %v4510 = vpop.f32.mrb[0].mxu0
    %v4511 = vadd.f32 %v4468, %v4510
    %v4512 = vpop.f32.mrb[0].mxu0
    %v4513 = vadd.f32 %v4470, %v4512
    %v4514 = vpop.f32.mrb[0].mxu0
    %v4515 = vadd.f32 %v4472, %v4514
    %v4516 = vpop.f32.mrb[0].mxu0
    %v4517 = vadd.f32 %v4474, %v4516
    %4518 = vdwg.mxu0
    %4519 = vmatprep.subr.bf16.mxu0 %v3015
    %4520 = vmatpush1.bf16.msra.mxu0 %v3014
    %4521 = vmatprep.subr.bf16.mxu0 %v3021
    %4522 = vmatpush1.bf16.msra.mxu0 %v3020
    %4523 = vmatprep.subr.bf16.mxu0 %v3027
    %4524 = vmatpush1.bf16.msra.mxu0 %v3026
    %4525 = vmatprep.subr.bf16.mxu0 %v3033
    %4526 = vmatpush1.bf16.msra.mxu0 %v3032
    %4527 = vmatprep.subr.bf16.mxu0 %v3039
    %4528 = vmatpush1.bf16.msra.mxu0 %v3038
    %4529 = vmatprep.subr.bf16.mxu0 %v3045
    %4530 = vmatpush1.bf16.msra.mxu0 %v3044
    %4531 = vmatprep.subr.bf16.mxu0 %v3051
    %4532 = vmatpush1.bf16.msra.mxu0 %v3050
    %4533 = vmatprep.subr.bf16.mxu0 %v3057
    %4534 = vmatpush1.bf16.msra.mxu0 %v3056
    %4535 = vmatprep.subr.bf16.mxu0 %v3063
    %4536 = vmatpush1.bf16.msra.mxu0 %v3062
    %4537 = vmatprep.subr.bf16.mxu0 %v3069
    %4538 = vmatpush1.bf16.msra.mxu0 %v3068
    %4539 = vmatprep.subr.bf16.mxu0 %v3075
    %4540 = vmatpush1.bf16.msra.mxu0 %v3074
    %4541 = vmatprep.subr.bf16.mxu0 %v3081
    %4542 = vmatpush1.bf16.msra.mxu0 %v3080
    %4543 = vmatprep.subr.bf16.mxu0 %v3087
    %4544 = vmatpush1.bf16.msra.mxu0 %v3086
    %4545 = vmatprep.subr.bf16.mxu0 %v3093
    %4546 = vmatpush1.bf16.msra.mxu0 %v3092
    %4547 = vmatprep.subr.bf16.mxu0 %v3099
    %4548 = vmatpush1.bf16.msra.mxu0 %v3098
    %4549 = vmatprep.subr.bf16.mxu0 %v3105
    %4550 = vmatpush1.bf16.msra.mxu0 %v3104
    %4551 = vmatprep.mubr.bf16.mxu0 %v381
    %4552 = vmatmul.mubr.bf16.gmra.mrb[0].mxu0 %v380
    %v4553 = vpop.f32.mrb[0].mxu0
    %v4554 = vadd.f32 %v4511, %v4553
    %v4555 = vpop.f32.mrb[0].mxu0
    %v4556 = vadd.f32 %v4513, %v4555
    %v4557 = vpop.f32.mrb[0].mxu0
    %v4558 = vadd.f32 %v4515, %v4557
    %v4559 = vpop.f32.mrb[0].mxu0
    %v4560 = vadd.f32 %v4517, %v4559
    %4561 = vdwg.mxu0
    %4562 = vmatprep.subr.bf16.mxu0 %v3111
    %4563 = vmatpush1.bf16.msra.mxu0 %v3110
    %4564 = vmatprep.subr.bf16.mxu0 %v3117
    %4565 = vmatpush1.bf16.msra.mxu0 %v3116
    %4566 = vmatprep.subr.bf16.mxu0 %v3123
    %4567 = vmatpush1.bf16.msra.mxu0 %v3122
    %4568 = vmatprep.subr.bf16.mxu0 %v3129
    %4569 = vmatpush1.bf16.msra.mxu0 %v3128
    %4570 = vmatprep.subr.bf16.mxu0 %v3135
    %4571 = vmatpush1.bf16.msra.mxu0 %v3134
    %4572 = vmatprep.subr.bf16.mxu0 %v3141
    %4573 = vmatpush1.bf16.msra.mxu0 %v3140
    %4574 = vmatprep.subr.bf16.mxu0 %v3147
    %4575 = vmatpush1.bf16.msra.mxu0 %v3146
    %4576 = vmatprep.subr.bf16.mxu0 %v3153
    %4577 = vmatpush1.bf16.msra.mxu0 %v3152
    %4578 = vmatprep.subr.bf16.mxu0 %v3159
    %4579 = vmatpush1.bf16.msra.mxu0 %v3158
    %4580 = vmatprep.subr.bf16.mxu0 %v3165
    %4581 = vmatpush1.bf16.msra.mxu0 %v3164
    %4582 = vmatprep.subr.bf16.mxu0 %v3171
    %4583 = vmatpush1.bf16.msra.mxu0 %v3170
    %4584 = vmatprep.subr.bf16.mxu0 %v3177
    %4585 = vmatpush1.bf16.msra.mxu0 %v3176
    %4586 = vmatprep.subr.bf16.mxu0 %v3183
    %4587 = vmatpush1.bf16.msra.mxu0 %v3182
    %4588 = vmatprep.subr.bf16.mxu0 %v3189
    %4589 = vmatpush1.bf16.msra.mxu0 %v3188
    %4590 = vmatprep.subr.bf16.mxu0 %v3195
    %4591 = vmatpush1.bf16.msra.mxu0 %v3194
    %4592 = vmatprep.subr.bf16.mxu0 %v3201
    %4593 = vmatpush1.bf16.msra.mxu0 %v3200
    %4594 = vmatprep.mubr.bf16.mxu0 %v383
    %4595 = vmatmul.mubr.bf16.gmra.mrb[0].mxu0 %v382
    %v4596 = vpop.f32.mrb[0].mxu0
    %v4597 = vadd.f32 %v4554, %v4596
    %v4598 = vpop.f32.mrb[0].mxu0
    %v4599 = vadd.f32 %v4556, %v4598
    %v4600 = vpop.f32.mrb[0].mxu0
    %v4601 = vadd.f32 %v4558, %v4600
    %v4602 = vpop.f32.mrb[0].mxu0
    %v4603 = vadd.f32 %v4560, %v4602
    %4604 = vdwg.mxu0
    %4605 = vmatprep.subr.bf16.mxu0 %v3207
    %4606 = vmatpush1.bf16.msra.mxu0 %v3206
    %4607 = vmatprep.subr.bf16.mxu0 %v3213
    %4608 = vmatpush1.bf16.msra.mxu0 %v3212
    %4609 = vmatprep.subr.bf16.mxu0 %v3219
    %4610 = vmatpush1.bf16.msra.mxu0 %v3218
    %4611 = vmatprep.subr.bf16.mxu0 %v3225
    %4612 = vmatpush1.bf16.msra.mxu0 %v3224
    %4613 = vmatprep.subr.bf16.mxu0 %v3231
    %4614 = vmatpush1.bf16.msra.mxu0 %v3230
    %4615 = vmatprep.subr.bf16.mxu0 %v3237
    %4616 = vmatpush1.bf16.msra.mxu0 %v3236
    %4617 = vmatprep.subr.bf16.mxu0 %v3243
    %4618 = vmatpush1.bf16.msra.mxu0 %v3242
    %4619 = vmatprep.subr.bf16.mxu0 %v3249
    %4620 = vmatpush1.bf16.msra.mxu0 %v3248
    %4621 = vmatprep.subr.bf16.mxu0 %v3255
    %4622 = vmatpush1.bf16.msra.mxu0 %v3254
    %4623 = vmatprep.subr.bf16.mxu0 %v3261
    %4624 = vmatpush1.bf16.msra.mxu0 %v3260
    %4625 = vmatprep.subr.bf16.mxu0 %v3267
    %4626 = vmatpush1.bf16.msra.mxu0 %v3266
    %4627 = vmatprep.subr.bf16.mxu0 %v3273
    %4628 = vmatpush1.bf16.msra.mxu0 %v3272
    %4629 = vmatprep.subr.bf16.mxu0 %v3279
    %4630 = vmatpush1.bf16.msra.mxu0 %v3278
    %4631 = vmatprep.subr.bf16.mxu0 %v3285
    %4632 = vmatpush1.bf16.msra.mxu0 %v3284
    %4633 = vmatprep.subr.bf16.mxu0 %v3291
    %4634 = vmatpush1.bf16.msra.mxu0 %v3290
    %4635 = vmatprep.subr.bf16.mxu0 %v3297
    %4636 = vmatpush1.bf16.msra.mxu0 %v3296
    %4637 = vmatprep.mubr.bf16.mxu0 %v385
    %4638 = vmatmul.mubr.bf16.gmra.mrb[0].mxu0 %v384
    %v4639 = vpop.f32.mrb[0].mxu0
    %v4640 = vadd.f32 %v4597, %v4639
    %v4641 = vpop.f32.mrb[0].mxu0
    %v4642 = vadd.f32 %v4599, %v4641
    %v4643 = vpop.f32.mrb[0].mxu0
    %v4644 = vadd.f32 %v4601, %v4643
    %v4645 = vpop.f32.mrb[0].mxu0
    %v4646 = vadd.f32 %v4603, %v4645
    %4647 = vdwg.mxu0
    %v4648 = vmax.f32 %v4124, 0.0
    %v4649 = vmax.f32 %v4126, 0.0
    %v4650 = vmax.f32 %v4382, 0.0
    %v4651 = vmax.f32 %v4384, 0.0
    %v4652 = vmax.f32 %v4640, 0.0
    %v4653 = vmax.f32 %v4642, 0.0
    %v4654 = vmax.f32 %v4128, 0.0
    %v4655 = vmax.f32 %v4130, 0.0
    %v4656 = vmax.f32 %v4386, 0.0
    %v4657 = vmax.f32 %v4388, 0.0
    %v4658 = vmax.f32 %v4644, 0.0
    %v4659 = vmax.f32 %v4646, 0.0
    %v4660 = vpack.c.bf16 %v4654, %v4648
    %v4661 = vpack.c.bf16 %v4655, %v4649
    %v4662 = vpack.c.bf16 %v4656, %v4650
    %v4663 = vpack.c.bf16 %v4657, %v4651
    %v4664 = vpack.c.bf16 %v4658, %v4652
    %v4665 = vpack.c.bf16 %v4659, %v4653
    %v4666 = vld [vmem:[#allocation8] sm:$0xf]
    %v4667 = vld [vmem:[#allocation8 + $0x4] sm:$0xf]
    %v4668 = vld [vmem:[#allocation8 + $0x8] sm:$0xf]
    %v4669 = vld [vmem:[#allocation8 + $0xc] sm:$0xf]
    %v4670 = vld [vmem:[#allocation8 + $0x10] sm:$0xf]
    %v4671 = vld [vmem:[#allocation8 + $0x14] sm:$0xf]
    %v4672 = vld [vmem:[#allocation8 + $0x18] sm:$0xf]
    %v4673 = vld [vmem:[#allocation8 + $0x1c] sm:$0xf]
    %v4674 = vld [vmem:[#allocation8 + $0x20] sm:$0xf]
    %v4675 = vld [vmem:[#allocation8 + $0x24] sm:$0xf]
    %v4676 = vld [vmem:[#allocation8 + $0x28] sm:$0xf]
    %v4677 = vld [vmem:[#allocation8 + $0x2c] sm:$0xf]
    %v4678 = vld [vmem:[#allocation8 + $0x30] sm:$0xf]
    %v4679 = vld [vmem:[#allocation8 + $0x34] sm:$0xf]
    %v4680 = vld [vmem:[#allocation8 + $0x38] sm:$0xf]
    %v4681 = vld [vmem:[#allocation8 + $0x3c] sm:$0xf]
    %v4682 = vld [vmem:[#allocation8 + $0x40] sm:$0xf]
    %v4683 = vld [vmem:[#allocation8 + $0x44] sm:$0xf]
    %v4684 = vld [vmem:[#allocation8 + $0x48] sm:$0xf]
    %v4685 = vld [vmem:[#allocation8 + $0x4c] sm:$0xf]
    %v4686 = vld [vmem:[#allocation8 + $0x50] sm:$0xf]
    %v4687 = vld [vmem:[#allocation8 + $0x54] sm:$0xf]
    %v4688 = vld [vmem:[#allocation8 + $0x58] sm:$0xf]
    %v4689 = vld [vmem:[#allocation8 + $0x5c] sm:$0xf]
    %v4690 = vld [vmem:[#allocation8 + $0x60] sm:$0xf]
    %v4691 = vld [vmem:[#allocation8 + $0x64] sm:$0xf]
    %v4692 = vld [vmem:[#allocation8 + $0x68] sm:$0xf]
    %v4693 = vld [vmem:[#allocation8 + $0x6c] sm:$0xf]
    %v4694 = vld [vmem:[#allocation8 + $0x70] sm:$0xf]
    %v4695 = vld [vmem:[#allocation8 + $0x74] sm:$0xf]
    %v4696 = vld [vmem:[#allocation8 + $0x78] sm:$0xf]
    %v4697 = vld [vmem:[#allocation8 + $0x7c] sm:$0xf]
    %v4698 = vld [vmem:[#allocation8 + $0x80] sm:$0xf]
    %v4699 = vld [vmem:[#allocation8 + $0x84] sm:$0xf]
    %v4700 = vld [vmem:[#allocation8 + $0x88] sm:$0xf]
    %v4701 = vld [vmem:[#allocation8 + $0x8c] sm:$0xf]
    %v4702 = vld [vmem:[#allocation8 + $0x90] sm:$0xf]
    %v4703 = vld [vmem:[#allocation8 + $0x94] sm:$0xf]
    %v4704 = vld [vmem:[#allocation8 + $0x98] sm:$0xf]
    %v4705 = vld [vmem:[#allocation8 + $0x9c] sm:$0xf]
    %v4706 = vld [vmem:[#allocation8 + $0xa0] sm:$0xf]
    %v4707 = vld [vmem:[#allocation8 + $0xa4] sm:$0xf]
    %v4708 = vld [vmem:[#allocation8 + $0xa8] sm:$0xf]
    %v4709 = vld [vmem:[#allocation8 + $0xac] sm:$0xf]
    %v4710 = vld [vmem:[#allocation8 + $0xb0] sm:$0xf]
    %v4711 = vld [vmem:[#allocation8 + $0xb4] sm:$0xf]
    %v4712 = vld [vmem:[#allocation8 + $0xb8] sm:$0xf]
    %v4713 = vld [vmem:[#allocation8 + $0xbc] sm:$0xf]
    %v4714 = vld [vmem:[#allocation8 + $0xc0] sm:$0xf]
    %v4715 = vld [vmem:[#allocation8 + $0xc4] sm:$0xf]
    %v4716 = vld [vmem:[#allocation8 + $0xc8] sm:$0xf]
    %v4717 = vld [vmem:[#allocation8 + $0xcc] sm:$0xf]
    %v4718 = vld [vmem:[#allocation8 + $0xd0] sm:$0xf]
    %v4719 = vld [vmem:[#allocation8 + $0xd4] sm:$0xf]
    %v4720 = vld [vmem:[#allocation8 + $0xd8] sm:$0xf]
    %v4721 = vld [vmem:[#allocation8 + $0xdc] sm:$0xf]
    %v4722 = vld [vmem:[#allocation8 + $0xe0] sm:$0xf]
    %v4723 = vld [vmem:[#allocation8 + $0xe4] sm:$0xf]
    %v4724 = vld [vmem:[#allocation8 + $0xe8] sm:$0xf]
    %v4725 = vld [vmem:[#allocation8 + $0xec] sm:$0xf]
    %v4726 = vld [vmem:[#allocation8 + $0xf0] sm:$0xf]
    %v4727 = vld [vmem:[#allocation8 + $0xf4] sm:$0xf]
    %v4728 = vld [vmem:[#allocation8 + $0xf8] sm:$0xf]
    %v4729 = vld [vmem:[#allocation8 + $0xfc] sm:$0xf]
    %v4730 = vld [vmem:[#allocation8 + $0x100] sm:$0xf]
    %v4731 = vld [vmem:[#allocation8 + $0x104] sm:$0xf]
    %v4732 = vld [vmem:[#allocation8 + $0x108] sm:$0xf]
    %v4733 = vld [vmem:[#allocation8 + $0x10c] sm:$0xf]
    %v4734 = vld [vmem:[#allocation8 + $0x110] sm:$0xf]
    %v4735 = vld [vmem:[#allocation8 + $0x114] sm:$0xf]
    %v4736 = vld [vmem:[#allocation8 + $0x118] sm:$0xf]
    %v4737 = vld [vmem:[#allocation8 + $0x11c] sm:$0xf]
    %v4738 = vld [vmem:[#allocation8 + $0x120] sm:$0xf]
    %v4739 = vld [vmem:[#allocation8 + $0x124] sm:$0xf]
    %v4740 = vld [vmem:[#allocation8 + $0x128] sm:$0xf]
    %v4741 = vld [vmem:[#allocation8 + $0x12c] sm:$0xf]
    %v4742 = vld [vmem:[#allocation8 + $0x130] sm:$0xf]
    %v4743 = vld [vmem:[#allocation8 + $0x134] sm:$0xf]
    %v4744 = vld [vmem:[#allocation8 + $0x138] sm:$0xf]
    %v4745 = vld [vmem:[#allocation8 + $0x13c] sm:$0xf]
    %v4746 = vld [vmem:[#allocation8 + $0x140] sm:$0xf]
    %v4747 = vld [vmem:[#allocation8 + $0x144] sm:$0xf]
    %v4748 = vld [vmem:[#allocation8 + $0x148] sm:$0xf]
    %v4749 = vld [vmem:[#allocation8 + $0x14c] sm:$0xf]
    %v4750 = vld [vmem:[#allocation8 + $0x150] sm:$0xf]
    %v4751 = vld [vmem:[#allocation8 + $0x154] sm:$0xf]
    %v4752 = vld [vmem:[#allocation8 + $0x158] sm:$0xf]
    %v4753 = vld [vmem:[#allocation8 + $0x15c] sm:$0xf]
    %v4754 = vld [vmem:[#allocation8 + $0x160] sm:$0xf]
    %v4755 = vld [vmem:[#allocation8 + $0x164] sm:$0xf]
    %v4756 = vld [vmem:[#allocation8 + $0x168] sm:$0xf]
    %v4757 = vld [vmem:[#allocation8 + $0x16c] sm:$0xf]
    %v4758 = vld [vmem:[#allocation8 + $0x170] sm:$0xf]
    %v4759 = vld [vmem:[#allocation8 + $0x174] sm:$0xf]
    %v4760 = vld [vmem:[#allocation8 + $0x178] sm:$0xf]
    %v4761 = vld [vmem:[#allocation8 + $0x17c] sm:$0xf]
    %v4762 = vld [vmem:[#allocation10] sm:$0x1]
    %v4764 = vlaneseq
    %v4765 = vshrl.u32 %v4764, 7
    %v4766 = vsub.s32 0, %v4765
    %v4767 = vrot.slane %v4762, %v4766
    %v4865 = vunpack.c.l.b16 %v4666
    %v4866 = vunpack.c.l.b16 %v4667
    %v4867 = vunpack.c.l.b16 %v4668
    %v4868 = vunpack.c.l.b16 %v4669
    %v4869 = vunpack.c.l.b16 %v4670
    %v4870 = vunpack.c.l.b16 %v4671
    %v4871 = vunpack.c.l.b16 %v4672
    %v4872 = vunpack.c.l.b16 %v4673
    %v4873 = vunpack.c.l.b16 %v4674
    %v4874 = vunpack.c.l.b16 %v4675
    %v4875 = vunpack.c.l.b16 %v4676
    %v4876 = vunpack.c.l.b16 %v4677
    %v4877 = vunpack.c.l.b16 %v4678
    %v4878 = vunpack.c.l.b16 %v4679
    %v4879 = vunpack.c.l.b16 %v4680
    %v4880 = vunpack.c.l.b16 %v4681
    %v4881 = vunpack.c.l.b16 %v4682
    %v4882 = vunpack.c.l.b16 %v4683
    %v4883 = vunpack.c.l.b16 %v4684
    %v4884 = vunpack.c.l.b16 %v4685
    %v4885 = vunpack.c.l.b16 %v4686
    %v4886 = vunpack.c.l.b16 %v4687
    %v4887 = vunpack.c.l.b16 %v4688
    %v4888 = vunpack.c.l.b16 %v4689
    %v4889 = vunpack.c.l.b16 %v4690
    %v4890 = vunpack.c.l.b16 %v4691
    %v4891 = vunpack.c.l.b16 %v4692
    %v4892 = vunpack.c.l.b16 %v4693
    %v4893 = vunpack.c.l.b16 %v4694
    %v4894 = vunpack.c.l.b16 %v4695
    %v4895 = vunpack.c.l.b16 %v4696
    %v4896 = vunpack.c.l.b16 %v4697
    %v4897 = vunpack.c.l.b16 %v4698
    %v4898 = vunpack.c.l.b16 %v4699
    %v4899 = vunpack.c.l.b16 %v4700
    %v4900 = vunpack.c.l.b16 %v4701
    %v4901 = vunpack.c.l.b16 %v4702
    %v4902 = vunpack.c.l.b16 %v4703
    %v4903 = vunpack.c.l.b16 %v4704
    %v4904 = vunpack.c.l.b16 %v4705
    %v4905 = vunpack.c.l.b16 %v4706
    %v4906 = vunpack.c.l.b16 %v4707
    %v4907 = vunpack.c.l.b16 %v4708
    %v4908 = vunpack.c.l.b16 %v4709
    %v4909 = vunpack.c.l.b16 %v4710
    %v4910 = vunpack.c.l.b16 %v4711
    %v4911 = vunpack.c.l.b16 %v4712
    %v4912 = vunpack.c.l.b16 %v4713
    %v4913 = vunpack.c.l.b16 %v4714
    %v4914 = vunpack.c.l.b16 %v4715
    %v4915 = vunpack.c.l.b16 %v4716
    %v4916 = vunpack.c.l.b16 %v4717
    %v4917 = vunpack.c.l.b16 %v4718
    %v4918 = vunpack.c.l.b16 %v4719
    %v4919 = vunpack.c.l.b16 %v4720
    %v4920 = vunpack.c.l.b16 %v4721
    %v4921 = vunpack.c.l.b16 %v4722
    %v4922 = vunpack.c.l.b16 %v4723
    %v4923 = vunpack.c.l.b16 %v4724
    %v4924 = vunpack.c.l.b16 %v4725
    %v4925 = vunpack.c.l.b16 %v4726
    %v4926 = vunpack.c.l.b16 %v4727
    %v4927 = vunpack.c.l.b16 %v4728
    %v4928 = vunpack.c.l.b16 %v4729
    %v4929 = vunpack.c.l.b16 %v4730
    %v4930 = vunpack.c.l.b16 %v4731
    %v4931 = vunpack.c.l.b16 %v4732
    %v4932 = vunpack.c.l.b16 %v4733
    %v4933 = vunpack.c.l.b16 %v4734
    %v4934 = vunpack.c.l.b16 %v4735
    %v4935 = vunpack.c.l.b16 %v4736
    %v4936 = vunpack.c.l.b16 %v4737
    %v4937 = vunpack.c.l.b16 %v4738
    %v4938 = vunpack.c.l.b16 %v4739
    %v4939 = vunpack.c.l.b16 %v4740
    %v4940 = vunpack.c.l.b16 %v4741
    %v4941 = vunpack.c.l.b16 %v4742
    %v4942 = vunpack.c.l.b16 %v4743
    %v4943 = vunpack.c.l.b16 %v4744
    %v4944 = vunpack.c.l.b16 %v4745
    %v4945 = vunpack.c.l.b16 %v4746
    %v4946 = vunpack.c.l.b16 %v4747
    %v4947 = vunpack.c.l.b16 %v4748
    %v4948 = vunpack.c.l.b16 %v4749
    %v4949 = vunpack.c.l.b16 %v4750
    %v4950 = vunpack.c.l.b16 %v4751
    %v4951 = vunpack.c.l.b16 %v4752
    %v4952 = vunpack.c.l.b16 %v4753
    %v4953 = vunpack.c.l.b16 %v4754
    %v4954 = vunpack.c.l.b16 %v4755
    %v4955 = vunpack.c.l.b16 %v4756
    %v4956 = vunpack.c.l.b16 %v4757
    %v4957 = vunpack.c.l.b16 %v4758
    %v4958 = vunpack.c.l.b16 %v4759
    %v4959 = vunpack.c.l.b16 %v4760
    %v4960 = vunpack.c.l.b16 %v4761
    %v4961 = vpack.c.b16 %v4866, %v4865
    %v4962 = vpack.c.b16 %v4868, %v4867
    %v4963 = vpack.c.b16 %v4870, %v4869
    %v4964 = vpack.c.b16 %v4872, %v4871
    %v4965 = vpack.c.b16 %v4874, %v4873
    %v4966 = vpack.c.b16 %v4876, %v4875
    %v4967 = vpack.c.b16 %v4878, %v4877
    %v4968 = vpack.c.b16 %v4880, %v4879
    %v4969 = vpack.c.b16 %v4882, %v4881
    %v4970 = vpack.c.b16 %v4884, %v4883
    %v4971 = vpack.c.b16 %v4886, %v4885
    %v4972 = vpack.c.b16 %v4888, %v4887
    %v4973 = vpack.c.b16 %v4890, %v4889
    %v4974 = vpack.c.b16 %v4892, %v4891
    %v4975 = vpack.c.b16 %v4894, %v4893
    %v4976 = vpack.c.b16 %v4896, %v4895
    %v4977 = vpack.c.b16 %v4898, %v4897
    %v4978 = vpack.c.b16 %v4900, %v4899
    %v4979 = vpack.c.b16 %v4902, %v4901
    %v4980 = vpack.c.b16 %v4904, %v4903
    %v4981 = vpack.c.b16 %v4906, %v4905
    %v4982 = vpack.c.b16 %v4908, %v4907
    %v4983 = vpack.c.b16 %v4910, %v4909
    %v4984 = vpack.c.b16 %v4912, %v4911
    %v4985 = vpack.c.b16 %v4914, %v4913
    %v4986 = vpack.c.b16 %v4916, %v4915
    %v4987 = vpack.c.b16 %v4918, %v4917
    %v4988 = vpack.c.b16 %v4920, %v4919
    %v4989 = vpack.c.b16 %v4922, %v4921
    %v4990 = vpack.c.b16 %v4924, %v4923
    %v4991 = vpack.c.b16 %v4926, %v4925
    %v4992 = vpack.c.b16 %v4928, %v4927
    %v4993 = vpack.c.b16 %v4930, %v4929
    %v4994 = vpack.c.b16 %v4932, %v4931
    %v4995 = vpack.c.b16 %v4934, %v4933
    %v4996 = vpack.c.b16 %v4936, %v4935
    %v4997 = vpack.c.b16 %v4938, %v4937
    %v4998 = vpack.c.b16 %v4940, %v4939
    %v4999 = vpack.c.b16 %v4942, %v4941
    %v5000 = vpack.c.b16 %v4944, %v4943
    %v5001 = vpack.c.b16 %v4946, %v4945
    %v5002 = vpack.c.b16 %v4948, %v4947
    %v5003 = vpack.c.b16 %v4950, %v4949
    %v5004 = vpack.c.b16 %v4952, %v4951
    %v5005 = vpack.c.b16 %v4954, %v4953
    %v5006 = vpack.c.b16 %v4956, %v4955
    %v5007 = vpack.c.b16 %v4958, %v4957
    %v5008 = vpack.c.b16 %v4960, %v4959
    %5057 = vmatprep.subr.bf16.mxu0 0
    %5058 = vmatpush1.bf16.msra.mxu0 %v4961
    %5059 = vmatprep.subr.bf16.mxu0 0
    %5060 = vmatpush1.bf16.msra.mxu0 %v4962
    %5061 = vmatprep.subr.bf16.mxu0 0
    %5062 = vmatpush1.bf16.msra.mxu0 %v4963
    %5063 = vmatprep.subr.bf16.mxu0 0
    %5064 = vmatpush1.bf16.msra.mxu0 %v4964
    %5065 = vmatprep.subr.bf16.mxu0 0
    %5066 = vmatpush1.bf16.msra.mxu0 %v4965
    %5067 = vmatprep.subr.bf16.mxu0 0
    %5068 = vmatpush1.bf16.msra.mxu0 %v4966
    %5069 = vmatprep.subr.bf16.mxu0 0
    %5070 = vmatpush1.bf16.msra.mxu0 %v4967
    %5071 = vmatprep.subr.bf16.mxu0 0
    %5072 = vmatpush1.bf16.msra.mxu0 %v4968
    %5073 = vmatprep.subr.bf16.mxu0 0
    %5074 = vmatpush1.bf16.msra.mxu0 %v4969
    %5075 = vmatprep.subr.bf16.mxu0 0
    %5076 = vmatpush1.bf16.msra.mxu0 %v4970
    %5077 = vmatprep.subr.bf16.mxu0 0
    %5078 = vmatpush1.bf16.msra.mxu0 %v4971
    %5079 = vmatprep.subr.bf16.mxu0 0
    %5080 = vmatpush1.bf16.msra.mxu0 %v4972
    %5081 = vmatprep.subr.bf16.mxu0 0
    %5082 = vmatpush1.bf16.msra.mxu0 %v4973
    %5083 = vmatprep.subr.bf16.mxu0 0
    %5084 = vmatpush1.bf16.msra.mxu0 %v4974
    %5085 = vmatprep.subr.bf16.mxu0 0
    %5086 = vmatpush1.bf16.msra.mxu0 %v4975
    %5087 = vmatprep.subr.bf16.mxu0 0
    %5088 = vmatpush1.bf16.msra.mxu0 %v4976
    %5089 = vmatprep.mubr.bf16.mxu0 %v4661
    %5090 = vmatmul.mubr.bf16.gmra.mrb[0].mxu0 %v4660
    %v5091 = vpop.f32.mrb[0].mxu0
    %v5092 = vadd.f32 %v4767, %v5091
    %v5093 = vpop.f32.mrb[0].mxu0
    %v5094 = vpop.f32.mrb[0].mxu0
    %v5095 = vadd.f32 %v4767, %v5094
    %v5096 = vpop.f32.mrb[0].mxu0
    %5097 = vdwg.mxu0
    %5098 = vmatprep.subr.bf16.mxu0 0
    %5099 = vmatpush1.bf16.msra.mxu0 %v4977
    %5100 = vmatprep.subr.bf16.mxu0 0
    %5101 = vmatpush1.bf16.msra.mxu0 %v4978
    %5102 = vmatprep.subr.bf16.mxu0 0
    %5103 = vmatpush1.bf16.msra.mxu0 %v4979
    %5104 = vmatprep.subr.bf16.mxu0 0
    %5105 = vmatpush1.bf16.msra.mxu0 %v4980
    %5106 = vmatprep.subr.bf16.mxu0 0
    %5107 = vmatpush1.bf16.msra.mxu0 %v4981
    %5108 = vmatprep.subr.bf16.mxu0 0
    %5109 = vmatpush1.bf16.msra.mxu0 %v4982
    %5110 = vmatprep.subr.bf16.mxu0 0
    %5111 = vmatpush1.bf16.msra.mxu0 %v4983
    %5112 = vmatprep.subr.bf16.mxu0 0
    %5113 = vmatpush1.bf16.msra.mxu0 %v4984
    %5114 = vmatprep.subr.bf16.mxu0 0
    %5115 = vmatpush1.bf16.msra.mxu0 %v4985
    %5116 = vmatprep.subr.bf16.mxu0 0
    %5117 = vmatpush1.bf16.msra.mxu0 %v4986
    %5118 = vmatprep.subr.bf16.mxu0 0
    %5119 = vmatpush1.bf16.msra.mxu0 %v4987
    %5120 = vmatprep.subr.bf16.mxu0 0
    %5121 = vmatpush1.bf16.msra.mxu0 %v4988
    %5122 = vmatprep.subr.bf16.mxu0 0
    %5123 = vmatpush1.bf16.msra.mxu0 %v4989
    %5124 = vmatprep.subr.bf16.mxu0 0
    %5125 = vmatpush1.bf16.msra.mxu0 %v4990
    %5126 = vmatprep.subr.bf16.mxu0 0
    %5127 = vmatpush1.bf16.msra.mxu0 %v4991
    %5128 = vmatprep.subr.bf16.mxu0 0
    %5129 = vmatpush1.bf16.msra.mxu0 %v4992
    %5130 = vmatprep.mubr.bf16.mxu0 %v4663
    %5131 = vmatmul.mubr.bf16.gmra.mrb[0].mxu0 %v4662
    %v5132 = vpop.f32.mrb[0].mxu0
    %v5133 = vadd.f32 %v5092, %v5132
    %v5134 = vpop.f32.mrb[0].mxu0
    %v5135 = vpop.f32.mrb[0].mxu0
    %v5136 = vadd.f32 %v5095, %v5135
    %v5137 = vpop.f32.mrb[0].mxu0
    %5138 = vdwg.mxu0
    %5139 = vmatprep.subr.bf16.mxu0 0
    %5140 = vmatpush1.bf16.msra.mxu0 %v4993
    %5141 = vmatprep.subr.bf16.mxu0 0
    %5142 = vmatpush1.bf16.msra.mxu0 %v4994
    %5143 = vmatprep.subr.bf16.mxu0 0
    %5144 = vmatpush1.bf16.msra.mxu0 %v4995
    %5145 = vmatprep.subr.bf16.mxu0 0
    %5146 = vmatpush1.bf16.msra.mxu0 %v4996
    %5147 = vmatprep.subr.bf16.mxu0 0
    %5148 = vmatpush1.bf16.msra.mxu0 %v4997
    %5149 = vmatprep.subr.bf16.mxu0 0
    %5150 = vmatpush1.bf16.msra.mxu0 %v4998
    %5151 = vmatprep.subr.bf16.mxu0 0
    %5152 = vmatpush1.bf16.msra.mxu0 %v4999
    %5153 = vmatprep.subr.bf16.mxu0 0
    %5154 = vmatpush1.bf16.msra.mxu0 %v5000
    %5155 = vmatprep.subr.bf16.mxu0 0
    %5156 = vmatpush1.bf16.msra.mxu0 %v5001
    %5157 = vmatprep.subr.bf16.mxu0 0
    %5158 = vmatpush1.bf16.msra.mxu0 %v5002
    %5159 = vmatprep.subr.bf16.mxu0 0
    %5160 = vmatpush1.bf16.msra.mxu0 %v5003
    %5161 = vmatprep.subr.bf16.mxu0 0
    %5162 = vmatpush1.bf16.msra.mxu0 %v5004
    %5163 = vmatprep.subr.bf16.mxu0 0
    %5164 = vmatpush1.bf16.msra.mxu0 %v5005
    %5165 = vmatprep.subr.bf16.mxu0 0
    %5166 = vmatpush1.bf16.msra.mxu0 %v5006
    %5167 = vmatprep.subr.bf16.mxu0 0
    %5168 = vmatpush1.bf16.msra.mxu0 %v5007
    %5169 = vmatprep.subr.bf16.mxu0 0
    %5170 = vmatpush1.bf16.msra.mxu0 %v5008
    %5171 = vmatprep.mubr.bf16.mxu0 %v4665
    %5172 = vmatmul.mubr.bf16.gmra.mrb[0].mxu0 %v4664
    %v5173 = vpop.f32.mrb[0].mxu0
    %v5174 = vadd.f32 %v5133, %v5173
    %v5175 = vpop.f32.mrb[0].mxu0
    %v5176 = vpop.f32.mrb[0].mxu0
    %v5177 = vadd.f32 %v5136, %v5176
    %v5178 = vpop.f32.mrb[0].mxu0
    %5179 = vdwg.mxu0
    %v5180 = vpack.c.bf16 %v5177, %v5174
    %v5182 = vcombine.high %v5180, %v5180
    %v5184 = vunpack.c.l.s4 1966171168
    %v5185 = vunpack.c.0.s8 %v5184
    %v5186 = vlaneseq
    %v5187 = vshrl.u32 %v5186, 7
    %v5188 = vsub.s32 %v5185, %v5187
    %v5189 = vrot.slane %v5180, %v5188
    %v5191 = vunpack.c.l.s4 1966171168
    %v5192 = vunpack.c.0.s8 %v5191
    %v5193 = vlaneseq
    %v5194 = vshrl.u32 %v5193, 7
    %v5195 = vsub.s32 %v5192, %v5194
    %v5196 = vrot.slane %v5182, %v5195
    %v5197 = vcombine.high %v5189, %v5189
    %v5198 = vcombine.high %v5196, %v5196
    %v5200 = vunpack.c.l.s4 1966171168
    %v5201 = vunpack.c.0.s8 %v5200
    %v5202 = vlaneseq
    %v5203 = vshrl.u32 %v5202, 7
    %v5204 = vsub.s32 %v5201, %v5203
    %v5205 = vrot.slane %v5189, %v5204
    %v5207 = vunpack.c.l.s4 1966171168
    %v5208 = vunpack.c.0.s8 %v5207
    %v5209 = vlaneseq
    %v5210 = vshrl.u32 %v5209, 7
    %v5211 = vsub.s32 %v5208, %v5210
    %v5212 = vrot.slane %v5196, %v5211
    %v5214 = vunpack.c.l.s4 1966171168
    %v5215 = vunpack.c.0.s8 %v5214
    %v5216 = vlaneseq
    %v5217 = vshrl.u32 %v5216, 7
    %v5218 = vsub.s32 %v5215, %v5217
    %v5219 = vrot.slane %v5197, %v5218
    %v5221 = vunpack.c.l.s4 1966171168
    %v5222 = vunpack.c.0.s8 %v5221
    %v5223 = vlaneseq
    %v5224 = vshrl.u32 %v5223, 7
    %v5225 = vsub.s32 %v5222, %v5224
    %v5226 = vrot.slane %v5198, %v5225
    %v5227 = vcombine.high %v5205, %v5205
    %v5228 = vcombine.high %v5212, %v5212
    %v5229 = vcombine.high %v5219, %v5219
    %v5230 = vcombine.high %v5226, %v5226
    %5239 = vst [vmem:[#allocation11] sm:$0x1] %v5205
    %5240 = vst [vmem:[#allocation11 + $0x1] sm:$0x1] %v5219
    %5241 = vst [vmem:[#allocation11 + $0x2] sm:$0x1] %v5227
    %5242 = vst [vmem:[#allocation11 + $0x3] sm:$0x1] %v5229
    %5243 = vst [vmem:[#allocation11 + $0x4] sm:$0x1] %v5212
    %5244 = vst [vmem:[#allocation11 + $0x5] sm:$0x1] %v5226
    %5245 = vst [vmem:[#allocation11 + $0x6] sm:$0x1] %v5228
    %5246 = vst [vmem:[#allocation11 + $0x7] sm:$0x1] %v5230
    // Predicated region
    $region42: #{tpu_custom_call.1} parent=1 // pred_check
      _
    $region43: #{tpu_custom_call.1} parent=1 // pred_check_branch
      %5248 = sbr.rel (0) target = $region45
    $region44: #{tpu_custom_call.1} parent=1 // pred_region
      %s5250 = ssub.s32 128, 16
      %5251 = vsyncadd [#allocation4], %s5250
      %s5252 = sshll.u32 [#allocation11], 4
      %s5253 = int_to_ptr.vmem [resolvable:$true] %s5252
      %5258 = dma.vmem_to_hbm [thread:$0]  %s5253, 16, %s5, [#allocation4], 16, 16, 1
    $region45: #{tpu_custom_call.1} parent=1 // pred_fallthru
      _
    // Predicated region
    $region46: #{tpu_custom_call.1} parent=1 // pred_check
      _
    $region47: #{tpu_custom_call.1} parent=1 // pred_check_branch
      %5260 = sbr.rel (0) target = $region49
    $region48: #{tpu_custom_call.1} parent=1 // pred_region
      %5261 = dma.done [#allocation4], 128
    $region49: #{tpu_custom_call.1} parent=1 // pred_fallthru
      _
    %5262 = vsyncpa [#allocation3], 1
    %5263 = vsyncpa [#allocation6], 1
    %5264 = vsyncpa [#allocation9], 1
    %5265 = vsyncpa [#allocation4], 1

</llo_original>
